<compile_context>
chip_gen: v5e
topology: v5e:2x2
jax: 0.10.0
libtpu: 0.0.40
codegen_flags: <defaults>
</compile_context>

<pallas_src>
import functools

import jax
import jax.numpy as jnp
from jax.experimental import pallas as pl
from jax.experimental.pallas import tpu as pltpu


def gmf_kernel(idx_ref, ut_ref, it_ref, w_ref, b_ref, o_ref):
    # idx_ref: (2, TB) int32   row 0 = user ids, row 1 = item ids (one DMA)
    # ut_ref:  (F, NU) bf16    user embedding table, transposed, VMEM-resident
    # it_ref:  (F, NI) bf16    item embedding table, transposed, VMEM-resident
    # w_ref:   (1, F)  f32     h_output weight as a row
    # b_ref:   (1, 1)  f32     h_output bias (SMEM)
    # o_ref:   (1, TB) f32     sigmoid(h_output(u*i)), lane-dense row
    nu = ut_ref.shape[1]
    ni = it_ref.shape[1]
    tb = o_ref.shape[1]

    idx = idx_ref[...]                                        # (2, TB) int32
    u_idx = idx[0:1, :]                                       # (1, TB)
    i_idx = idx[1:2, :]                                       # (1, TB)

    # Fused embedding gather: one-hot (vocab, TB) selector -> bf16 MXU matmul.
    # Exactly one 1.0 per column, f32 accumulate => gathered values are exact.
    u_onehot = (jax.lax.broadcasted_iota(jnp.int32, (nu, tb), 0) == u_idx
                ).astype(jnp.bfloat16)
    i_onehot = (jax.lax.broadcasted_iota(jnp.int32, (ni, tb), 0) == i_idx
                ).astype(jnp.bfloat16)
    ue = jnp.dot(ut_ref[...], u_onehot, preferred_element_type=jnp.float32)
    ie = jnp.dot(it_ref[...], i_onehot, preferred_element_type=jnp.float32)

    # GMF: elementwise product (VPU, f32), Linear(F -> 1) as one small MXU
    # dot producing a lane-dense (1, TB) row, bias + sigmoid in f32.
    x = ue * ie                                               # (F, TB)
    logit = jnp.dot(w_ref[...], x,
                    preferred_element_type=jnp.float32)       # (1, TB) on MXU
    o_ref[...] = jax.nn.sigmoid(logit + b_ref[0, 0])


def prepare_gmf_params(user_table, item_table, w, b):
    """One-time 'model init' prep (NOT per-forward work): bf16 tables,
    transposed to (F, vocab_pad) with vocab padded to a multiple of 128
    (lane axis after the transpose; padded columns are never selected)."""
    def prep(tbl):
        pad = (-tbl.shape[0]) % 128
        tbl = jnp.pad(tbl, ((0, pad), (0, 0)))
        return tbl.astype(jnp.bfloat16).T                     # (F, vocab_pad)

    w_row = w.astype(jnp.float32).reshape(1, -1)              # (1, F)
    return prep(user_table), prep(item_table), w_row, b.astype(jnp.float32).reshape(1, 1)


@functools.partial(jax.jit, static_argnames=("tile_b",))
def gmf_forward(ut_t, it_t, w_row, b, user, item, *, tile_b=2048):
    """ut_t/it_t: (F, vocab_pad) bf16; w_row: (1, F) f32; b: (1, 1) f32;
    user/item: (B,) int ids.  Returns sigmoid(GMF logits) of shape (B,).

    tile_b tuning: bigger (2048-4096) on v5e/v6e to cut grid-step overhead;
    on v7x keep >= 2 tiles so both TensorCores get work and re-check the
    64 MiB VMEM budget if vocab grows."""
    f, nu = ut_t.shape
    _, ni = it_t.shape
    batch = user.shape[0]
    num_tiles = pl.cdiv(batch, tile_b)
    b_pad = num_tiles * tile_b

    # Clamp ids defensively (torch.nn.Embedding would error on OOB ids; an
    # unclamped OOB id here would yield an all-zero one-hot -> sigmoid(bias)).
    user = jnp.clip(user.astype(jnp.int32), 0, nu - 1)
    item = jnp.clip(item.astype(jnp.int32), 0, ni - 1)

    # Single (2, b_pad) index array -> one DMA descriptor per grid step.
    idx = jnp.stack([jnp.pad(user, (0, b_pad - batch)),
                     jnp.pad(item, (0, b_pad - batch))], axis=0)

    out = pl.pallas_call(
        gmf_kernel,
        out_shape=jax.ShapeDtypeStruct((1, b_pad), jnp.float32),
        grid_spec=pltpu.PrefetchScalarGridSpec(
            num_scalar_prefetch=0,
            grid=(num_tiles,),
            in_specs=[
                pl.BlockSpec((2, tile_b), lambda i: (0, i)),    # stacked ids
                pl.BlockSpec((f, nu), lambda i: (0, 0)),        # user table (resident)
                pl.BlockSpec((f, ni), lambda i: (0, 0)),        # item table (resident)
                pl.BlockSpec((1, f), lambda i: (0, 0)),         # linear weight row
                pl.BlockSpec(memory_space=pltpu.MemorySpace.SMEM),  # bias scalar
            ],
            out_specs=pl.BlockSpec((1, tile_b), lambda i: (0, i)),  # lane-dense out
        ),
        compiler_params=pltpu.CompilerParams(
            dimension_semantics=("parallel",)),                 # v7x: shard tiles over 2 TCs
    )(idx, ut_t, it_t, w_row, b)

    # torch.squeeze on (B, 1) -> (B,); drop the padded rows.
    return out.reshape(b_pad)[:batch]


def gmf_reference(user_table_q, item_table_q, w, b, user, item):
    """Pure-JAX reference using the same bf16-rounded embeddings, f32 math."""
    ue = jnp.take(user_table_q, user, axis=0).astype(jnp.float32)
    ie = jnp.take(item_table_q, item, axis=0).astype(jnp.float32)
    x = ue * ie
    logit = jnp.sum(x * w.astype(jnp.float32), axis=-1) + b[0, 0]
    return jax.nn.sigmoid(logit)


if __name__ == "__main__":
    # Deterministic setup (no checkpoint loading).  batch=4096 / tile_b=2048
    # gives 2 fat grid steps (overhead-bound regime, and >=2 tiles for v7x).
    n_users, n_items, n_factors = 50, 100, 32
    batch = 4096
    tile_b = 2048

    key = jax.random.PRNGKey(0)
    k_ue, k_ie, k_w, k_b, k_u, k_i = jax.random.split(key, 6)

    # Embedding tables ~ N(0, 1) like torch.nn.Embedding default init.
    user_table = jax.random.normal(k_ue, (n_users, n_factors), jnp.float32)
    item_table = jax.random.normal(k_ie, (n_items, n_factors), jnp.float32)

    # Linear(F -> 1): uniform(-1/sqrt(F), 1/sqrt(F)) like torch default init.
    bound = 1.0 / (n_factors ** 0.5)
    w = jax.random.uniform(k_w, (1, n_factors), jnp.float32, -bound, bound)
    b = jax.random.uniform(k_b, (1, 1), jnp.float32, -bound, bound)

    # The nn.Embedding "user"/"item" integer inputs.
    user = jax.random.randint(k_u, (batch,), 0, n_users, dtype=jnp.int32)
    item = jax.random.randint(k_i, (batch,), 0, n_items, dtype=jnp.int32)

    # One-time parameter prep (bf16, transposed, vocab padded to 128).
    ut_t, it_t, w_row, b_f32 = prepare_gmf_params(user_table, item_table, w, b)

    out = gmf_forward(ut_t, it_t, w_row, b_f32, user, item, tile_b=tile_b)
    jax.block_until_ready(out)

    ref = gmf_reference(user_table.astype(jnp.bfloat16),
                        item_table.astype(jnp.bfloat16), w, b, user, item)

    assert out.shape == (batch,)
    max_err = float(jnp.max(jnp.abs(out - ref)))
    assert jnp.allclose(out, ref, atol=1e-4, rtol=1e-4), f"max abs err {max_err}"

    print("KERNEL_OK")
</pallas_src>

<mosaic_0001>
module attributes {stable_mosaic.version = 11 : i64} {
  func.func @gmf_kernel(%arg0: i32, %arg1: memref<2x2048xi32, #tpu.memory_space<vmem>>, %arg2: memref<32x128xbf16, #tpu.memory_space<vmem>>, %arg3: memref<32x128xbf16, #tpu.memory_space<vmem>>, %arg4: memref<1x32xf32, #tpu.memory_space<vmem>>, %arg5: memref<1x1xf32, #tpu.memory_space<smem>>, %arg6: memref<1x2048xf32, #tpu.memory_space<vmem>>) attributes {dimension_semantics = [#tpu.dimension_semantics<parallel>], iteration_bounds = array<i64: 2>, scalar_prefetch = 0 : i64, scratch_operands = 0 : i64, tpu.core_type = #tpu.core_type<tc>, window_params = [{transform_indices = @transform_0, window_bounds = array<i64: 2, 2048>}, {pipeline_mode = #tpu.pipeline_mode<synchronous>, transform_indices = @transform_1, window_bounds = array<i64: 32, 128>}, {pipeline_mode = #tpu.pipeline_mode<synchronous>, transform_indices = @transform_2, window_bounds = array<i64: 32, 128>}, {pipeline_mode = #tpu.pipeline_mode<synchronous>, transform_indices = @transform_3, window_bounds = array<i64: 1, 32>}, {transform_indices = @transform_4, window_bounds = array<i64: 1, 1>}, {transform_indices = @transform_5, window_bounds = array<i64: 1, 2048>}]} {
    %c0 = arith.constant 0 : index
    %c0_0 = arith.constant 0 : index
    %0 = vector.load %arg1[%c0, %c0_0] : memref<2x2048xi32, #tpu.memory_space<vmem>>, vector<2x2048xi32>
    %1 = vector.extract_strided_slice %0 {offsets = [0, 0], sizes = [1, 2048], strides = [1, 1]} : vector<2x2048xi32> to vector<1x2048xi32>
    %2 = vector.extract_strided_slice %0 {offsets = [1, 0], sizes = [1, 2048], strides = [1, 1]} : vector<2x2048xi32> to vector<1x2048xi32>
    %3 = tpu.iota {dimensions = array<i32: 0>} : vector<128x2048xi32>
    %4 = vector.broadcast %1 : vector<1x2048xi32> to vector<128x2048xi32>
    %5 = arith.cmpi eq, %3, %4 : vector<128x2048xi32>
    %6 = arith.extui %5 : vector<128x2048xi1> to vector<128x2048xi32>
    %7 = arith.sitofp %6 : vector<128x2048xi32> to vector<128x2048xf32>
    %8 = arith.truncf %7 : vector<128x2048xf32> to vector<128x2048xbf16>
    %9 = tpu.iota {dimensions = array<i32: 0>} : vector<128x2048xi32>
    %10 = vector.broadcast %2 : vector<1x2048xi32> to vector<128x2048xi32>
    %11 = arith.cmpi eq, %9, %10 : vector<128x2048xi32>
    %12 = arith.extui %11 : vector<128x2048xi1> to vector<128x2048xi32>
    %13 = arith.sitofp %12 : vector<128x2048xi32> to vector<128x2048xf32>
    %14 = arith.truncf %13 : vector<128x2048xf32> to vector<128x2048xbf16>
    %c0_1 = arith.constant 0 : index
    %c0_2 = arith.constant 0 : index
    %15 = vector.load %arg2[%c0_1, %c0_2] : memref<32x128xbf16, #tpu.memory_space<vmem>>, vector<32x128xbf16>
    %cst = arith.constant dense<0.000000e+00> : vector<32x2048xf32>
    %16 = tpu.matmul %15, %8, %cst {dimension_numbers = #tpu.dot_dimension_numbers<[1], [0], [0], [1], [0, 0, 1, 1], [], []>} : vector<32x128xbf16>, vector<128x2048xbf16>, vector<32x2048xf32> -> vector<32x2048xf32>
    %c0_3 = arith.constant 0 : index
    %c0_4 = arith.constant 0 : index
    %17 = vector.load %arg3[%c0_3, %c0_4] : memref<32x128xbf16, #tpu.memory_space<vmem>>, vector<32x128xbf16>
    %cst_5 = arith.constant dense<0.000000e+00> : vector<32x2048xf32>
    %18 = tpu.matmul %17, %14, %cst_5 {dimension_numbers = #tpu.dot_dimension_numbers<[1], [0], [0], [1], [0, 0, 1, 1], [], []>} : vector<32x128xbf16>, vector<128x2048xbf16>, vector<32x2048xf32> -> vector<32x2048xf32>
    %19 = arith.mulf %16, %18 : vector<32x2048xf32>
    %c0_6 = arith.constant 0 : index
    %c0_7 = arith.constant 0 : index
    %20 = vector.load %arg4[%c0_6, %c0_7] : memref<1x32xf32, #tpu.memory_space<vmem>>, vector<1x32xf32>
    %cst_8 = arith.constant dense<0.000000e+00> : vector<1x2048xf32>
    %21 = tpu.matmul %20, %19, %cst_8 {dimension_numbers = #tpu.dot_dimension_numbers<[1], [0], [0], [1], [0, 0, 1, 1], [], []>} : vector<1x32xf32>, vector<32x2048xf32>, vector<1x2048xf32> -> vector<1x2048xf32>
    %c0_9 = arith.constant 0 : index
    %c0_10 = arith.constant 0 : index
    %22 = memref.load %arg5[%c0_9, %c0_10] : memref<1x1xf32, #tpu.memory_space<smem>>
    %23 = vector.broadcast %22 : f32 to vector<1x2048xf32>
    %24 = arith.addf %21, %23 : vector<1x2048xf32>
    %25 = arith.negf %24 : vector<1x2048xf32>
    %26 = math.exp %25 : vector<1x2048xf32>
    %cst_11 = arith.constant 1.000000e+00 : f32
    %27 = vector.broadcast %cst_11 : f32 to vector<1x2048xf32>
    %28 = arith.addf %27, %26 : vector<1x2048xf32>
    %29 = arith.divf %27, %28 : vector<1x2048xf32>
    %c0_12 = arith.constant 0 : index
    %c0_13 = arith.constant 0 : index
    %30 = vector.load %arg6[%c0_12, %c0_13] : memref<1x2048xf32, #tpu.memory_space<vmem>>, vector<1x2048xf32>
    tpu.vector_store %arg6[%c0_12, %c0_13], %29 {strides = array<i32>} : memref<1x2048xf32, #tpu.memory_space<vmem>>, vector<1x2048xf32>,
    return
  }
  func.func @transform_0(%arg0: i32) -> (i32, i32) {
    %c0_i32 = arith.constant 0 : i32
    %c0_i32_0 = arith.constant 0 : i32
    return %c0_i32, %arg0 : i32, i32
  }
  func.func @transform_1(%arg0: i32) -> (i32, i32) {
    %c0_i32 = arith.constant 0 : i32
    %c0_i32_0 = arith.constant 0 : i32
    %c0_i32_1 = arith.constant 0 : i32
    return %c0_i32, %c0_i32_0 : i32, i32
  }
  func.func @transform_2(%arg0: i32) -> (i32, i32) {
    %c0_i32 = arith.constant 0 : i32
    %c0_i32_0 = arith.constant 0 : i32
    %c0_i32_1 = arith.constant 0 : i32
    return %c0_i32, %c0_i32_0 : i32, i32
  }
  func.func @transform_3(%arg0: i32) -> (i32, i32) {
    %c0_i32 = arith.constant 0 : i32
    %c0_i32_0 = arith.constant 0 : i32
    %c0_i32_1 = arith.constant 0 : i32
    return %c0_i32, %c0_i32_0 : i32, i32
  }
  func.func @transform_4(%arg0: i32) -> (i32, i32) {
    %c0_i32 = arith.constant 0 : i32
    %c0_i32_0 = arith.constant 0 : i32
    %c0_i32_1 = arith.constant 0 : i32
    return %c0_i32, %c0_i32_0 : i32, i32
  }
  func.func @transform_5(%arg0: i32) -> (i32, i32) {
    %c0_i32 = arith.constant 0 : i32
    %c0_i32_0 = arith.constant 0 : i32
    return %c0_i32, %arg0 : i32, i32
  }
}

</mosaic_0001>

<llo_original>
// kernel: gmf_forward.1
$region0: #{gmf_forward.1}
  #allocation0 [shape = 'u32[]', space=smem, size = 0x4, offset = 0x4, fixed_abs, tag = 'smem constant byte address 0x4 - core index']
  #allocation1 [shape = 'u32[72,128]{1,0:T(1,128)}', space=vmem, size = 0x9000, scoped, tag = 'internal scratch']
  #allocation2 [shape = 'f32[1,1]{1,0:T(1,128)S(6)}', space=smem, size = 0x200, scoped, tag = 'scoped memory for gmf_forward.1']
  %s0 = inlined_call_operand.vmem [shape: s32[2,4096], index: 0, kind: input, shape index: {}]
  %s1 = inlined_call_operand.vmem [shape: bf16[32,128], index: 1, kind: input, shape index: {}]
  %s2 = inlined_call_operand.vmem [shape: bf16[32,128], index: 2, kind: input, shape index: {}]
  %s3 = inlined_call_operand.vmem [shape: f32[1,32], index: 3, kind: input, shape index: {}]
  %s4 = inlined_call_operand.<no memory space> [shape: f32[1,1], index: 4, kind: input, shape index: {}]
  %s5 = inlined_call_operand.hbm [shape: f32[1,4096], index: 5, kind: output, shape index: {}]
  %s6 = sld [smem:[#allocation0]]
  $region53: #{gmf_forward.1} parent=0
    _
  %s8 = ssub.s32 1, %s6
  %s9 = scalar_select 0, %s8, %s6
  %10 = sst [smem:[#allocation2]] %s4
  $region1: #{gmf_forward.1} parent=0
    #allocation3 [shape = 'u8[16384]{0}', space=vmem, size = 0x4000, scoped, tag = 'output window, operand 0']
    #allocation4 [shape = 's32[2]{0}', space=sflag, size = 0x8, scoped, tag = 'scoped memory for gmf_forward.1']
    %11 = vsyncpa [#allocation4], 0
    %s12 = scalar_lea.sflag [#allocation4], 1
    %13 = vsyncpa %s12, 0
    loop: start=0, step=1, limit=4
    $region2: #{gmf_forward.1} parent=1 // loop_pre_header
      _
    $region3: #{gmf_forward.1} parent=1 // loop_header
      %s15 = sphi 0, %s19
      %p16 = scmp.ge.s32.totalorder %s15, 4
      %s25 = sphi 0, %s27
      %s28 = sphi 0, %s25
      %s29 = sphi 0, %s28
      %s45 = sphi 0, %s29
      %s49 = sphi 0, %s49
      %s51 = sphi 0, %s49
      %s52 = sphi 0, %s51
      %s66 = sphi 0, %s52
      %s70 = sphi 0, %s70
      %s72 = sphi 0, %s70
      %s73 = sphi 0, %s72
      %s87 = sphi 0, %s73
      %s91 = sphi 0, %s91
      %s93 = sphi 0, %s91
      %s94 = sphi 0, %s93
      %s108 = sphi 0, %s94
      %s112 = sphi 0, %s112
      %s114 = sphi 0, %s112
      %s115 = sphi 0, %s114
      %s129 = sphi 0, %s115
      %s135 = sphi 0, %s137
      %s138 = sphi 0, %s135
      %s139 = sphi 0, %s138
      %s155 = sphi 0, %s139
    $region4: #{gmf_forward.1} parent=1 // loop_header_branch
      %18 = sbr.rel (%p16) target = $region8
    $region5: #{gmf_forward.1} parent=1 // loop_body
      %s20 = ssub.s32 %s15, 1
      %s21 = ssub.s32 %s15, 2
      %s22 = sadd.s32 %s15, 1
      %s23 = ssub.s32 %s15, %s22
      %p24 = scmp.eq.s32.totalorder %s23, 0
      %s26 = sadd.s32 %s25, 1
      %s27 = scalar_select %p24, %s25, %s26
      %p30 = pneg %p24
      %p31 = scmp.eq.s32.totalorder %s15, 1
      %p32 = por %p30, %p31
      %p33 = scmp.ne.s32.totalorder %s25, %s28
      %p34 = scmp.eq.s32.totalorder %s15, 0
      %p35 = por %p33, %p34
      %p36 = scmp.ne.s32.totalorder %s25, %s28
      %p37 = scmp.eq.s32.totalorder %s20, 1
      %p38 = por %p36, %p37
      %p39 = scmp.ne.s32.totalorder %s28, %s29
      %p40 = scmp.eq.s32.totalorder %s20, 0
      %p41 = por %p39, %p40
      %p42 = scmp.ne.s32.totalorder %s28, %s29
      %p43 = scmp.eq.s32.totalorder %s21, 1
      %p44 = por %p42, %p43
      %p46 = scmp.ne.s32.totalorder %s29, %s45
      %p47 = scmp.eq.s32.totalorder %s21, 0
      %p48 = por %p46, %p47
      %s50 = sadd.s32 %s49, 1
      %p53 = scmp.eq.s32.totalorder %s15, 1
      %p54 = scmp.ne.s32.totalorder %s49, %s51
      %p55 = scmp.eq.s32.totalorder %s15, 0
      %p56 = por %p54, %p55
      %p57 = scmp.ne.s32.totalorder %s49, %s51
      %p58 = scmp.eq.s32.totalorder %s20, 1
      %p59 = por %p57, %p58
      %p60 = scmp.ne.s32.totalorder %s51, %s52
      %p61 = scmp.eq.s32.totalorder %s20, 0
      %p62 = por %p60, %p61
      %p63 = scmp.ne.s32.totalorder %s51, %s52
      %p64 = scmp.eq.s32.totalorder %s21, 1
      %p65 = por %p63, %p64
      %p67 = scmp.ne.s32.totalorder %s52, %s66
      %p68 = scmp.eq.s32.totalorder %s21, 0
      %p69 = por %p67, %p68
      %s71 = sadd.s32 %s70, 1
      %p74 = scmp.eq.s32.totalorder %s15, 1
      %p75 = scmp.ne.s32.totalorder %s70, %s72
      %p76 = scmp.eq.s32.totalorder %s15, 0
      %p77 = por %p75, %p76
      %p78 = scmp.ne.s32.totalorder %s70, %s72
      %p79 = scmp.eq.s32.totalorder %s20, 1
      %p80 = por %p78, %p79
      %p81 = scmp.ne.s32.totalorder %s72, %s73
      %p82 = scmp.eq.s32.totalorder %s20, 0
      %p83 = por %p81, %p82
      %p84 = scmp.ne.s32.totalorder %s72, %s73
      %p85 = scmp.eq.s32.totalorder %s21, 1
      %p86 = por %p84, %p85
      %p88 = scmp.ne.s32.totalorder %s73, %s87
      %p89 = scmp.eq.s32.totalorder %s21, 0
      %p90 = por %p88, %p89
      %s92 = sadd.s32 %s91, 1
      %p95 = scmp.eq.s32.totalorder %s15, 1
      %p96 = scmp.ne.s32.totalorder %s91, %s93
      %p97 = scmp.eq.s32.totalorder %s15, 0
      %p98 = por %p96, %p97
      %p99 = scmp.ne.s32.totalorder %s91, %s93
      %p100 = scmp.eq.s32.totalorder %s20, 1
      %p101 = por %p99, %p100
      %p102 = scmp.ne.s32.totalorder %s93, %s94
      %p103 = scmp.eq.s32.totalorder %s20, 0
      %p104 = por %p102, %p103
      %p105 = scmp.ne.s32.totalorder %s93, %s94
      %p106 = scmp.eq.s32.totalorder %s21, 1
      %p107 = por %p105, %p106
      %p109 = scmp.ne.s32.totalorder %s94, %s108
      %p110 = scmp.eq.s32.totalorder %s21, 0
      %p111 = por %p109, %p110
      %s113 = sadd.s32 %s112, 1
      %p116 = scmp.eq.s32.totalorder %s15, 1
      %p117 = scmp.ne.s32.totalorder %s112, %s114
      %p118 = scmp.eq.s32.totalorder %s15, 0
      %p119 = por %p117, %p118
      %p120 = scmp.ne.s32.totalorder %s112, %s114
      %p121 = scmp.eq.s32.totalorder %s20, 1
      %p122 = por %p120, %p121
      %p123 = scmp.ne.s32.totalorder %s114, %s115
      %p124 = scmp.eq.s32.totalorder %s20, 0
      %p125 = por %p123, %p124
      %p126 = scmp.ne.s32.totalorder %s114, %s115
      %p127 = scmp.eq.s32.totalorder %s21, 1
      %p128 = por %p126, %p127
      %p130 = scmp.ne.s32.totalorder %s115, %s129
      %p131 = scmp.eq.s32.totalorder %s21, 0
      %p132 = por %p130, %p131
      %s133 = ssub.s32 %s15, %s22
      %p134 = scmp.eq.s32.totalorder %s133, 0
      %s136 = sadd.s32 %s135, 1
      %s137 = scalar_select %p134, %s135, %s136
      %p140 = pneg %p134
      %p141 = scmp.eq.s32.totalorder %s15, 1
      %p142 = por %p140, %p141
      %p143 = scmp.ne.s32.totalorder %s135, %s138
      %p144 = scmp.eq.s32.totalorder %s15, 0
      %p145 = por %p143, %p144
      %p146 = scmp.ne.s32.totalorder %s135, %s138
      %p147 = scmp.eq.s32.totalorder %s20, 1
      %p148 = por %p146, %p147
      %p149 = scmp.ne.s32.totalorder %s138, %s139
      %p150 = scmp.eq.s32.totalorder %s20, 0
      %p151 = por %p149, %p150
      %p152 = scmp.ne.s32.totalorder %s138, %s139
      %p153 = scmp.eq.s32.totalorder %s21, 1
      %p154 = por %p152, %p153
      %p156 = scmp.ne.s32.totalorder %s139, %s155
      %p157 = scmp.eq.s32.totalorder %s21, 0
      %p158 = por %p156, %p157
      %p159 = scmp.le.s32.totalorder 1, %s15
      %p160 = scmp.lt.s32.totalorder %s15, 3
      %p161 = pnand %p159, %p160
      %p162 = pneg %p161
      // Predicated region
      $region9: #{gmf_forward.1} parent=5 // pred_check
        _
      $region10: #{gmf_forward.1} parent=5 // pred_check_branch
        %164 = sbr.rel (%p161) target = $region12
      $region11: #{gmf_forward.1} parent=5 // pred_region
        %s165 = ssub.s32 %s15, 1
        // Predicated region
        $region13: #{gmf_forward.1} parent=11 // pred_check
          %p166 = pneg %p62
        $region14: #{gmf_forward.1} parent=11 // pred_check_branch
          %168 = sbr.rel (%p166) target = $region16
        $region15: #{gmf_forward.1} parent=11 // pred_region
          _
        $region16: #{gmf_forward.1} parent=11 // pred_fallthru
          _
        // Predicated region
        $region17: #{gmf_forward.1} parent=11 // pred_check
          %p169 = pneg %p83
        $region18: #{gmf_forward.1} parent=11 // pred_check_branch
          %171 = sbr.rel (%p169) target = $region20
        $region19: #{gmf_forward.1} parent=11 // pred_region
          _
        $region20: #{gmf_forward.1} parent=11 // pred_fallthru
          _
        // Predicated region
        $region21: #{gmf_forward.1} parent=11 // pred_check
          %p172 = pneg %p104
        $region22: #{gmf_forward.1} parent=11 // pred_check_branch
          %174 = sbr.rel (%p172) target = $region24
        $region23: #{gmf_forward.1} parent=11 // pred_region
          _
        $region24: #{gmf_forward.1} parent=11 // pred_fallthru
          _
        // Predicated region
        $region25: #{gmf_forward.1} parent=11 // pred_check
          %p175 = pneg %p125
        $region26: #{gmf_forward.1} parent=11 // pred_check_branch
          %177 = sbr.rel (%p175) target = $region28
        $region27: #{gmf_forward.1} parent=11 // pred_region
          _
        $region28: #{gmf_forward.1} parent=11 // pred_fallthru
          _
      $region12: #{gmf_forward.1} parent=5 // pred_fallthru
        _
      %p178 = scmp.lt.s32.totalorder %s15, 2
      // Predicated region
      $region29: #{gmf_forward.1} parent=5 // pred_check
        %p179 = pneg %p178
      $region30: #{gmf_forward.1} parent=5 // pred_check_branch
        %181 = sbr.rel (%p179) target = $region32
      $region31: #{gmf_forward.1} parent=5 // pred_region
        // Predicated region
        $region33: #{gmf_forward.1} parent=31 // pred_check
          %p182 = pneg %p35
        $region34: #{gmf_forward.1} parent=31 // pred_check_branch
          %184 = sbr.rel (%p182) target = $region36
        $region35: #{gmf_forward.1} parent=31 // pred_region
          %s185 = smul.u32 16, %s15
          %p186 = scmp.lt.s32.totalorder %s185, 31
          %s187 = scalar_select %p186, %s185, 31
          %s188 = smul.addr %s187, 2
          %s189 = scalar_lea.vmem %s0, %s188
          %s190 = smul.u32 16, %s15
        $region36: #{gmf_forward.1} parent=31 // pred_fallthru
          _
      $region32: #{gmf_forward.1} parent=5 // pred_fallthru
        _
      %p191 = scmp.le.s32.totalorder 1, %s15
      %p192 = scmp.lt.s32.totalorder %s15, 3
      %p193 = pnand %p191, %p192
      %p194 = pneg %p193
      // Predicated region
      $region37: #{gmf_forward.1} parent=5 // pred_check
        _
      $region38: #{gmf_forward.1} parent=5 // pred_check_branch
        %196 = sbr.rel (%p193) target = $region40
      $region39: #{gmf_forward.1} parent=5 // pred_region
        %s197 = ssub.s32 %s15, 1
        %s198 = smul.u32 16, %s20
        %p199 = scmp.lt.s32.totalorder %s198, 31
        %s200 = scalar_select %p199, %s198, 31
        %s201 = smul.addr %s200, 2
        %s202 = scalar_lea.vmem %s0, %s201
        %p203 = pneg %p41
        %p204 = pneg %p38
        %p205 = pneg %p62
        %p206 = pneg %p59
        %p207 = pneg %p83
        %p208 = pneg %p80
        %p209 = pneg %p104
        %p210 = pneg %p101
        %p211 = pneg %p125
        %p212 = pneg %p122
        %p213 = pneg %p151
        %p214 = pneg %p148
        %s215 = sand.u32 %s138, 1
        %s216 = scalar_lea.sflag [#allocation4], %s215
        %s217 = sand.u32 %s138, 1
        %s218 = smul.addr %s217, 16
        %s219 = scalar_lea.vmem [#allocation3], %s218
        %s220 = smul.u32 16, %s20
        %p221 = scmp.lt.s32.totalorder %s220, 31
        %s222 = scalar_select %p221, %s220, 31
        %s223 = smul.addr %s222, 2
        %s224 = scalar_lea.vmem %s0, %s223
        %s225 = smul.u32 16, %s20
        %s226 = smul.u32 16, %s20
        %v227 = vld [vmem:[%s224] sm:$0xff]
        %v228 = vld [vmem:[%s224 + $0x8] sm:$0xff]
        %v229 = vld [vmem:[%s224 + $0x10] sm:$0xff]
        %v230 = vld [vmem:[%s224 + $0x18] sm:$0xff]
        %v231 = vlaneseq
        %v232 = vshrl.u32 %v231, 7
        %v233 = vadd.s32 %v232, 8
        %v234 = vadd.s32 %v232, 16
        %v235 = vadd.s32 %v232, 24
        %v236 = vadd.s32 %v232, 32
        %v237 = vadd.s32 %v232, 40
        %v238 = vadd.s32 %v232, 48
        %v239 = vadd.s32 %v232, 56
        %v240 = vadd.s32 %v232, 64
        %v241 = vadd.s32 %v232, 72
        %v242 = vadd.s32 %v232, 80
        %v243 = vadd.s32 %v232, 88
        %v244 = vadd.s32 %v232, 96
        %v245 = vadd.s32 %v232, 104
        %v246 = vadd.s32 %v232, 112
        %v247 = vadd.s32 %v232, 120
        %v248 = vperm.slane %v227, 0
        %v249 = vperm.slane %v227, 2
        %v250 = vperm.slane %v227, 4
        %v251 = vperm.slane %v227, 6
        %v252 = vperm.slane %v228, 0
        %v253 = vperm.slane %v228, 2
        %v254 = vperm.slane %v228, 4
        %v255 = vperm.slane %v228, 6
        %v256 = vperm.slane %v229, 0
        %v257 = vperm.slane %v229, 2
        %v258 = vperm.slane %v229, 4
        %v259 = vperm.slane %v229, 6
        %v260 = vperm.slane %v230, 0
        %v261 = vperm.slane %v230, 2
        %v262 = vperm.slane %v230, 4
        %v263 = vperm.slane %v230, 6
        %v264 = vperm.slane %v248, 0
        %v265 = vperm.slane %v249, 0
        %v266 = vperm.slane %v250, 0
        %v267 = vperm.slane %v251, 0
        %v268 = vperm.slane %v252, 0
        %v269 = vperm.slane %v253, 0
        %v270 = vperm.slane %v254, 0
        %v271 = vperm.slane %v255, 0
        %v272 = vperm.slane %v256, 0
        %v273 = vperm.slane %v257, 0
        %v274 = vperm.slane %v258, 0
        %v275 = vperm.slane %v259, 0
        %v276 = vperm.slane %v260, 0
        %v277 = vperm.slane %v261, 0
        %v278 = vperm.slane %v262, 0
        %v279 = vperm.slane %v263, 0
        %vm280 = vcmp.eq.s32.totalorder %v232, %v264
        %vm281 = vcmp.eq.s32.totalorder %v232, %v265
        %vm282 = vcmp.eq.s32.totalorder %v232, %v266
        %vm283 = vcmp.eq.s32.totalorder %v232, %v267
        %vm284 = vcmp.eq.s32.totalorder %v232, %v268
        %vm285 = vcmp.eq.s32.totalorder %v232, %v269
        %vm286 = vcmp.eq.s32.totalorder %v232, %v270
        %vm287 = vcmp.eq.s32.totalorder %v232, %v271
        %vm288 = vcmp.eq.s32.totalorder %v232, %v272
        %vm289 = vcmp.eq.s32.totalorder %v232, %v273
        %vm290 = vcmp.eq.s32.totalorder %v232, %v274
        %vm291 = vcmp.eq.s32.totalorder %v232, %v275
        %vm292 = vcmp.eq.s32.totalorder %v232, %v276
        %vm293 = vcmp.eq.s32.totalorder %v232, %v277
        %vm294 = vcmp.eq.s32.totalorder %v232, %v278
        %vm295 = vcmp.eq.s32.totalorder %v232, %v279
        %vm296 = vcmp.eq.s32.totalorder %v233, %v264
        %vm297 = vcmp.eq.s32.totalorder %v233, %v265
        %vm298 = vcmp.eq.s32.totalorder %v233, %v266
        %vm299 = vcmp.eq.s32.totalorder %v233, %v267
        %vm300 = vcmp.eq.s32.totalorder %v233, %v268
        %vm301 = vcmp.eq.s32.totalorder %v233, %v269
        %vm302 = vcmp.eq.s32.totalorder %v233, %v270
        %vm303 = vcmp.eq.s32.totalorder %v233, %v271
        %vm304 = vcmp.eq.s32.totalorder %v233, %v272
        %vm305 = vcmp.eq.s32.totalorder %v233, %v273
        %vm306 = vcmp.eq.s32.totalorder %v233, %v274
        %vm307 = vcmp.eq.s32.totalorder %v233, %v275
        %vm308 = vcmp.eq.s32.totalorder %v233, %v276
        %vm309 = vcmp.eq.s32.totalorder %v233, %v277
        %vm310 = vcmp.eq.s32.totalorder %v233, %v278
        %vm311 = vcmp.eq.s32.totalorder %v233, %v279
        %vm312 = vcmp.eq.s32.totalorder %v234, %v264
        %vm313 = vcmp.eq.s32.totalorder %v234, %v265
        %vm314 = vcmp.eq.s32.totalorder %v234, %v266
        %vm315 = vcmp.eq.s32.totalorder %v234, %v267
        %vm316 = vcmp.eq.s32.totalorder %v234, %v268
        %vm317 = vcmp.eq.s32.totalorder %v234, %v269
        %vm318 = vcmp.eq.s32.totalorder %v234, %v270
        %vm319 = vcmp.eq.s32.totalorder %v234, %v271
        %vm320 = vcmp.eq.s32.totalorder %v234, %v272
        %vm321 = vcmp.eq.s32.totalorder %v234, %v273
        %vm322 = vcmp.eq.s32.totalorder %v234, %v274
        %vm323 = vcmp.eq.s32.totalorder %v234, %v275
        %vm324 = vcmp.eq.s32.totalorder %v234, %v276
        %vm325 = vcmp.eq.s32.totalorder %v234, %v277
        %vm326 = vcmp.eq.s32.totalorder %v234, %v278
        %vm327 = vcmp.eq.s32.totalorder %v234, %v279
        %vm328 = vcmp.eq.s32.totalorder %v235, %v264
        %vm329 = vcmp.eq.s32.totalorder %v235, %v265
        %vm330 = vcmp.eq.s32.totalorder %v235, %v266
        %vm331 = vcmp.eq.s32.totalorder %v235, %v267
        %vm332 = vcmp.eq.s32.totalorder %v235, %v268
        %vm333 = vcmp.eq.s32.totalorder %v235, %v269
        %vm334 = vcmp.eq.s32.totalorder %v235, %v270
        %vm335 = vcmp.eq.s32.totalorder %v235, %v271
        %vm336 = vcmp.eq.s32.totalorder %v235, %v272
        %vm337 = vcmp.eq.s32.totalorder %v235, %v273
        %vm338 = vcmp.eq.s32.totalorder %v235, %v274
        %vm339 = vcmp.eq.s32.totalorder %v235, %v275
        %vm340 = vcmp.eq.s32.totalorder %v235, %v276
        %vm341 = vcmp.eq.s32.totalorder %v235, %v277
        %vm342 = vcmp.eq.s32.totalorder %v235, %v278
        %vm343 = vcmp.eq.s32.totalorder %v235, %v279
        %vm344 = vcmp.eq.s32.totalorder %v236, %v264
        %vm345 = vcmp.eq.s32.totalorder %v236, %v265
        %vm346 = vcmp.eq.s32.totalorder %v236, %v266
        %vm347 = vcmp.eq.s32.totalorder %v236, %v267
        %vm348 = vcmp.eq.s32.totalorder %v236, %v268
        %vm349 = vcmp.eq.s32.totalorder %v236, %v269
        %vm350 = vcmp.eq.s32.totalorder %v236, %v270
        %vm351 = vcmp.eq.s32.totalorder %v236, %v271
        %vm352 = vcmp.eq.s32.totalorder %v236, %v272
        %vm353 = vcmp.eq.s32.totalorder %v236, %v273
        %vm354 = vcmp.eq.s32.totalorder %v236, %v274
        %vm355 = vcmp.eq.s32.totalorder %v236, %v275
        %vm356 = vcmp.eq.s32.totalorder %v236, %v276
        %vm357 = vcmp.eq.s32.totalorder %v236, %v277
        %vm358 = vcmp.eq.s32.totalorder %v236, %v278
        %vm359 = vcmp.eq.s32.totalorder %v236, %v279
        %vm360 = vcmp.eq.s32.totalorder %v237, %v264
        %vm361 = vcmp.eq.s32.totalorder %v237, %v265
        %vm362 = vcmp.eq.s32.totalorder %v237, %v266
        %vm363 = vcmp.eq.s32.totalorder %v237, %v267
        %vm364 = vcmp.eq.s32.totalorder %v237, %v268
        %vm365 = vcmp.eq.s32.totalorder %v237, %v269
        %vm366 = vcmp.eq.s32.totalorder %v237, %v270
        %vm367 = vcmp.eq.s32.totalorder %v237, %v271
        %vm368 = vcmp.eq.s32.totalorder %v237, %v272
        %vm369 = vcmp.eq.s32.totalorder %v237, %v273
        %vm370 = vcmp.eq.s32.totalorder %v237, %v274
        %vm371 = vcmp.eq.s32.totalorder %v237, %v275
        %vm372 = vcmp.eq.s32.totalorder %v237, %v276
        %vm373 = vcmp.eq.s32.totalorder %v237, %v277
        %vm374 = vcmp.eq.s32.totalorder %v237, %v278
        %vm375 = vcmp.eq.s32.totalorder %v237, %v279
        %vm376 = vcmp.eq.s32.totalorder %v238, %v264
        %vm377 = vcmp.eq.s32.totalorder %v238, %v265
        %vm378 = vcmp.eq.s32.totalorder %v238, %v266
        %vm379 = vcmp.eq.s32.totalorder %v238, %v267
        %vm380 = vcmp.eq.s32.totalorder %v238, %v268
        %vm381 = vcmp.eq.s32.totalorder %v238, %v269
        %vm382 = vcmp.eq.s32.totalorder %v238, %v270
        %vm383 = vcmp.eq.s32.totalorder %v238, %v271
        %vm384 = vcmp.eq.s32.totalorder %v238, %v272
        %vm385 = vcmp.eq.s32.totalorder %v238, %v273
        %vm386 = vcmp.eq.s32.totalorder %v238, %v274
        %vm387 = vcmp.eq.s32.totalorder %v238, %v275
        %vm388 = vcmp.eq.s32.totalorder %v238, %v276
        %vm389 = vcmp.eq.s32.totalorder %v238, %v277
        %vm390 = vcmp.eq.s32.totalorder %v238, %v278
        %vm391 = vcmp.eq.s32.totalorder %v238, %v279
        %vm392 = vcmp.eq.s32.totalorder %v239, %v264
        %vm393 = vcmp.eq.s32.totalorder %v239, %v265
        %vm394 = vcmp.eq.s32.totalorder %v239, %v266
        %vm395 = vcmp.eq.s32.totalorder %v239, %v267
        %vm396 = vcmp.eq.s32.totalorder %v239, %v268
        %vm397 = vcmp.eq.s32.totalorder %v239, %v269
        %vm398 = vcmp.eq.s32.totalorder %v239, %v270
        %vm399 = vcmp.eq.s32.totalorder %v239, %v271
        %vm400 = vcmp.eq.s32.totalorder %v239, %v272
        %vm401 = vcmp.eq.s32.totalorder %v239, %v273
        %vm402 = vcmp.eq.s32.totalorder %v239, %v274
        %vm403 = vcmp.eq.s32.totalorder %v239, %v275
        %vm404 = vcmp.eq.s32.totalorder %v239, %v276
        %vm405 = vcmp.eq.s32.totalorder %v239, %v277
        %vm406 = vcmp.eq.s32.totalorder %v239, %v278
        %vm407 = vcmp.eq.s32.totalorder %v239, %v279
        %vm408 = vcmp.eq.s32.totalorder %v240, %v264
        %vm409 = vcmp.eq.s32.totalorder %v240, %v265
        %vm410 = vcmp.eq.s32.totalorder %v240, %v266
        %vm411 = vcmp.eq.s32.totalorder %v240, %v267
        %vm412 = vcmp.eq.s32.totalorder %v240, %v268
        %vm413 = vcmp.eq.s32.totalorder %v240, %v269
        %vm414 = vcmp.eq.s32.totalorder %v240, %v270
        %vm415 = vcmp.eq.s32.totalorder %v240, %v271
        %vm416 = vcmp.eq.s32.totalorder %v240, %v272
        %vm417 = vcmp.eq.s32.totalorder %v240, %v273
        %vm418 = vcmp.eq.s32.totalorder %v240, %v274
        %vm419 = vcmp.eq.s32.totalorder %v240, %v275
        %vm420 = vcmp.eq.s32.totalorder %v240, %v276
        %vm421 = vcmp.eq.s32.totalorder %v240, %v277
        %vm422 = vcmp.eq.s32.totalorder %v240, %v278
        %vm423 = vcmp.eq.s32.totalorder %v240, %v279
        %vm424 = vcmp.eq.s32.totalorder %v241, %v264
        %vm425 = vcmp.eq.s32.totalorder %v241, %v265
        %vm426 = vcmp.eq.s32.totalorder %v241, %v266
        %vm427 = vcmp.eq.s32.totalorder %v241, %v267
        %vm428 = vcmp.eq.s32.totalorder %v241, %v268
        %vm429 = vcmp.eq.s32.totalorder %v241, %v269
        %vm430 = vcmp.eq.s32.totalorder %v241, %v270
        %vm431 = vcmp.eq.s32.totalorder %v241, %v271
        %vm432 = vcmp.eq.s32.totalorder %v241, %v272
        %vm433 = vcmp.eq.s32.totalorder %v241, %v273
        %vm434 = vcmp.eq.s32.totalorder %v241, %v274
        %vm435 = vcmp.eq.s32.totalorder %v241, %v275
        %vm436 = vcmp.eq.s32.totalorder %v241, %v276
        %vm437 = vcmp.eq.s32.totalorder %v241, %v277
        %vm438 = vcmp.eq.s32.totalorder %v241, %v278
        %vm439 = vcmp.eq.s32.totalorder %v241, %v279
        %vm440 = vcmp.eq.s32.totalorder %v242, %v264
        %vm441 = vcmp.eq.s32.totalorder %v242, %v265
        %vm442 = vcmp.eq.s32.totalorder %v242, %v266
        %vm443 = vcmp.eq.s32.totalorder %v242, %v267
        %vm444 = vcmp.eq.s32.totalorder %v242, %v268
        %vm445 = vcmp.eq.s32.totalorder %v242, %v269
        %vm446 = vcmp.eq.s32.totalorder %v242, %v270
        %vm447 = vcmp.eq.s32.totalorder %v242, %v271
        %vm448 = vcmp.eq.s32.totalorder %v242, %v272
        %vm449 = vcmp.eq.s32.totalorder %v242, %v273
        %vm450 = vcmp.eq.s32.totalorder %v242, %v274
        %vm451 = vcmp.eq.s32.totalorder %v242, %v275
        %vm452 = vcmp.eq.s32.totalorder %v242, %v276
        %vm453 = vcmp.eq.s32.totalorder %v242, %v277
        %vm454 = vcmp.eq.s32.totalorder %v242, %v278
        %vm455 = vcmp.eq.s32.totalorder %v242, %v279
        %vm456 = vcmp.eq.s32.totalorder %v243, %v264
        %vm457 = vcmp.eq.s32.totalorder %v243, %v265
        %vm458 = vcmp.eq.s32.totalorder %v243, %v266
        %vm459 = vcmp.eq.s32.totalorder %v243, %v267
        %vm460 = vcmp.eq.s32.totalorder %v243, %v268
        %vm461 = vcmp.eq.s32.totalorder %v243, %v269
        %vm462 = vcmp.eq.s32.totalorder %v243, %v270
        %vm463 = vcmp.eq.s32.totalorder %v243, %v271
        %vm464 = vcmp.eq.s32.totalorder %v243, %v272
        %vm465 = vcmp.eq.s32.totalorder %v243, %v273
        %vm466 = vcmp.eq.s32.totalorder %v243, %v274
        %vm467 = vcmp.eq.s32.totalorder %v243, %v275
        %vm468 = vcmp.eq.s32.totalorder %v243, %v276
        %vm469 = vcmp.eq.s32.totalorder %v243, %v277
        %vm470 = vcmp.eq.s32.totalorder %v243, %v278
        %vm471 = vcmp.eq.s32.totalorder %v243, %v279
        %vm472 = vcmp.eq.s32.totalorder %v244, %v264
        %vm473 = vcmp.eq.s32.totalorder %v244, %v265
        %vm474 = vcmp.eq.s32.totalorder %v244, %v266
        %vm475 = vcmp.eq.s32.totalorder %v244, %v267
        %vm476 = vcmp.eq.s32.totalorder %v244, %v268
        %vm477 = vcmp.eq.s32.totalorder %v244, %v269
        %vm478 = vcmp.eq.s32.totalorder %v244, %v270
        %vm479 = vcmp.eq.s32.totalorder %v244, %v271
        %vm480 = vcmp.eq.s32.totalorder %v244, %v272
        %vm481 = vcmp.eq.s32.totalorder %v244, %v273
        %vm482 = vcmp.eq.s32.totalorder %v244, %v274
        %vm483 = vcmp.eq.s32.totalorder %v244, %v275
        %vm484 = vcmp.eq.s32.totalorder %v244, %v276
        %vm485 = vcmp.eq.s32.totalorder %v244, %v277
        %vm486 = vcmp.eq.s32.totalorder %v244, %v278
        %vm487 = vcmp.eq.s32.totalorder %v244, %v279
        %vm488 = vcmp.eq.s32.totalorder %v245, %v264
        %vm489 = vcmp.eq.s32.totalorder %v245, %v265
        %vm490 = vcmp.eq.s32.totalorder %v245, %v266
        %vm491 = vcmp.eq.s32.totalorder %v245, %v267
        %vm492 = vcmp.eq.s32.totalorder %v245, %v268
        %vm493 = vcmp.eq.s32.totalorder %v245, %v269
        %vm494 = vcmp.eq.s32.totalorder %v245, %v270
        %vm495 = vcmp.eq.s32.totalorder %v245, %v271
        %vm496 = vcmp.eq.s32.totalorder %v245, %v272
        %vm497 = vcmp.eq.s32.totalorder %v245, %v273
        %vm498 = vcmp.eq.s32.totalorder %v245, %v274
        %vm499 = vcmp.eq.s32.totalorder %v245, %v275
        %vm500 = vcmp.eq.s32.totalorder %v245, %v276
        %vm501 = vcmp.eq.s32.totalorder %v245, %v277
        %vm502 = vcmp.eq.s32.totalorder %v245, %v278
        %vm503 = vcmp.eq.s32.totalorder %v245, %v279
        %vm504 = vcmp.eq.s32.totalorder %v246, %v264
        %vm505 = vcmp.eq.s32.totalorder %v246, %v265
        %vm506 = vcmp.eq.s32.totalorder %v246, %v266
        %vm507 = vcmp.eq.s32.totalorder %v246, %v267
        %vm508 = vcmp.eq.s32.totalorder %v246, %v268
        %vm509 = vcmp.eq.s32.totalorder %v246, %v269
        %vm510 = vcmp.eq.s32.totalorder %v246, %v270
        %vm511 = vcmp.eq.s32.totalorder %v246, %v271
        %vm512 = vcmp.eq.s32.totalorder %v246, %v272
        %vm513 = vcmp.eq.s32.totalorder %v246, %v273
        %vm514 = vcmp.eq.s32.totalorder %v246, %v274
        %vm515 = vcmp.eq.s32.totalorder %v246, %v275
        %vm516 = vcmp.eq.s32.totalorder %v246, %v276
        %vm517 = vcmp.eq.s32.totalorder %v246, %v277
        %vm518 = vcmp.eq.s32.totalorder %v246, %v278
        %vm519 = vcmp.eq.s32.totalorder %v246, %v279
        %vm520 = vcmp.eq.s32.totalorder %v247, %v264
        %vm521 = vcmp.eq.s32.totalorder %v247, %v265
        %vm522 = vcmp.eq.s32.totalorder %v247, %v266
        %vm523 = vcmp.eq.s32.totalorder %v247, %v267
        %vm524 = vcmp.eq.s32.totalorder %v247, %v268
        %vm525 = vcmp.eq.s32.totalorder %v247, %v269
        %vm526 = vcmp.eq.s32.totalorder %v247, %v270
        %vm527 = vcmp.eq.s32.totalorder %v247, %v271
        %vm528 = vcmp.eq.s32.totalorder %v247, %v272
        %vm529 = vcmp.eq.s32.totalorder %v247, %v273
        %vm530 = vcmp.eq.s32.totalorder %v247, %v274
        %vm531 = vcmp.eq.s32.totalorder %v247, %v275
        %vm532 = vcmp.eq.s32.totalorder %v247, %v276
        %vm533 = vcmp.eq.s32.totalorder %v247, %v277
        %vm534 = vcmp.eq.s32.totalorder %v247, %v278
        %vm535 = vcmp.eq.s32.totalorder %v247, %v279
        %v536 = vsel %vm280, 1, 0
        %v537 = vsel %vm281, 1, 0
        %v538 = vsel %vm282, 1, 0
        %v539 = vsel %vm283, 1, 0
        %v540 = vsel %vm284, 1, 0
        %v541 = vsel %vm285, 1, 0
        %v542 = vsel %vm286, 1, 0
        %v543 = vsel %vm287, 1, 0
        %v544 = vsel %vm288, 1, 0
        %v545 = vsel %vm289, 1, 0
        %v546 = vsel %vm290, 1, 0
        %v547 = vsel %vm291, 1, 0
        %v548 = vsel %vm292, 1, 0
        %v549 = vsel %vm293, 1, 0
        %v550 = vsel %vm294, 1, 0
        %v551 = vsel %vm295, 1, 0
        %v552 = vsel %vm296, 1, 0
        %v553 = vsel %vm297, 1, 0
        %v554 = vsel %vm298, 1, 0
        %v555 = vsel %vm299, 1, 0
        %v556 = vsel %vm300, 1, 0
        %v557 = vsel %vm301, 1, 0
        %v558 = vsel %vm302, 1, 0
        %v559 = vsel %vm303, 1, 0
        %v560 = vsel %vm304, 1, 0
        %v561 = vsel %vm305, 1, 0
        %v562 = vsel %vm306, 1, 0
        %v563 = vsel %vm307, 1, 0
        %v564 = vsel %vm308, 1, 0
        %v565 = vsel %vm309, 1, 0
        %v566 = vsel %vm310, 1, 0
        %v567 = vsel %vm311, 1, 0
        %v568 = vsel %vm312, 1, 0
        %v569 = vsel %vm313, 1, 0
        %v570 = vsel %vm314, 1, 0
        %v571 = vsel %vm315, 1, 0
        %v572 = vsel %vm316, 1, 0
        %v573 = vsel %vm317, 1, 0
        %v574 = vsel %vm318, 1, 0
        %v575 = vsel %vm319, 1, 0
        %v576 = vsel %vm320, 1, 0
        %v577 = vsel %vm321, 1, 0
        %v578 = vsel %vm322, 1, 0
        %v579 = vsel %vm323, 1, 0
        %v580 = vsel %vm324, 1, 0
        %v581 = vsel %vm325, 1, 0
        %v582 = vsel %vm326, 1, 0
        %v583 = vsel %vm327, 1, 0
        %v584 = vsel %vm328, 1, 0
        %v585 = vsel %vm329, 1, 0
        %v586 = vsel %vm330, 1, 0
        %v587 = vsel %vm331, 1, 0
        %v588 = vsel %vm332, 1, 0
        %v589 = vsel %vm333, 1, 0
        %v590 = vsel %vm334, 1, 0
        %v591 = vsel %vm335, 1, 0
        %v592 = vsel %vm336, 1, 0
        %v593 = vsel %vm337, 1, 0
        %v594 = vsel %vm338, 1, 0
        %v595 = vsel %vm339, 1, 0
        %v596 = vsel %vm340, 1, 0
        %v597 = vsel %vm341, 1, 0
        %v598 = vsel %vm342, 1, 0
        %v599 = vsel %vm343, 1, 0
        %v600 = vsel %vm344, 1, 0
        %v601 = vsel %vm345, 1, 0
        %v602 = vsel %vm346, 1, 0
        %v603 = vsel %vm347, 1, 0
        %v604 = vsel %vm348, 1, 0
        %v605 = vsel %vm349, 1, 0
        %v606 = vsel %vm350, 1, 0
        %v607 = vsel %vm351, 1, 0
        %v608 = vsel %vm352, 1, 0
        %v609 = vsel %vm353, 1, 0
        %v610 = vsel %vm354, 1, 0
        %v611 = vsel %vm355, 1, 0
        %v612 = vsel %vm356, 1, 0
        %v613 = vsel %vm357, 1, 0
        %v614 = vsel %vm358, 1, 0
        %v615 = vsel %vm359, 1, 0
        %v616 = vsel %vm360, 1, 0
        %v617 = vsel %vm361, 1, 0
        %v618 = vsel %vm362, 1, 0
        %v619 = vsel %vm363, 1, 0
        %v620 = vsel %vm364, 1, 0
        %v621 = vsel %vm365, 1, 0
        %v622 = vsel %vm366, 1, 0
        %v623 = vsel %vm367, 1, 0
        %v624 = vsel %vm368, 1, 0
        %v625 = vsel %vm369, 1, 0
        %v626 = vsel %vm370, 1, 0
        %v627 = vsel %vm371, 1, 0
        %v628 = vsel %vm372, 1, 0
        %v629 = vsel %vm373, 1, 0
        %v630 = vsel %vm374, 1, 0
        %v631 = vsel %vm375, 1, 0
        %v632 = vsel %vm376, 1, 0
        %v633 = vsel %vm377, 1, 0
        %v634 = vsel %vm378, 1, 0
        %v635 = vsel %vm379, 1, 0
        %v636 = vsel %vm380, 1, 0
        %v637 = vsel %vm381, 1, 0
        %v638 = vsel %vm382, 1, 0
        %v639 = vsel %vm383, 1, 0
        %v640 = vsel %vm384, 1, 0
        %v641 = vsel %vm385, 1, 0
        %v642 = vsel %vm386, 1, 0
        %v643 = vsel %vm387, 1, 0
        %v644 = vsel %vm388, 1, 0
        %v645 = vsel %vm389, 1, 0
        %v646 = vsel %vm390, 1, 0
        %v647 = vsel %vm391, 1, 0
        %v648 = vsel %vm392, 1, 0
        %v649 = vsel %vm393, 1, 0
        %v650 = vsel %vm394, 1, 0
        %v651 = vsel %vm395, 1, 0
        %v652 = vsel %vm396, 1, 0
        %v653 = vsel %vm397, 1, 0
        %v654 = vsel %vm398, 1, 0
        %v655 = vsel %vm399, 1, 0
        %v656 = vsel %vm400, 1, 0
        %v657 = vsel %vm401, 1, 0
        %v658 = vsel %vm402, 1, 0
        %v659 = vsel %vm403, 1, 0
        %v660 = vsel %vm404, 1, 0
        %v661 = vsel %vm405, 1, 0
        %v662 = vsel %vm406, 1, 0
        %v663 = vsel %vm407, 1, 0
        %v664 = vsel %vm408, 1, 0
        %v665 = vsel %vm409, 1, 0
        %v666 = vsel %vm410, 1, 0
        %v667 = vsel %vm411, 1, 0
        %v668 = vsel %vm412, 1, 0
        %v669 = vsel %vm413, 1, 0
        %v670 = vsel %vm414, 1, 0
        %v671 = vsel %vm415, 1, 0
        %v672 = vsel %vm416, 1, 0
        %v673 = vsel %vm417, 1, 0
        %v674 = vsel %vm418, 1, 0
        %v675 = vsel %vm419, 1, 0
        %v676 = vsel %vm420, 1, 0
        %v677 = vsel %vm421, 1, 0
        %v678 = vsel %vm422, 1, 0
        %v679 = vsel %vm423, 1, 0
        %v680 = vsel %vm424, 1, 0
        %v681 = vsel %vm425, 1, 0
        %v682 = vsel %vm426, 1, 0
        %v683 = vsel %vm427, 1, 0
        %v684 = vsel %vm428, 1, 0
        %v685 = vsel %vm429, 1, 0
        %v686 = vsel %vm430, 1, 0
        %v687 = vsel %vm431, 1, 0
        %v688 = vsel %vm432, 1, 0
        %v689 = vsel %vm433, 1, 0
        %v690 = vsel %vm434, 1, 0
        %v691 = vsel %vm435, 1, 0
        %v692 = vsel %vm436, 1, 0
        %v693 = vsel %vm437, 1, 0
        %v694 = vsel %vm438, 1, 0
        %v695 = vsel %vm439, 1, 0
        %v696 = vsel %vm440, 1, 0
        %v697 = vsel %vm441, 1, 0
        %v698 = vsel %vm442, 1, 0
        %v699 = vsel %vm443, 1, 0
        %v700 = vsel %vm444, 1, 0
        %v701 = vsel %vm445, 1, 0
        %v702 = vsel %vm446, 1, 0
        %v703 = vsel %vm447, 1, 0
        %v704 = vsel %vm448, 1, 0
        %v705 = vsel %vm449, 1, 0
        %v706 = vsel %vm450, 1, 0
        %v707 = vsel %vm451, 1, 0
        %v708 = vsel %vm452, 1, 0
        %v709 = vsel %vm453, 1, 0
        %v710 = vsel %vm454, 1, 0
        %v711 = vsel %vm455, 1, 0
        %v712 = vsel %vm456, 1, 0
        %v713 = vsel %vm457, 1, 0
        %v714 = vsel %vm458, 1, 0
        %v715 = vsel %vm459, 1, 0
        %v716 = vsel %vm460, 1, 0
        %v717 = vsel %vm461, 1, 0
        %v718 = vsel %vm462, 1, 0
        %v719 = vsel %vm463, 1, 0
        %v720 = vsel %vm464, 1, 0
        %v721 = vsel %vm465, 1, 0
        %v722 = vsel %vm466, 1, 0
        %v723 = vsel %vm467, 1, 0
        %v724 = vsel %vm468, 1, 0
        %v725 = vsel %vm469, 1, 0
        %v726 = vsel %vm470, 1, 0
        %v727 = vsel %vm471, 1, 0
        %v728 = vsel %vm472, 1, 0
        %v729 = vsel %vm473, 1, 0
        %v730 = vsel %vm474, 1, 0
        %v731 = vsel %vm475, 1, 0
        %v732 = vsel %vm476, 1, 0
        %v733 = vsel %vm477, 1, 0
        %v734 = vsel %vm478, 1, 0
        %v735 = vsel %vm479, 1, 0
        %v736 = vsel %vm480, 1, 0
        %v737 = vsel %vm481, 1, 0
        %v738 = vsel %vm482, 1, 0
        %v739 = vsel %vm483, 1, 0
        %v740 = vsel %vm484, 1, 0
        %v741 = vsel %vm485, 1, 0
        %v742 = vsel %vm486, 1, 0
        %v743 = vsel %vm487, 1, 0
        %v744 = vsel %vm488, 1, 0
        %v745 = vsel %vm489, 1, 0
        %v746 = vsel %vm490, 1, 0
        %v747 = vsel %vm491, 1, 0
        %v748 = vsel %vm492, 1, 0
        %v749 = vsel %vm493, 1, 0
        %v750 = vsel %vm494, 1, 0
        %v751 = vsel %vm495, 1, 0
        %v752 = vsel %vm496, 1, 0
        %v753 = vsel %vm497, 1, 0
        %v754 = vsel %vm498, 1, 0
        %v755 = vsel %vm499, 1, 0
        %v756 = vsel %vm500, 1, 0
        %v757 = vsel %vm501, 1, 0
        %v758 = vsel %vm502, 1, 0
        %v759 = vsel %vm503, 1, 0
        %v760 = vsel %vm504, 1, 0
        %v761 = vsel %vm505, 1, 0
        %v762 = vsel %vm506, 1, 0
        %v763 = vsel %vm507, 1, 0
        %v764 = vsel %vm508, 1, 0
        %v765 = vsel %vm509, 1, 0
        %v766 = vsel %vm510, 1, 0
        %v767 = vsel %vm511, 1, 0
        %v768 = vsel %vm512, 1, 0
        %v769 = vsel %vm513, 1, 0
        %v770 = vsel %vm514, 1, 0
        %v771 = vsel %vm515, 1, 0
        %v772 = vsel %vm516, 1, 0
        %v773 = vsel %vm517, 1, 0
        %v774 = vsel %vm518, 1, 0
        %v775 = vsel %vm519, 1, 0
        %v776 = vsel %vm520, 1, 0
        %v777 = vsel %vm521, 1, 0
        %v778 = vsel %vm522, 1, 0
        %v779 = vsel %vm523, 1, 0
        %v780 = vsel %vm524, 1, 0
        %v781 = vsel %vm525, 1, 0
        %v782 = vsel %vm526, 1, 0
        %v783 = vsel %vm527, 1, 0
        %v784 = vsel %vm528, 1, 0
        %v785 = vsel %vm529, 1, 0
        %v786 = vsel %vm530, 1, 0
        %v787 = vsel %vm531, 1, 0
        %v788 = vsel %vm532, 1, 0
        %v789 = vsel %vm533, 1, 0
        %v790 = vsel %vm534, 1, 0
        %v791 = vsel %vm535, 1, 0
        %v792 = vcvt.s32.f32 %v536
        %v793 = vcvt.s32.f32 %v537
        %v794 = vcvt.s32.f32 %v538
        %v795 = vcvt.s32.f32 %v539
        %v796 = vcvt.s32.f32 %v540
        %v797 = vcvt.s32.f32 %v541
        %v798 = vcvt.s32.f32 %v542
        %v799 = vcvt.s32.f32 %v543
        %v800 = vcvt.s32.f32 %v544
        %v801 = vcvt.s32.f32 %v545
        %v802 = vcvt.s32.f32 %v546
        %v803 = vcvt.s32.f32 %v547
        %v804 = vcvt.s32.f32 %v548
        %v805 = vcvt.s32.f32 %v549
        %v806 = vcvt.s32.f32 %v550
        %v807 = vcvt.s32.f32 %v551
        %v808 = vcvt.s32.f32 %v552
        %v809 = vcvt.s32.f32 %v553
        %v810 = vcvt.s32.f32 %v554
        %v811 = vcvt.s32.f32 %v555
        %v812 = vcvt.s32.f32 %v556
        %v813 = vcvt.s32.f32 %v557
        %v814 = vcvt.s32.f32 %v558
        %v815 = vcvt.s32.f32 %v559
        %v816 = vcvt.s32.f32 %v560
        %v817 = vcvt.s32.f32 %v561
        %v818 = vcvt.s32.f32 %v562
        %v819 = vcvt.s32.f32 %v563
        %v820 = vcvt.s32.f32 %v564
        %v821 = vcvt.s32.f32 %v565
        %v822 = vcvt.s32.f32 %v566
        %v823 = vcvt.s32.f32 %v567
        %v824 = vcvt.s32.f32 %v568
        %v825 = vcvt.s32.f32 %v569
        %v826 = vcvt.s32.f32 %v570
        %v827 = vcvt.s32.f32 %v571
        %v828 = vcvt.s32.f32 %v572
        %v829 = vcvt.s32.f32 %v573
        %v830 = vcvt.s32.f32 %v574
        %v831 = vcvt.s32.f32 %v575
        %v832 = vcvt.s32.f32 %v576
        %v833 = vcvt.s32.f32 %v577
        %v834 = vcvt.s32.f32 %v578
        %v835 = vcvt.s32.f32 %v579
        %v836 = vcvt.s32.f32 %v580
        %v837 = vcvt.s32.f32 %v581
        %v838 = vcvt.s32.f32 %v582
        %v839 = vcvt.s32.f32 %v583
        %v840 = vcvt.s32.f32 %v584
        %v841 = vcvt.s32.f32 %v585
        %v842 = vcvt.s32.f32 %v586
        %v843 = vcvt.s32.f32 %v587
        %v844 = vcvt.s32.f32 %v588
        %v845 = vcvt.s32.f32 %v589
        %v846 = vcvt.s32.f32 %v590
        %v847 = vcvt.s32.f32 %v591
        %v848 = vcvt.s32.f32 %v592
        %v849 = vcvt.s32.f32 %v593
        %v850 = vcvt.s32.f32 %v594
        %v851 = vcvt.s32.f32 %v595
        %v852 = vcvt.s32.f32 %v596
        %v853 = vcvt.s32.f32 %v597
        %v854 = vcvt.s32.f32 %v598
        %v855 = vcvt.s32.f32 %v599
        %v856 = vcvt.s32.f32 %v600
        %v857 = vcvt.s32.f32 %v601
        %v858 = vcvt.s32.f32 %v602
        %v859 = vcvt.s32.f32 %v603
        %v860 = vcvt.s32.f32 %v604
        %v861 = vcvt.s32.f32 %v605
        %v862 = vcvt.s32.f32 %v606
        %v863 = vcvt.s32.f32 %v607
        %v864 = vcvt.s32.f32 %v608
        %v865 = vcvt.s32.f32 %v609
        %v866 = vcvt.s32.f32 %v610
        %v867 = vcvt.s32.f32 %v611
        %v868 = vcvt.s32.f32 %v612
        %v869 = vcvt.s32.f32 %v613
        %v870 = vcvt.s32.f32 %v614
        %v871 = vcvt.s32.f32 %v615
        %v872 = vcvt.s32.f32 %v616
        %v873 = vcvt.s32.f32 %v617
        %v874 = vcvt.s32.f32 %v618
        %v875 = vcvt.s32.f32 %v619
        %v876 = vcvt.s32.f32 %v620
        %v877 = vcvt.s32.f32 %v621
        %v878 = vcvt.s32.f32 %v622
        %v879 = vcvt.s32.f32 %v623
        %v880 = vcvt.s32.f32 %v624
        %v881 = vcvt.s32.f32 %v625
        %v882 = vcvt.s32.f32 %v626
        %v883 = vcvt.s32.f32 %v627
        %v884 = vcvt.s32.f32 %v628
        %v885 = vcvt.s32.f32 %v629
        %v886 = vcvt.s32.f32 %v630
        %v887 = vcvt.s32.f32 %v631
        %v888 = vcvt.s32.f32 %v632
        %v889 = vcvt.s32.f32 %v633
        %v890 = vcvt.s32.f32 %v634
        %v891 = vcvt.s32.f32 %v635
        %v892 = vcvt.s32.f32 %v636
        %v893 = vcvt.s32.f32 %v637
        %v894 = vcvt.s32.f32 %v638
        %v895 = vcvt.s32.f32 %v639
        %v896 = vcvt.s32.f32 %v640
        %v897 = vcvt.s32.f32 %v641
        %v898 = vcvt.s32.f32 %v642
        %v899 = vcvt.s32.f32 %v643
        %v900 = vcvt.s32.f32 %v644
        %v901 = vcvt.s32.f32 %v645
        %v902 = vcvt.s32.f32 %v646
        %v903 = vcvt.s32.f32 %v647
        %v904 = vcvt.s32.f32 %v648
        %v905 = vcvt.s32.f32 %v649
        %v906 = vcvt.s32.f32 %v650
        %v907 = vcvt.s32.f32 %v651
        %v908 = vcvt.s32.f32 %v652
        %v909 = vcvt.s32.f32 %v653
        %v910 = vcvt.s32.f32 %v654
        %v911 = vcvt.s32.f32 %v655
        %v912 = vcvt.s32.f32 %v656
        %v913 = vcvt.s32.f32 %v657
        %v914 = vcvt.s32.f32 %v658
        %v915 = vcvt.s32.f32 %v659
        %v916 = vcvt.s32.f32 %v660
        %v917 = vcvt.s32.f32 %v661
        %v918 = vcvt.s32.f32 %v662
        %v919 = vcvt.s32.f32 %v663
        %v920 = vcvt.s32.f32 %v664
        %v921 = vcvt.s32.f32 %v665
        %v922 = vcvt.s32.f32 %v666
        %v923 = vcvt.s32.f32 %v667
        %v924 = vcvt.s32.f32 %v668
        %v925 = vcvt.s32.f32 %v669
        %v926 = vcvt.s32.f32 %v670
        %v927 = vcvt.s32.f32 %v671
        %v928 = vcvt.s32.f32 %v672
        %v929 = vcvt.s32.f32 %v673
        %v930 = vcvt.s32.f32 %v674
        %v931 = vcvt.s32.f32 %v675
        %v932 = vcvt.s32.f32 %v676
        %v933 = vcvt.s32.f32 %v677
        %v934 = vcvt.s32.f32 %v678
        %v935 = vcvt.s32.f32 %v679
        %v936 = vcvt.s32.f32 %v680
        %v937 = vcvt.s32.f32 %v681
        %v938 = vcvt.s32.f32 %v682
        %v939 = vcvt.s32.f32 %v683
        %v940 = vcvt.s32.f32 %v684
        %v941 = vcvt.s32.f32 %v685
        %v942 = vcvt.s32.f32 %v686
        %v943 = vcvt.s32.f32 %v687
        %v944 = vcvt.s32.f32 %v688
        %v945 = vcvt.s32.f32 %v689
        %v946 = vcvt.s32.f32 %v690
        %v947 = vcvt.s32.f32 %v691
        %v948 = vcvt.s32.f32 %v692
        %v949 = vcvt.s32.f32 %v693
        %v950 = vcvt.s32.f32 %v694
        %v951 = vcvt.s32.f32 %v695
        %v952 = vcvt.s32.f32 %v696
        %v953 = vcvt.s32.f32 %v697
        %v954 = vcvt.s32.f32 %v698
        %v955 = vcvt.s32.f32 %v699
        %v956 = vcvt.s32.f32 %v700
        %v957 = vcvt.s32.f32 %v701
        %v958 = vcvt.s32.f32 %v702
        %v959 = vcvt.s32.f32 %v703
        %v960 = vcvt.s32.f32 %v704
        %v961 = vcvt.s32.f32 %v705
        %v962 = vcvt.s32.f32 %v706
        %v963 = vcvt.s32.f32 %v707
        %v964 = vcvt.s32.f32 %v708
        %v965 = vcvt.s32.f32 %v709
        %v966 = vcvt.s32.f32 %v710
        %v967 = vcvt.s32.f32 %v711
        %v968 = vcvt.s32.f32 %v712
        %v969 = vcvt.s32.f32 %v713
        %v970 = vcvt.s32.f32 %v714
        %v971 = vcvt.s32.f32 %v715
        %v972 = vcvt.s32.f32 %v716
        %v973 = vcvt.s32.f32 %v717
        %v974 = vcvt.s32.f32 %v718
        %v975 = vcvt.s32.f32 %v719
        %v976 = vcvt.s32.f32 %v720
        %v977 = vcvt.s32.f32 %v721
        %v978 = vcvt.s32.f32 %v722
        %v979 = vcvt.s32.f32 %v723
        %v980 = vcvt.s32.f32 %v724
        %v981 = vcvt.s32.f32 %v725
        %v982 = vcvt.s32.f32 %v726
        %v983 = vcvt.s32.f32 %v727
        %v984 = vcvt.s32.f32 %v728
        %v985 = vcvt.s32.f32 %v729
        %v986 = vcvt.s32.f32 %v730
        %v987 = vcvt.s32.f32 %v731
        %v988 = vcvt.s32.f32 %v732
        %v989 = vcvt.s32.f32 %v733
        %v990 = vcvt.s32.f32 %v734
        %v991 = vcvt.s32.f32 %v735
        %v992 = vcvt.s32.f32 %v736
        %v993 = vcvt.s32.f32 %v737
        %v994 = vcvt.s32.f32 %v738
        %v995 = vcvt.s32.f32 %v739
        %v996 = vcvt.s32.f32 %v740
        %v997 = vcvt.s32.f32 %v741
        %v998 = vcvt.s32.f32 %v742
        %v999 = vcvt.s32.f32 %v743
        %v1000 = vcvt.s32.f32 %v744
        %v1001 = vcvt.s32.f32 %v745
        %v1002 = vcvt.s32.f32 %v746
        %v1003 = vcvt.s32.f32 %v747
        %v1004 = vcvt.s32.f32 %v748
        %v1005 = vcvt.s32.f32 %v749
        %v1006 = vcvt.s32.f32 %v750
        %v1007 = vcvt.s32.f32 %v751
        %v1008 = vcvt.s32.f32 %v752
        %v1009 = vcvt.s32.f32 %v753
        %v1010 = vcvt.s32.f32 %v754
        %v1011 = vcvt.s32.f32 %v755
        %v1012 = vcvt.s32.f32 %v756
        %v1013 = vcvt.s32.f32 %v757
        %v1014 = vcvt.s32.f32 %v758
        %v1015 = vcvt.s32.f32 %v759
        %v1016 = vcvt.s32.f32 %v760
        %v1017 = vcvt.s32.f32 %v761
        %v1018 = vcvt.s32.f32 %v762
        %v1019 = vcvt.s32.f32 %v763
        %v1020 = vcvt.s32.f32 %v764
        %v1021 = vcvt.s32.f32 %v765
        %v1022 = vcvt.s32.f32 %v766
        %v1023 = vcvt.s32.f32 %v767
        %v1024 = vcvt.s32.f32 %v768
        %v1025 = vcvt.s32.f32 %v769
        %v1026 = vcvt.s32.f32 %v770
        %v1027 = vcvt.s32.f32 %v771
        %v1028 = vcvt.s32.f32 %v772
        %v1029 = vcvt.s32.f32 %v773
        %v1030 = vcvt.s32.f32 %v774
        %v1031 = vcvt.s32.f32 %v775
        %v1032 = vcvt.s32.f32 %v776
        %v1033 = vcvt.s32.f32 %v777
        %v1034 = vcvt.s32.f32 %v778
        %v1035 = vcvt.s32.f32 %v779
        %v1036 = vcvt.s32.f32 %v780
        %v1037 = vcvt.s32.f32 %v781
        %v1038 = vcvt.s32.f32 %v782
        %v1039 = vcvt.s32.f32 %v783
        %v1040 = vcvt.s32.f32 %v784
        %v1041 = vcvt.s32.f32 %v785
        %v1042 = vcvt.s32.f32 %v786
        %v1043 = vcvt.s32.f32 %v787
        %v1044 = vcvt.s32.f32 %v788
        %v1045 = vcvt.s32.f32 %v789
        %v1046 = vcvt.s32.f32 %v790
        %v1047 = vcvt.s32.f32 %v791
        %v1048 = vpack.c.bf16 %v808, %v792
        %v1049 = vpack.c.bf16 %v809, %v793
        %v1050 = vpack.c.bf16 %v810, %v794
        %v1051 = vpack.c.bf16 %v811, %v795
        %v1052 = vpack.c.bf16 %v812, %v796
        %v1053 = vpack.c.bf16 %v813, %v797
        %v1054 = vpack.c.bf16 %v814, %v798
        %v1055 = vpack.c.bf16 %v815, %v799
        %v1056 = vpack.c.bf16 %v816, %v800
        %v1057 = vpack.c.bf16 %v817, %v801
        %v1058 = vpack.c.bf16 %v818, %v802
        %v1059 = vpack.c.bf16 %v819, %v803
        %v1060 = vpack.c.bf16 %v820, %v804
        %v1061 = vpack.c.bf16 %v821, %v805
        %v1062 = vpack.c.bf16 %v822, %v806
        %v1063 = vpack.c.bf16 %v823, %v807
        %v1064 = vpack.c.bf16 %v840, %v824
        %v1065 = vpack.c.bf16 %v841, %v825
        %v1066 = vpack.c.bf16 %v842, %v826
        %v1067 = vpack.c.bf16 %v843, %v827
        %v1068 = vpack.c.bf16 %v844, %v828
        %v1069 = vpack.c.bf16 %v845, %v829
        %v1070 = vpack.c.bf16 %v846, %v830
        %v1071 = vpack.c.bf16 %v847, %v831
        %v1072 = vpack.c.bf16 %v848, %v832
        %v1073 = vpack.c.bf16 %v849, %v833
        %v1074 = vpack.c.bf16 %v850, %v834
        %v1075 = vpack.c.bf16 %v851, %v835
        %v1076 = vpack.c.bf16 %v852, %v836
        %v1077 = vpack.c.bf16 %v853, %v837
        %v1078 = vpack.c.bf16 %v854, %v838
        %v1079 = vpack.c.bf16 %v855, %v839
        %v1080 = vpack.c.bf16 %v872, %v856
        %v1081 = vpack.c.bf16 %v873, %v857
        %v1082 = vpack.c.bf16 %v874, %v858
        %v1083 = vpack.c.bf16 %v875, %v859
        %v1084 = vpack.c.bf16 %v876, %v860
        %v1085 = vpack.c.bf16 %v877, %v861
        %v1086 = vpack.c.bf16 %v878, %v862
        %v1087 = vpack.c.bf16 %v879, %v863
        %v1088 = vpack.c.bf16 %v880, %v864
        %v1089 = vpack.c.bf16 %v881, %v865
        %v1090 = vpack.c.bf16 %v882, %v866
        %v1091 = vpack.c.bf16 %v883, %v867
        %v1092 = vpack.c.bf16 %v884, %v868
        %v1093 = vpack.c.bf16 %v885, %v869
        %v1094 = vpack.c.bf16 %v886, %v870
        %v1095 = vpack.c.bf16 %v887, %v871
        %v1096 = vpack.c.bf16 %v904, %v888
        %v1097 = vpack.c.bf16 %v905, %v889
        %v1098 = vpack.c.bf16 %v906, %v890
        %v1099 = vpack.c.bf16 %v907, %v891
        %v1100 = vpack.c.bf16 %v908, %v892
        %v1101 = vpack.c.bf16 %v909, %v893
        %v1102 = vpack.c.bf16 %v910, %v894
        %v1103 = vpack.c.bf16 %v911, %v895
        %v1104 = vpack.c.bf16 %v912, %v896
        %v1105 = vpack.c.bf16 %v913, %v897
        %v1106 = vpack.c.bf16 %v914, %v898
        %v1107 = vpack.c.bf16 %v915, %v899
        %v1108 = vpack.c.bf16 %v916, %v900
        %v1109 = vpack.c.bf16 %v917, %v901
        %v1110 = vpack.c.bf16 %v918, %v902
        %v1111 = vpack.c.bf16 %v919, %v903
        %v1112 = vpack.c.bf16 %v936, %v920
        %v1113 = vpack.c.bf16 %v937, %v921
        %v1114 = vpack.c.bf16 %v938, %v922
        %v1115 = vpack.c.bf16 %v939, %v923
        %v1116 = vpack.c.bf16 %v940, %v924
        %v1117 = vpack.c.bf16 %v941, %v925
        %v1118 = vpack.c.bf16 %v942, %v926
        %v1119 = vpack.c.bf16 %v943, %v927
        %v1120 = vpack.c.bf16 %v944, %v928
        %v1121 = vpack.c.bf16 %v945, %v929
        %v1122 = vpack.c.bf16 %v946, %v930
        %v1123 = vpack.c.bf16 %v947, %v931
        %v1124 = vpack.c.bf16 %v948, %v932
        %v1125 = vpack.c.bf16 %v949, %v933
        %v1126 = vpack.c.bf16 %v950, %v934
        %v1127 = vpack.c.bf16 %v951, %v935
        %v1128 = vpack.c.bf16 %v968, %v952
        %v1129 = vpack.c.bf16 %v969, %v953
        %v1130 = vpack.c.bf16 %v970, %v954
        %v1131 = vpack.c.bf16 %v971, %v955
        %v1132 = vpack.c.bf16 %v972, %v956
        %v1133 = vpack.c.bf16 %v973, %v957
        %v1134 = vpack.c.bf16 %v974, %v958
        %v1135 = vpack.c.bf16 %v975, %v959
        %v1136 = vpack.c.bf16 %v976, %v960
        %v1137 = vpack.c.bf16 %v977, %v961
        %v1138 = vpack.c.bf16 %v978, %v962
        %v1139 = vpack.c.bf16 %v979, %v963
        %v1140 = vpack.c.bf16 %v980, %v964
        %v1141 = vpack.c.bf16 %v981, %v965
        %v1142 = vpack.c.bf16 %v982, %v966
        %v1143 = vpack.c.bf16 %v983, %v967
        %v1144 = vpack.c.bf16 %v1000, %v984
        %v1145 = vpack.c.bf16 %v1001, %v985
        %v1146 = vpack.c.bf16 %v1002, %v986
        %v1147 = vpack.c.bf16 %v1003, %v987
        %v1148 = vpack.c.bf16 %v1004, %v988
        %v1149 = vpack.c.bf16 %v1005, %v989
        %v1150 = vpack.c.bf16 %v1006, %v990
        %v1151 = vpack.c.bf16 %v1007, %v991
        %v1152 = vpack.c.bf16 %v1008, %v992
        %v1153 = vpack.c.bf16 %v1009, %v993
        %v1154 = vpack.c.bf16 %v1010, %v994
        %v1155 = vpack.c.bf16 %v1011, %v995
        %v1156 = vpack.c.bf16 %v1012, %v996
        %v1157 = vpack.c.bf16 %v1013, %v997
        %v1158 = vpack.c.bf16 %v1014, %v998
        %v1159 = vpack.c.bf16 %v1015, %v999
        %v1160 = vpack.c.bf16 %v1032, %v1016
        %v1161 = vpack.c.bf16 %v1033, %v1017
        %v1162 = vpack.c.bf16 %v1034, %v1018
        %v1163 = vpack.c.bf16 %v1035, %v1019
        %v1164 = vpack.c.bf16 %v1036, %v1020
        %v1165 = vpack.c.bf16 %v1037, %v1021
        %v1166 = vpack.c.bf16 %v1038, %v1022
        %v1167 = vpack.c.bf16 %v1039, %v1023
        %v1168 = vpack.c.bf16 %v1040, %v1024
        %v1169 = vpack.c.bf16 %v1041, %v1025
        %v1170 = vpack.c.bf16 %v1042, %v1026
        %v1171 = vpack.c.bf16 %v1043, %v1027
        %v1172 = vpack.c.bf16 %v1044, %v1028
        %v1173 = vpack.c.bf16 %v1045, %v1029
        %v1174 = vpack.c.bf16 %v1046, %v1030
        %v1175 = vpack.c.bf16 %v1047, %v1031
        %v1176 = vperm.slane %v227, 1
        %v1177 = vperm.slane %v227, 3
        %v1178 = vperm.slane %v227, 5
        %v1179 = vperm.slane %v227, 7
        %v1180 = vperm.slane %v228, 1
        %v1181 = vperm.slane %v228, 3
        %v1182 = vperm.slane %v228, 5
        %v1183 = vperm.slane %v228, 7
        %v1184 = vperm.slane %v229, 1
        %v1185 = vperm.slane %v229, 3
        %v1186 = vperm.slane %v229, 5
        %v1187 = vperm.slane %v229, 7
        %v1188 = vperm.slane %v230, 1
        %v1189 = vperm.slane %v230, 3
        %v1190 = vperm.slane %v230, 5
        %v1191 = vperm.slane %v230, 7
        %v1192 = vperm.slane %v1176, 1
        %v1193 = vperm.slane %v1177, 1
        %v1194 = vperm.slane %v1178, 1
        %v1195 = vperm.slane %v1179, 1
        %v1196 = vperm.slane %v1180, 1
        %v1197 = vperm.slane %v1181, 1
        %v1198 = vperm.slane %v1182, 1
        %v1199 = vperm.slane %v1183, 1
        %v1200 = vperm.slane %v1184, 1
        %v1201 = vperm.slane %v1185, 1
        %v1202 = vperm.slane %v1186, 1
        %v1203 = vperm.slane %v1187, 1
        %v1204 = vperm.slane %v1188, 1
        %v1205 = vperm.slane %v1189, 1
        %v1206 = vperm.slane %v1190, 1
        %v1207 = vperm.slane %v1191, 1
        %vm1208 = vcmp.eq.s32.totalorder %v232, %v1192
        %vm1209 = vcmp.eq.s32.totalorder %v232, %v1193
        %vm1210 = vcmp.eq.s32.totalorder %v232, %v1194
        %vm1211 = vcmp.eq.s32.totalorder %v232, %v1195
        %vm1212 = vcmp.eq.s32.totalorder %v232, %v1196
        %vm1213 = vcmp.eq.s32.totalorder %v232, %v1197
        %vm1214 = vcmp.eq.s32.totalorder %v232, %v1198
        %vm1215 = vcmp.eq.s32.totalorder %v232, %v1199
        %vm1216 = vcmp.eq.s32.totalorder %v232, %v1200
        %vm1217 = vcmp.eq.s32.totalorder %v232, %v1201
        %vm1218 = vcmp.eq.s32.totalorder %v232, %v1202
        %vm1219 = vcmp.eq.s32.totalorder %v232, %v1203
        %vm1220 = vcmp.eq.s32.totalorder %v232, %v1204
        %vm1221 = vcmp.eq.s32.totalorder %v232, %v1205
        %vm1222 = vcmp.eq.s32.totalorder %v232, %v1206
        %vm1223 = vcmp.eq.s32.totalorder %v232, %v1207
        %vm1224 = vcmp.eq.s32.totalorder %v233, %v1192
        %vm1225 = vcmp.eq.s32.totalorder %v233, %v1193
        %vm1226 = vcmp.eq.s32.totalorder %v233, %v1194
        %vm1227 = vcmp.eq.s32.totalorder %v233, %v1195
        %vm1228 = vcmp.eq.s32.totalorder %v233, %v1196
        %vm1229 = vcmp.eq.s32.totalorder %v233, %v1197
        %vm1230 = vcmp.eq.s32.totalorder %v233, %v1198
        %vm1231 = vcmp.eq.s32.totalorder %v233, %v1199
        %vm1232 = vcmp.eq.s32.totalorder %v233, %v1200
        %vm1233 = vcmp.eq.s32.totalorder %v233, %v1201
        %vm1234 = vcmp.eq.s32.totalorder %v233, %v1202
        %vm1235 = vcmp.eq.s32.totalorder %v233, %v1203
        %vm1236 = vcmp.eq.s32.totalorder %v233, %v1204
        %vm1237 = vcmp.eq.s32.totalorder %v233, %v1205
        %vm1238 = vcmp.eq.s32.totalorder %v233, %v1206
        %vm1239 = vcmp.eq.s32.totalorder %v233, %v1207
        %vm1240 = vcmp.eq.s32.totalorder %v234, %v1192
        %vm1241 = vcmp.eq.s32.totalorder %v234, %v1193
        %vm1242 = vcmp.eq.s32.totalorder %v234, %v1194
        %vm1243 = vcmp.eq.s32.totalorder %v234, %v1195
        %vm1244 = vcmp.eq.s32.totalorder %v234, %v1196
        %vm1245 = vcmp.eq.s32.totalorder %v234, %v1197
        %vm1246 = vcmp.eq.s32.totalorder %v234, %v1198
        %vm1247 = vcmp.eq.s32.totalorder %v234, %v1199
        %vm1248 = vcmp.eq.s32.totalorder %v234, %v1200
        %vm1249 = vcmp.eq.s32.totalorder %v234, %v1201
        %vm1250 = vcmp.eq.s32.totalorder %v234, %v1202
        %vm1251 = vcmp.eq.s32.totalorder %v234, %v1203
        %vm1252 = vcmp.eq.s32.totalorder %v234, %v1204
        %vm1253 = vcmp.eq.s32.totalorder %v234, %v1205
        %vm1254 = vcmp.eq.s32.totalorder %v234, %v1206
        %vm1255 = vcmp.eq.s32.totalorder %v234, %v1207
        %vm1256 = vcmp.eq.s32.totalorder %v235, %v1192
        %vm1257 = vcmp.eq.s32.totalorder %v235, %v1193
        %vm1258 = vcmp.eq.s32.totalorder %v235, %v1194
        %vm1259 = vcmp.eq.s32.totalorder %v235, %v1195
        %vm1260 = vcmp.eq.s32.totalorder %v235, %v1196
        %vm1261 = vcmp.eq.s32.totalorder %v235, %v1197
        %vm1262 = vcmp.eq.s32.totalorder %v235, %v1198
        %vm1263 = vcmp.eq.s32.totalorder %v235, %v1199
        %vm1264 = vcmp.eq.s32.totalorder %v235, %v1200
        %vm1265 = vcmp.eq.s32.totalorder %v235, %v1201
        %vm1266 = vcmp.eq.s32.totalorder %v235, %v1202
        %vm1267 = vcmp.eq.s32.totalorder %v235, %v1203
        %vm1268 = vcmp.eq.s32.totalorder %v235, %v1204
        %vm1269 = vcmp.eq.s32.totalorder %v235, %v1205
        %vm1270 = vcmp.eq.s32.totalorder %v235, %v1206
        %vm1271 = vcmp.eq.s32.totalorder %v235, %v1207
        %vm1272 = vcmp.eq.s32.totalorder %v236, %v1192
        %vm1273 = vcmp.eq.s32.totalorder %v236, %v1193
        %vm1274 = vcmp.eq.s32.totalorder %v236, %v1194
        %vm1275 = vcmp.eq.s32.totalorder %v236, %v1195
        %vm1276 = vcmp.eq.s32.totalorder %v236, %v1196
        %vm1277 = vcmp.eq.s32.totalorder %v236, %v1197
        %vm1278 = vcmp.eq.s32.totalorder %v236, %v1198
        %vm1279 = vcmp.eq.s32.totalorder %v236, %v1199
        %vm1280 = vcmp.eq.s32.totalorder %v236, %v1200
        %vm1281 = vcmp.eq.s32.totalorder %v236, %v1201
        %vm1282 = vcmp.eq.s32.totalorder %v236, %v1202
        %vm1283 = vcmp.eq.s32.totalorder %v236, %v1203
        %vm1284 = vcmp.eq.s32.totalorder %v236, %v1204
        %vm1285 = vcmp.eq.s32.totalorder %v236, %v1205
        %vm1286 = vcmp.eq.s32.totalorder %v236, %v1206
        %vm1287 = vcmp.eq.s32.totalorder %v236, %v1207
        %vm1288 = vcmp.eq.s32.totalorder %v237, %v1192
        %vm1289 = vcmp.eq.s32.totalorder %v237, %v1193
        %vm1290 = vcmp.eq.s32.totalorder %v237, %v1194
        %vm1291 = vcmp.eq.s32.totalorder %v237, %v1195
        %vm1292 = vcmp.eq.s32.totalorder %v237, %v1196
        %vm1293 = vcmp.eq.s32.totalorder %v237, %v1197
        %vm1294 = vcmp.eq.s32.totalorder %v237, %v1198
        %vm1295 = vcmp.eq.s32.totalorder %v237, %v1199
        %vm1296 = vcmp.eq.s32.totalorder %v237, %v1200
        %vm1297 = vcmp.eq.s32.totalorder %v237, %v1201
        %vm1298 = vcmp.eq.s32.totalorder %v237, %v1202
        %vm1299 = vcmp.eq.s32.totalorder %v237, %v1203
        %vm1300 = vcmp.eq.s32.totalorder %v237, %v1204
        %vm1301 = vcmp.eq.s32.totalorder %v237, %v1205
        %vm1302 = vcmp.eq.s32.totalorder %v237, %v1206
        %vm1303 = vcmp.eq.s32.totalorder %v237, %v1207
        %vm1304 = vcmp.eq.s32.totalorder %v238, %v1192
        %vm1305 = vcmp.eq.s32.totalorder %v238, %v1193
        %vm1306 = vcmp.eq.s32.totalorder %v238, %v1194
        %vm1307 = vcmp.eq.s32.totalorder %v238, %v1195
        %vm1308 = vcmp.eq.s32.totalorder %v238, %v1196
        %vm1309 = vcmp.eq.s32.totalorder %v238, %v1197
        %vm1310 = vcmp.eq.s32.totalorder %v238, %v1198
        %vm1311 = vcmp.eq.s32.totalorder %v238, %v1199
        %vm1312 = vcmp.eq.s32.totalorder %v238, %v1200
        %vm1313 = vcmp.eq.s32.totalorder %v238, %v1201
        %vm1314 = vcmp.eq.s32.totalorder %v238, %v1202
        %vm1315 = vcmp.eq.s32.totalorder %v238, %v1203
        %vm1316 = vcmp.eq.s32.totalorder %v238, %v1204
        %vm1317 = vcmp.eq.s32.totalorder %v238, %v1205
        %vm1318 = vcmp.eq.s32.totalorder %v238, %v1206
        %vm1319 = vcmp.eq.s32.totalorder %v238, %v1207
        %vm1320 = vcmp.eq.s32.totalorder %v239, %v1192
        %vm1321 = vcmp.eq.s32.totalorder %v239, %v1193
        %vm1322 = vcmp.eq.s32.totalorder %v239, %v1194
        %vm1323 = vcmp.eq.s32.totalorder %v239, %v1195
        %vm1324 = vcmp.eq.s32.totalorder %v239, %v1196
        %vm1325 = vcmp.eq.s32.totalorder %v239, %v1197
        %vm1326 = vcmp.eq.s32.totalorder %v239, %v1198
        %vm1327 = vcmp.eq.s32.totalorder %v239, %v1199
        %vm1328 = vcmp.eq.s32.totalorder %v239, %v1200
        %vm1329 = vcmp.eq.s32.totalorder %v239, %v1201
        %vm1330 = vcmp.eq.s32.totalorder %v239, %v1202
        %vm1331 = vcmp.eq.s32.totalorder %v239, %v1203
        %vm1332 = vcmp.eq.s32.totalorder %v239, %v1204
        %vm1333 = vcmp.eq.s32.totalorder %v239, %v1205
        %vm1334 = vcmp.eq.s32.totalorder %v239, %v1206
        %vm1335 = vcmp.eq.s32.totalorder %v239, %v1207
        %vm1336 = vcmp.eq.s32.totalorder %v240, %v1192
        %vm1337 = vcmp.eq.s32.totalorder %v240, %v1193
        %vm1338 = vcmp.eq.s32.totalorder %v240, %v1194
        %vm1339 = vcmp.eq.s32.totalorder %v240, %v1195
        %vm1340 = vcmp.eq.s32.totalorder %v240, %v1196
        %vm1341 = vcmp.eq.s32.totalorder %v240, %v1197
        %vm1342 = vcmp.eq.s32.totalorder %v240, %v1198
        %vm1343 = vcmp.eq.s32.totalorder %v240, %v1199
        %vm1344 = vcmp.eq.s32.totalorder %v240, %v1200
        %vm1345 = vcmp.eq.s32.totalorder %v240, %v1201
        %vm1346 = vcmp.eq.s32.totalorder %v240, %v1202
        %vm1347 = vcmp.eq.s32.totalorder %v240, %v1203
        %vm1348 = vcmp.eq.s32.totalorder %v240, %v1204
        %vm1349 = vcmp.eq.s32.totalorder %v240, %v1205
        %vm1350 = vcmp.eq.s32.totalorder %v240, %v1206
        %vm1351 = vcmp.eq.s32.totalorder %v240, %v1207
        %vm1352 = vcmp.eq.s32.totalorder %v241, %v1192
        %vm1353 = vcmp.eq.s32.totalorder %v241, %v1193
        %vm1354 = vcmp.eq.s32.totalorder %v241, %v1194
        %vm1355 = vcmp.eq.s32.totalorder %v241, %v1195
        %vm1356 = vcmp.eq.s32.totalorder %v241, %v1196
        %vm1357 = vcmp.eq.s32.totalorder %v241, %v1197
        %vm1358 = vcmp.eq.s32.totalorder %v241, %v1198
        %vm1359 = vcmp.eq.s32.totalorder %v241, %v1199
        %vm1360 = vcmp.eq.s32.totalorder %v241, %v1200
        %vm1361 = vcmp.eq.s32.totalorder %v241, %v1201
        %vm1362 = vcmp.eq.s32.totalorder %v241, %v1202
        %vm1363 = vcmp.eq.s32.totalorder %v241, %v1203
        %vm1364 = vcmp.eq.s32.totalorder %v241, %v1204
        %vm1365 = vcmp.eq.s32.totalorder %v241, %v1205
        %vm1366 = vcmp.eq.s32.totalorder %v241, %v1206
        %vm1367 = vcmp.eq.s32.totalorder %v241, %v1207
        %vm1368 = vcmp.eq.s32.totalorder %v242, %v1192
        %vm1369 = vcmp.eq.s32.totalorder %v242, %v1193
        %vm1370 = vcmp.eq.s32.totalorder %v242, %v1194
        %vm1371 = vcmp.eq.s32.totalorder %v242, %v1195
        %vm1372 = vcmp.eq.s32.totalorder %v242, %v1196
        %vm1373 = vcmp.eq.s32.totalorder %v242, %v1197
        %vm1374 = vcmp.eq.s32.totalorder %v242, %v1198
        %vm1375 = vcmp.eq.s32.totalorder %v242, %v1199
        %vm1376 = vcmp.eq.s32.totalorder %v242, %v1200
        %vm1377 = vcmp.eq.s32.totalorder %v242, %v1201
        %vm1378 = vcmp.eq.s32.totalorder %v242, %v1202
        %vm1379 = vcmp.eq.s32.totalorder %v242, %v1203
        %vm1380 = vcmp.eq.s32.totalorder %v242, %v1204
        %vm1381 = vcmp.eq.s32.totalorder %v242, %v1205
        %vm1382 = vcmp.eq.s32.totalorder %v242, %v1206
        %vm1383 = vcmp.eq.s32.totalorder %v242, %v1207
        %vm1384 = vcmp.eq.s32.totalorder %v243, %v1192
        %vm1385 = vcmp.eq.s32.totalorder %v243, %v1193
        %vm1386 = vcmp.eq.s32.totalorder %v243, %v1194
        %vm1387 = vcmp.eq.s32.totalorder %v243, %v1195
        %vm1388 = vcmp.eq.s32.totalorder %v243, %v1196
        %vm1389 = vcmp.eq.s32.totalorder %v243, %v1197
        %vm1390 = vcmp.eq.s32.totalorder %v243, %v1198
        %vm1391 = vcmp.eq.s32.totalorder %v243, %v1199
        %vm1392 = vcmp.eq.s32.totalorder %v243, %v1200
        %vm1393 = vcmp.eq.s32.totalorder %v243, %v1201
        %vm1394 = vcmp.eq.s32.totalorder %v243, %v1202
        %vm1395 = vcmp.eq.s32.totalorder %v243, %v1203
        %vm1396 = vcmp.eq.s32.totalorder %v243, %v1204
        %vm1397 = vcmp.eq.s32.totalorder %v243, %v1205
        %vm1398 = vcmp.eq.s32.totalorder %v243, %v1206
        %vm1399 = vcmp.eq.s32.totalorder %v243, %v1207
        %vm1400 = vcmp.eq.s32.totalorder %v244, %v1192
        %vm1401 = vcmp.eq.s32.totalorder %v244, %v1193
        %vm1402 = vcmp.eq.s32.totalorder %v244, %v1194
        %vm1403 = vcmp.eq.s32.totalorder %v244, %v1195
        %vm1404 = vcmp.eq.s32.totalorder %v244, %v1196
        %vm1405 = vcmp.eq.s32.totalorder %v244, %v1197
        %vm1406 = vcmp.eq.s32.totalorder %v244, %v1198
        %vm1407 = vcmp.eq.s32.totalorder %v244, %v1199
        %vm1408 = vcmp.eq.s32.totalorder %v244, %v1200
        %vm1409 = vcmp.eq.s32.totalorder %v244, %v1201
        %vm1410 = vcmp.eq.s32.totalorder %v244, %v1202
        %vm1411 = vcmp.eq.s32.totalorder %v244, %v1203
        %vm1412 = vcmp.eq.s32.totalorder %v244, %v1204
        %vm1413 = vcmp.eq.s32.totalorder %v244, %v1205
        %vm1414 = vcmp.eq.s32.totalorder %v244, %v1206
        %vm1415 = vcmp.eq.s32.totalorder %v244, %v1207
        %vm1416 = vcmp.eq.s32.totalorder %v245, %v1192
        %vm1417 = vcmp.eq.s32.totalorder %v245, %v1193
        %vm1418 = vcmp.eq.s32.totalorder %v245, %v1194
        %vm1419 = vcmp.eq.s32.totalorder %v245, %v1195
        %vm1420 = vcmp.eq.s32.totalorder %v245, %v1196
        %vm1421 = vcmp.eq.s32.totalorder %v245, %v1197
        %vm1422 = vcmp.eq.s32.totalorder %v245, %v1198
        %vm1423 = vcmp.eq.s32.totalorder %v245, %v1199
        %vm1424 = vcmp.eq.s32.totalorder %v245, %v1200
        %vm1425 = vcmp.eq.s32.totalorder %v245, %v1201
        %vm1426 = vcmp.eq.s32.totalorder %v245, %v1202
        %vm1427 = vcmp.eq.s32.totalorder %v245, %v1203
        %vm1428 = vcmp.eq.s32.totalorder %v245, %v1204
        %vm1429 = vcmp.eq.s32.totalorder %v245, %v1205
        %vm1430 = vcmp.eq.s32.totalorder %v245, %v1206
        %vm1431 = vcmp.eq.s32.totalorder %v245, %v1207
        %vm1432 = vcmp.eq.s32.totalorder %v246, %v1192
        %vm1433 = vcmp.eq.s32.totalorder %v246, %v1193
        %vm1434 = vcmp.eq.s32.totalorder %v246, %v1194
        %vm1435 = vcmp.eq.s32.totalorder %v246, %v1195
        %vm1436 = vcmp.eq.s32.totalorder %v246, %v1196
        %vm1437 = vcmp.eq.s32.totalorder %v246, %v1197
        %vm1438 = vcmp.eq.s32.totalorder %v246, %v1198
        %vm1439 = vcmp.eq.s32.totalorder %v246, %v1199
        %vm1440 = vcmp.eq.s32.totalorder %v246, %v1200
        %vm1441 = vcmp.eq.s32.totalorder %v246, %v1201
        %vm1442 = vcmp.eq.s32.totalorder %v246, %v1202
        %vm1443 = vcmp.eq.s32.totalorder %v246, %v1203
        %vm1444 = vcmp.eq.s32.totalorder %v246, %v1204
        %vm1445 = vcmp.eq.s32.totalorder %v246, %v1205
        %vm1446 = vcmp.eq.s32.totalorder %v246, %v1206
        %vm1447 = vcmp.eq.s32.totalorder %v246, %v1207
        %vm1448 = vcmp.eq.s32.totalorder %v247, %v1192
        %vm1449 = vcmp.eq.s32.totalorder %v247, %v1193
        %vm1450 = vcmp.eq.s32.totalorder %v247, %v1194
        %vm1451 = vcmp.eq.s32.totalorder %v247, %v1195
        %vm1452 = vcmp.eq.s32.totalorder %v247, %v1196
        %vm1453 = vcmp.eq.s32.totalorder %v247, %v1197
        %vm1454 = vcmp.eq.s32.totalorder %v247, %v1198
        %vm1455 = vcmp.eq.s32.totalorder %v247, %v1199
        %vm1456 = vcmp.eq.s32.totalorder %v247, %v1200
        %vm1457 = vcmp.eq.s32.totalorder %v247, %v1201
        %vm1458 = vcmp.eq.s32.totalorder %v247, %v1202
        %vm1459 = vcmp.eq.s32.totalorder %v247, %v1203
        %vm1460 = vcmp.eq.s32.totalorder %v247, %v1204
        %vm1461 = vcmp.eq.s32.totalorder %v247, %v1205
        %vm1462 = vcmp.eq.s32.totalorder %v247, %v1206
        %vm1463 = vcmp.eq.s32.totalorder %v247, %v1207
        %v1464 = vsel %vm1208, 1, 0
        %v1465 = vsel %vm1209, 1, 0
        %v1466 = vsel %vm1210, 1, 0
        %v1467 = vsel %vm1211, 1, 0
        %v1468 = vsel %vm1212, 1, 0
        %v1469 = vsel %vm1213, 1, 0
        %v1470 = vsel %vm1214, 1, 0
        %v1471 = vsel %vm1215, 1, 0
        %v1472 = vsel %vm1216, 1, 0
        %v1473 = vsel %vm1217, 1, 0
        %v1474 = vsel %vm1218, 1, 0
        %v1475 = vsel %vm1219, 1, 0
        %v1476 = vsel %vm1220, 1, 0
        %v1477 = vsel %vm1221, 1, 0
        %v1478 = vsel %vm1222, 1, 0
        %v1479 = vsel %vm1223, 1, 0
        %v1480 = vsel %vm1224, 1, 0
        %v1481 = vsel %vm1225, 1, 0
        %v1482 = vsel %vm1226, 1, 0
        %v1483 = vsel %vm1227, 1, 0
        %v1484 = vsel %vm1228, 1, 0
        %v1485 = vsel %vm1229, 1, 0
        %v1486 = vsel %vm1230, 1, 0
        %v1487 = vsel %vm1231, 1, 0
        %v1488 = vsel %vm1232, 1, 0
        %v1489 = vsel %vm1233, 1, 0
        %v1490 = vsel %vm1234, 1, 0
        %v1491 = vsel %vm1235, 1, 0
        %v1492 = vsel %vm1236, 1, 0
        %v1493 = vsel %vm1237, 1, 0
        %v1494 = vsel %vm1238, 1, 0
        %v1495 = vsel %vm1239, 1, 0
        %v1496 = vsel %vm1240, 1, 0
        %v1497 = vsel %vm1241, 1, 0
        %v1498 = vsel %vm1242, 1, 0
        %v1499 = vsel %vm1243, 1, 0
        %v1500 = vsel %vm1244, 1, 0
        %v1501 = vsel %vm1245, 1, 0
        %v1502 = vsel %vm1246, 1, 0
        %v1503 = vsel %vm1247, 1, 0
        %v1504 = vsel %vm1248, 1, 0
        %v1505 = vsel %vm1249, 1, 0
        %v1506 = vsel %vm1250, 1, 0
        %v1507 = vsel %vm1251, 1, 0
        %v1508 = vsel %vm1252, 1, 0
        %v1509 = vsel %vm1253, 1, 0
        %v1510 = vsel %vm1254, 1, 0
        %v1511 = vsel %vm1255, 1, 0
        %v1512 = vsel %vm1256, 1, 0
        %v1513 = vsel %vm1257, 1, 0
        %v1514 = vsel %vm1258, 1, 0
        %v1515 = vsel %vm1259, 1, 0
        %v1516 = vsel %vm1260, 1, 0
        %v1517 = vsel %vm1261, 1, 0
        %v1518 = vsel %vm1262, 1, 0
        %v1519 = vsel %vm1263, 1, 0
        %v1520 = vsel %vm1264, 1, 0
        %v1521 = vsel %vm1265, 1, 0
        %v1522 = vsel %vm1266, 1, 0
        %v1523 = vsel %vm1267, 1, 0
        %v1524 = vsel %vm1268, 1, 0
        %v1525 = vsel %vm1269, 1, 0
        %v1526 = vsel %vm1270, 1, 0
        %v1527 = vsel %vm1271, 1, 0
        %v1528 = vsel %vm1272, 1, 0
        %v1529 = vsel %vm1273, 1, 0
        %v1530 = vsel %vm1274, 1, 0
        %v1531 = vsel %vm1275, 1, 0
        %v1532 = vsel %vm1276, 1, 0
        %v1533 = vsel %vm1277, 1, 0
        %v1534 = vsel %vm1278, 1, 0
        %v1535 = vsel %vm1279, 1, 0
        %v1536 = vsel %vm1280, 1, 0
        %v1537 = vsel %vm1281, 1, 0
        %v1538 = vsel %vm1282, 1, 0
        %v1539 = vsel %vm1283, 1, 0
        %v1540 = vsel %vm1284, 1, 0
        %v1541 = vsel %vm1285, 1, 0
        %v1542 = vsel %vm1286, 1, 0
        %v1543 = vsel %vm1287, 1, 0
        %v1544 = vsel %vm1288, 1, 0
        %v1545 = vsel %vm1289, 1, 0
        %v1546 = vsel %vm1290, 1, 0
        %v1547 = vsel %vm1291, 1, 0
        %v1548 = vsel %vm1292, 1, 0
        %v1549 = vsel %vm1293, 1, 0
        %v1550 = vsel %vm1294, 1, 0
        %v1551 = vsel %vm1295, 1, 0
        %v1552 = vsel %vm1296, 1, 0
        %v1553 = vsel %vm1297, 1, 0
        %v1554 = vsel %vm1298, 1, 0
        %v1555 = vsel %vm1299, 1, 0
        %v1556 = vsel %vm1300, 1, 0
        %v1557 = vsel %vm1301, 1, 0
        %v1558 = vsel %vm1302, 1, 0
        %v1559 = vsel %vm1303, 1, 0
        %v1560 = vsel %vm1304, 1, 0
        %v1561 = vsel %vm1305, 1, 0
        %v1562 = vsel %vm1306, 1, 0
        %v1563 = vsel %vm1307, 1, 0
        %v1564 = vsel %vm1308, 1, 0
        %v1565 = vsel %vm1309, 1, 0
        %v1566 = vsel %vm1310, 1, 0
        %v1567 = vsel %vm1311, 1, 0
        %v1568 = vsel %vm1312, 1, 0
        %v1569 = vsel %vm1313, 1, 0
        %v1570 = vsel %vm1314, 1, 0
        %v1571 = vsel %vm1315, 1, 0
        %v1572 = vsel %vm1316, 1, 0
        %v1573 = vsel %vm1317, 1, 0
        %v1574 = vsel %vm1318, 1, 0
        %v1575 = vsel %vm1319, 1, 0
        %v1576 = vsel %vm1320, 1, 0
        %v1577 = vsel %vm1321, 1, 0
        %v1578 = vsel %vm1322, 1, 0
        %v1579 = vsel %vm1323, 1, 0
        %v1580 = vsel %vm1324, 1, 0
        %v1581 = vsel %vm1325, 1, 0
        %v1582 = vsel %vm1326, 1, 0
        %v1583 = vsel %vm1327, 1, 0
        %v1584 = vsel %vm1328, 1, 0
        %v1585 = vsel %vm1329, 1, 0
        %v1586 = vsel %vm1330, 1, 0
        %v1587 = vsel %vm1331, 1, 0
        %v1588 = vsel %vm1332, 1, 0
        %v1589 = vsel %vm1333, 1, 0
        %v1590 = vsel %vm1334, 1, 0
        %v1591 = vsel %vm1335, 1, 0
        %v1592 = vsel %vm1336, 1, 0
        %v1593 = vsel %vm1337, 1, 0
        %v1594 = vsel %vm1338, 1, 0
        %v1595 = vsel %vm1339, 1, 0
        %v1596 = vsel %vm1340, 1, 0
        %v1597 = vsel %vm1341, 1, 0
        %v1598 = vsel %vm1342, 1, 0
        %v1599 = vsel %vm1343, 1, 0
        %v1600 = vsel %vm1344, 1, 0
        %v1601 = vsel %vm1345, 1, 0
        %v1602 = vsel %vm1346, 1, 0
        %v1603 = vsel %vm1347, 1, 0
        %v1604 = vsel %vm1348, 1, 0
        %v1605 = vsel %vm1349, 1, 0
        %v1606 = vsel %vm1350, 1, 0
        %v1607 = vsel %vm1351, 1, 0
        %v1608 = vsel %vm1352, 1, 0
        %v1609 = vsel %vm1353, 1, 0
        %v1610 = vsel %vm1354, 1, 0
        %v1611 = vsel %vm1355, 1, 0
        %v1612 = vsel %vm1356, 1, 0
        %v1613 = vsel %vm1357, 1, 0
        %v1614 = vsel %vm1358, 1, 0
        %v1615 = vsel %vm1359, 1, 0
        %v1616 = vsel %vm1360, 1, 0
        %v1617 = vsel %vm1361, 1, 0
        %v1618 = vsel %vm1362, 1, 0
        %v1619 = vsel %vm1363, 1, 0
        %v1620 = vsel %vm1364, 1, 0
        %v1621 = vsel %vm1365, 1, 0
        %v1622 = vsel %vm1366, 1, 0
        %v1623 = vsel %vm1367, 1, 0
        %v1624 = vsel %vm1368, 1, 0
        %v1625 = vsel %vm1369, 1, 0
        %v1626 = vsel %vm1370, 1, 0
        %v1627 = vsel %vm1371, 1, 0
        %v1628 = vsel %vm1372, 1, 0
        %v1629 = vsel %vm1373, 1, 0
        %v1630 = vsel %vm1374, 1, 0
        %v1631 = vsel %vm1375, 1, 0
        %v1632 = vsel %vm1376, 1, 0
        %v1633 = vsel %vm1377, 1, 0
        %v1634 = vsel %vm1378, 1, 0
        %v1635 = vsel %vm1379, 1, 0
        %v1636 = vsel %vm1380, 1, 0
        %v1637 = vsel %vm1381, 1, 0
        %v1638 = vsel %vm1382, 1, 0
        %v1639 = vsel %vm1383, 1, 0
        %v1640 = vsel %vm1384, 1, 0
        %v1641 = vsel %vm1385, 1, 0
        %v1642 = vsel %vm1386, 1, 0
        %v1643 = vsel %vm1387, 1, 0
        %v1644 = vsel %vm1388, 1, 0
        %v1645 = vsel %vm1389, 1, 0
        %v1646 = vsel %vm1390, 1, 0
        %v1647 = vsel %vm1391, 1, 0
        %v1648 = vsel %vm1392, 1, 0
        %v1649 = vsel %vm1393, 1, 0
        %v1650 = vsel %vm1394, 1, 0
        %v1651 = vsel %vm1395, 1, 0
        %v1652 = vsel %vm1396, 1, 0
        %v1653 = vsel %vm1397, 1, 0
        %v1654 = vsel %vm1398, 1, 0
        %v1655 = vsel %vm1399, 1, 0
        %v1656 = vsel %vm1400, 1, 0
        %v1657 = vsel %vm1401, 1, 0
        %v1658 = vsel %vm1402, 1, 0
        %v1659 = vsel %vm1403, 1, 0
        %v1660 = vsel %vm1404, 1, 0
        %v1661 = vsel %vm1405, 1, 0
        %v1662 = vsel %vm1406, 1, 0
        %v1663 = vsel %vm1407, 1, 0
        %v1664 = vsel %vm1408, 1, 0
        %v1665 = vsel %vm1409, 1, 0
        %v1666 = vsel %vm1410, 1, 0
        %v1667 = vsel %vm1411, 1, 0
        %v1668 = vsel %vm1412, 1, 0
        %v1669 = vsel %vm1413, 1, 0
        %v1670 = vsel %vm1414, 1, 0
        %v1671 = vsel %vm1415, 1, 0
        %v1672 = vsel %vm1416, 1, 0
        %v1673 = vsel %vm1417, 1, 0
        %v1674 = vsel %vm1418, 1, 0
        %v1675 = vsel %vm1419, 1, 0
        %v1676 = vsel %vm1420, 1, 0
        %v1677 = vsel %vm1421, 1, 0
        %v1678 = vsel %vm1422, 1, 0
        %v1679 = vsel %vm1423, 1, 0
        %v1680 = vsel %vm1424, 1, 0
        %v1681 = vsel %vm1425, 1, 0
        %v1682 = vsel %vm1426, 1, 0
        %v1683 = vsel %vm1427, 1, 0
        %v1684 = vsel %vm1428, 1, 0
        %v1685 = vsel %vm1429, 1, 0
        %v1686 = vsel %vm1430, 1, 0
        %v1687 = vsel %vm1431, 1, 0
        %v1688 = vsel %vm1432, 1, 0
        %v1689 = vsel %vm1433, 1, 0
        %v1690 = vsel %vm1434, 1, 0
        %v1691 = vsel %vm1435, 1, 0
        %v1692 = vsel %vm1436, 1, 0
        %v1693 = vsel %vm1437, 1, 0
        %v1694 = vsel %vm1438, 1, 0
        %v1695 = vsel %vm1439, 1, 0
        %v1696 = vsel %vm1440, 1, 0
        %v1697 = vsel %vm1441, 1, 0
        %v1698 = vsel %vm1442, 1, 0
        %v1699 = vsel %vm1443, 1, 0
        %v1700 = vsel %vm1444, 1, 0
        %v1701 = vsel %vm1445, 1, 0
        %v1702 = vsel %vm1446, 1, 0
        %v1703 = vsel %vm1447, 1, 0
        %v1704 = vsel %vm1448, 1, 0
        %v1705 = vsel %vm1449, 1, 0
        %v1706 = vsel %vm1450, 1, 0
        %v1707 = vsel %vm1451, 1, 0
        %v1708 = vsel %vm1452, 1, 0
        %v1709 = vsel %vm1453, 1, 0
        %v1710 = vsel %vm1454, 1, 0
        %v1711 = vsel %vm1455, 1, 0
        %v1712 = vsel %vm1456, 1, 0
        %v1713 = vsel %vm1457, 1, 0
        %v1714 = vsel %vm1458, 1, 0
        %v1715 = vsel %vm1459, 1, 0
        %v1716 = vsel %vm1460, 1, 0
        %v1717 = vsel %vm1461, 1, 0
        %v1718 = vsel %vm1462, 1, 0
        %v1719 = vsel %vm1463, 1, 0
        %v1720 = vcvt.s32.f32 %v1464
        %v1721 = vcvt.s32.f32 %v1465
        %v1722 = vcvt.s32.f32 %v1466
        %v1723 = vcvt.s32.f32 %v1467
        %v1724 = vcvt.s32.f32 %v1468
        %v1725 = vcvt.s32.f32 %v1469
        %v1726 = vcvt.s32.f32 %v1470
        %v1727 = vcvt.s32.f32 %v1471
        %v1728 = vcvt.s32.f32 %v1472
        %v1729 = vcvt.s32.f32 %v1473
        %v1730 = vcvt.s32.f32 %v1474
        %v1731 = vcvt.s32.f32 %v1475
        %v1732 = vcvt.s32.f32 %v1476
        %v1733 = vcvt.s32.f32 %v1477
        %v1734 = vcvt.s32.f32 %v1478
        %v1735 = vcvt.s32.f32 %v1479
        %v1736 = vcvt.s32.f32 %v1480
        %v1737 = vcvt.s32.f32 %v1481
        %v1738 = vcvt.s32.f32 %v1482
        %v1739 = vcvt.s32.f32 %v1483
        %v1740 = vcvt.s32.f32 %v1484
        %v1741 = vcvt.s32.f32 %v1485
        %v1742 = vcvt.s32.f32 %v1486
        %v1743 = vcvt.s32.f32 %v1487
        %v1744 = vcvt.s32.f32 %v1488
        %v1745 = vcvt.s32.f32 %v1489
        %v1746 = vcvt.s32.f32 %v1490
        %v1747 = vcvt.s32.f32 %v1491
        %v1748 = vcvt.s32.f32 %v1492
        %v1749 = vcvt.s32.f32 %v1493
        %v1750 = vcvt.s32.f32 %v1494
        %v1751 = vcvt.s32.f32 %v1495
        %v1752 = vcvt.s32.f32 %v1496
        %v1753 = vcvt.s32.f32 %v1497
        %v1754 = vcvt.s32.f32 %v1498
        %v1755 = vcvt.s32.f32 %v1499
        %v1756 = vcvt.s32.f32 %v1500
        %v1757 = vcvt.s32.f32 %v1501
        %v1758 = vcvt.s32.f32 %v1502
        %v1759 = vcvt.s32.f32 %v1503
        %v1760 = vcvt.s32.f32 %v1504
        %v1761 = vcvt.s32.f32 %v1505
        %v1762 = vcvt.s32.f32 %v1506
        %v1763 = vcvt.s32.f32 %v1507
        %v1764 = vcvt.s32.f32 %v1508
        %v1765 = vcvt.s32.f32 %v1509
        %v1766 = vcvt.s32.f32 %v1510
        %v1767 = vcvt.s32.f32 %v1511
        %v1768 = vcvt.s32.f32 %v1512
        %v1769 = vcvt.s32.f32 %v1513
        %v1770 = vcvt.s32.f32 %v1514
        %v1771 = vcvt.s32.f32 %v1515
        %v1772 = vcvt.s32.f32 %v1516
        %v1773 = vcvt.s32.f32 %v1517
        %v1774 = vcvt.s32.f32 %v1518
        %v1775 = vcvt.s32.f32 %v1519
        %v1776 = vcvt.s32.f32 %v1520
        %v1777 = vcvt.s32.f32 %v1521
        %v1778 = vcvt.s32.f32 %v1522
        %v1779 = vcvt.s32.f32 %v1523
        %v1780 = vcvt.s32.f32 %v1524
        %v1781 = vcvt.s32.f32 %v1525
        %v1782 = vcvt.s32.f32 %v1526
        %v1783 = vcvt.s32.f32 %v1527
        %v1784 = vcvt.s32.f32 %v1528
        %v1785 = vcvt.s32.f32 %v1529
        %v1786 = vcvt.s32.f32 %v1530
        %v1787 = vcvt.s32.f32 %v1531
        %v1788 = vcvt.s32.f32 %v1532
        %v1789 = vcvt.s32.f32 %v1533
        %v1790 = vcvt.s32.f32 %v1534
        %v1791 = vcvt.s32.f32 %v1535
        %v1792 = vcvt.s32.f32 %v1536
        %v1793 = vcvt.s32.f32 %v1537
        %v1794 = vcvt.s32.f32 %v1538
        %v1795 = vcvt.s32.f32 %v1539
        %v1796 = vcvt.s32.f32 %v1540
        %v1797 = vcvt.s32.f32 %v1541
        %v1798 = vcvt.s32.f32 %v1542
        %v1799 = vcvt.s32.f32 %v1543
        %v1800 = vcvt.s32.f32 %v1544
        %v1801 = vcvt.s32.f32 %v1545
        %v1802 = vcvt.s32.f32 %v1546
        %v1803 = vcvt.s32.f32 %v1547
        %v1804 = vcvt.s32.f32 %v1548
        %v1805 = vcvt.s32.f32 %v1549
        %v1806 = vcvt.s32.f32 %v1550
        %v1807 = vcvt.s32.f32 %v1551
        %v1808 = vcvt.s32.f32 %v1552
        %v1809 = vcvt.s32.f32 %v1553
        %v1810 = vcvt.s32.f32 %v1554
        %v1811 = vcvt.s32.f32 %v1555
        %v1812 = vcvt.s32.f32 %v1556
        %v1813 = vcvt.s32.f32 %v1557
        %v1814 = vcvt.s32.f32 %v1558
        %v1815 = vcvt.s32.f32 %v1559
        %v1816 = vcvt.s32.f32 %v1560
        %v1817 = vcvt.s32.f32 %v1561
        %v1818 = vcvt.s32.f32 %v1562
        %v1819 = vcvt.s32.f32 %v1563
        %v1820 = vcvt.s32.f32 %v1564
        %v1821 = vcvt.s32.f32 %v1565
        %v1822 = vcvt.s32.f32 %v1566
        %v1823 = vcvt.s32.f32 %v1567
        %v1824 = vcvt.s32.f32 %v1568
        %v1825 = vcvt.s32.f32 %v1569
        %v1826 = vcvt.s32.f32 %v1570
        %v1827 = vcvt.s32.f32 %v1571
        %v1828 = vcvt.s32.f32 %v1572
        %v1829 = vcvt.s32.f32 %v1573
        %v1830 = vcvt.s32.f32 %v1574
        %v1831 = vcvt.s32.f32 %v1575
        %v1832 = vcvt.s32.f32 %v1576
        %v1833 = vcvt.s32.f32 %v1577
        %v1834 = vcvt.s32.f32 %v1578
        %v1835 = vcvt.s32.f32 %v1579
        %v1836 = vcvt.s32.f32 %v1580
        %v1837 = vcvt.s32.f32 %v1581
        %v1838 = vcvt.s32.f32 %v1582
        %v1839 = vcvt.s32.f32 %v1583
        %v1840 = vcvt.s32.f32 %v1584
        %v1841 = vcvt.s32.f32 %v1585
        %v1842 = vcvt.s32.f32 %v1586
        %v1843 = vcvt.s32.f32 %v1587
        %v1844 = vcvt.s32.f32 %v1588
        %v1845 = vcvt.s32.f32 %v1589
        %v1846 = vcvt.s32.f32 %v1590
        %v1847 = vcvt.s32.f32 %v1591
        %v1848 = vcvt.s32.f32 %v1592
        %v1849 = vcvt.s32.f32 %v1593
        %v1850 = vcvt.s32.f32 %v1594
        %v1851 = vcvt.s32.f32 %v1595
        %v1852 = vcvt.s32.f32 %v1596
        %v1853 = vcvt.s32.f32 %v1597
        %v1854 = vcvt.s32.f32 %v1598
        %v1855 = vcvt.s32.f32 %v1599
        %v1856 = vcvt.s32.f32 %v1600
        %v1857 = vcvt.s32.f32 %v1601
        %v1858 = vcvt.s32.f32 %v1602
        %v1859 = vcvt.s32.f32 %v1603
        %v1860 = vcvt.s32.f32 %v1604
        %v1861 = vcvt.s32.f32 %v1605
        %v1862 = vcvt.s32.f32 %v1606
        %v1863 = vcvt.s32.f32 %v1607
        %v1864 = vcvt.s32.f32 %v1608
        %v1865 = vcvt.s32.f32 %v1609
        %v1866 = vcvt.s32.f32 %v1610
        %v1867 = vcvt.s32.f32 %v1611
        %v1868 = vcvt.s32.f32 %v1612
        %v1869 = vcvt.s32.f32 %v1613
        %v1870 = vcvt.s32.f32 %v1614
        %v1871 = vcvt.s32.f32 %v1615
        %v1872 = vcvt.s32.f32 %v1616
        %v1873 = vcvt.s32.f32 %v1617
        %v1874 = vcvt.s32.f32 %v1618
        %v1875 = vcvt.s32.f32 %v1619
        %v1876 = vcvt.s32.f32 %v1620
        %v1877 = vcvt.s32.f32 %v1621
        %v1878 = vcvt.s32.f32 %v1622
        %v1879 = vcvt.s32.f32 %v1623
        %v1880 = vcvt.s32.f32 %v1624
        %v1881 = vcvt.s32.f32 %v1625
        %v1882 = vcvt.s32.f32 %v1626
        %v1883 = vcvt.s32.f32 %v1627
        %v1884 = vcvt.s32.f32 %v1628
        %v1885 = vcvt.s32.f32 %v1629
        %v1886 = vcvt.s32.f32 %v1630
        %v1887 = vcvt.s32.f32 %v1631
        %v1888 = vcvt.s32.f32 %v1632
        %v1889 = vcvt.s32.f32 %v1633
        %v1890 = vcvt.s32.f32 %v1634
        %v1891 = vcvt.s32.f32 %v1635
        %v1892 = vcvt.s32.f32 %v1636
        %v1893 = vcvt.s32.f32 %v1637
        %v1894 = vcvt.s32.f32 %v1638
        %v1895 = vcvt.s32.f32 %v1639
        %v1896 = vcvt.s32.f32 %v1640
        %v1897 = vcvt.s32.f32 %v1641
        %v1898 = vcvt.s32.f32 %v1642
        %v1899 = vcvt.s32.f32 %v1643
        %v1900 = vcvt.s32.f32 %v1644
        %v1901 = vcvt.s32.f32 %v1645
        %v1902 = vcvt.s32.f32 %v1646
        %v1903 = vcvt.s32.f32 %v1647
        %v1904 = vcvt.s32.f32 %v1648
        %v1905 = vcvt.s32.f32 %v1649
        %v1906 = vcvt.s32.f32 %v1650
        %v1907 = vcvt.s32.f32 %v1651
        %v1908 = vcvt.s32.f32 %v1652
        %v1909 = vcvt.s32.f32 %v1653
        %v1910 = vcvt.s32.f32 %v1654
        %v1911 = vcvt.s32.f32 %v1655
        %v1912 = vcvt.s32.f32 %v1656
        %v1913 = vcvt.s32.f32 %v1657
        %v1914 = vcvt.s32.f32 %v1658
        %v1915 = vcvt.s32.f32 %v1659
        %v1916 = vcvt.s32.f32 %v1660
        %v1917 = vcvt.s32.f32 %v1661
        %v1918 = vcvt.s32.f32 %v1662
        %v1919 = vcvt.s32.f32 %v1663
        %v1920 = vcvt.s32.f32 %v1664
        %v1921 = vcvt.s32.f32 %v1665
        %v1922 = vcvt.s32.f32 %v1666
        %v1923 = vcvt.s32.f32 %v1667
        %v1924 = vcvt.s32.f32 %v1668
        %v1925 = vcvt.s32.f32 %v1669
        %v1926 = vcvt.s32.f32 %v1670
        %v1927 = vcvt.s32.f32 %v1671
        %v1928 = vcvt.s32.f32 %v1672
        %v1929 = vcvt.s32.f32 %v1673
        %v1930 = vcvt.s32.f32 %v1674
        %v1931 = vcvt.s32.f32 %v1675
        %v1932 = vcvt.s32.f32 %v1676
        %v1933 = vcvt.s32.f32 %v1677
        %v1934 = vcvt.s32.f32 %v1678
        %v1935 = vcvt.s32.f32 %v1679
        %v1936 = vcvt.s32.f32 %v1680
        %v1937 = vcvt.s32.f32 %v1681
        %v1938 = vcvt.s32.f32 %v1682
        %v1939 = vcvt.s32.f32 %v1683
        %v1940 = vcvt.s32.f32 %v1684
        %v1941 = vcvt.s32.f32 %v1685
        %v1942 = vcvt.s32.f32 %v1686
        %v1943 = vcvt.s32.f32 %v1687
        %v1944 = vcvt.s32.f32 %v1688
        %v1945 = vcvt.s32.f32 %v1689
        %v1946 = vcvt.s32.f32 %v1690
        %v1947 = vcvt.s32.f32 %v1691
        %v1948 = vcvt.s32.f32 %v1692
        %v1949 = vcvt.s32.f32 %v1693
        %v1950 = vcvt.s32.f32 %v1694
        %v1951 = vcvt.s32.f32 %v1695
        %v1952 = vcvt.s32.f32 %v1696
        %v1953 = vcvt.s32.f32 %v1697
        %v1954 = vcvt.s32.f32 %v1698
        %v1955 = vcvt.s32.f32 %v1699
        %v1956 = vcvt.s32.f32 %v1700
        %v1957 = vcvt.s32.f32 %v1701
        %v1958 = vcvt.s32.f32 %v1702
        %v1959 = vcvt.s32.f32 %v1703
        %v1960 = vcvt.s32.f32 %v1704
        %v1961 = vcvt.s32.f32 %v1705
        %v1962 = vcvt.s32.f32 %v1706
        %v1963 = vcvt.s32.f32 %v1707
        %v1964 = vcvt.s32.f32 %v1708
        %v1965 = vcvt.s32.f32 %v1709
        %v1966 = vcvt.s32.f32 %v1710
        %v1967 = vcvt.s32.f32 %v1711
        %v1968 = vcvt.s32.f32 %v1712
        %v1969 = vcvt.s32.f32 %v1713
        %v1970 = vcvt.s32.f32 %v1714
        %v1971 = vcvt.s32.f32 %v1715
        %v1972 = vcvt.s32.f32 %v1716
        %v1973 = vcvt.s32.f32 %v1717
        %v1974 = vcvt.s32.f32 %v1718
        %v1975 = vcvt.s32.f32 %v1719
        %v1976 = vpack.c.bf16 %v1736, %v1720
        %v1977 = vpack.c.bf16 %v1737, %v1721
        %v1978 = vpack.c.bf16 %v1738, %v1722
        %v1979 = vpack.c.bf16 %v1739, %v1723
        %v1980 = vpack.c.bf16 %v1740, %v1724
        %v1981 = vpack.c.bf16 %v1741, %v1725
        %v1982 = vpack.c.bf16 %v1742, %v1726
        %v1983 = vpack.c.bf16 %v1743, %v1727
        %v1984 = vpack.c.bf16 %v1744, %v1728
        %v1985 = vpack.c.bf16 %v1745, %v1729
        %v1986 = vpack.c.bf16 %v1746, %v1730
        %v1987 = vpack.c.bf16 %v1747, %v1731
        %v1988 = vpack.c.bf16 %v1748, %v1732
        %v1989 = vpack.c.bf16 %v1749, %v1733
        %v1990 = vpack.c.bf16 %v1750, %v1734
        %v1991 = vpack.c.bf16 %v1751, %v1735
        %v1992 = vpack.c.bf16 %v1768, %v1752
        %v1993 = vpack.c.bf16 %v1769, %v1753
        %v1994 = vpack.c.bf16 %v1770, %v1754
        %v1995 = vpack.c.bf16 %v1771, %v1755
        %v1996 = vpack.c.bf16 %v1772, %v1756
        %v1997 = vpack.c.bf16 %v1773, %v1757
        %v1998 = vpack.c.bf16 %v1774, %v1758
        %v1999 = vpack.c.bf16 %v1775, %v1759
        %v2000 = vpack.c.bf16 %v1776, %v1760
        %v2001 = vpack.c.bf16 %v1777, %v1761
        %v2002 = vpack.c.bf16 %v1778, %v1762
        %v2003 = vpack.c.bf16 %v1779, %v1763
        %v2004 = vpack.c.bf16 %v1780, %v1764
        %v2005 = vpack.c.bf16 %v1781, %v1765
        %v2006 = vpack.c.bf16 %v1782, %v1766
        %v2007 = vpack.c.bf16 %v1783, %v1767
        %v2008 = vpack.c.bf16 %v1800, %v1784
        %v2009 = vpack.c.bf16 %v1801, %v1785
        %v2010 = vpack.c.bf16 %v1802, %v1786
        %v2011 = vpack.c.bf16 %v1803, %v1787
        %v2012 = vpack.c.bf16 %v1804, %v1788
        %v2013 = vpack.c.bf16 %v1805, %v1789
        %v2014 = vpack.c.bf16 %v1806, %v1790
        %v2015 = vpack.c.bf16 %v1807, %v1791
        %v2016 = vpack.c.bf16 %v1808, %v1792
        %v2017 = vpack.c.bf16 %v1809, %v1793
        %v2018 = vpack.c.bf16 %v1810, %v1794
        %v2019 = vpack.c.bf16 %v1811, %v1795
        %v2020 = vpack.c.bf16 %v1812, %v1796
        %v2021 = vpack.c.bf16 %v1813, %v1797
        %v2022 = vpack.c.bf16 %v1814, %v1798
        %v2023 = vpack.c.bf16 %v1815, %v1799
        %v2024 = vpack.c.bf16 %v1832, %v1816
        %v2025 = vpack.c.bf16 %v1833, %v1817
        %v2026 = vpack.c.bf16 %v1834, %v1818
        %v2027 = vpack.c.bf16 %v1835, %v1819
        %v2028 = vpack.c.bf16 %v1836, %v1820
        %v2029 = vpack.c.bf16 %v1837, %v1821
        %v2030 = vpack.c.bf16 %v1838, %v1822
        %v2031 = vpack.c.bf16 %v1839, %v1823
        %v2032 = vpack.c.bf16 %v1840, %v1824
        %v2033 = vpack.c.bf16 %v1841, %v1825
        %v2034 = vpack.c.bf16 %v1842, %v1826
        %v2035 = vpack.c.bf16 %v1843, %v1827
        %v2036 = vpack.c.bf16 %v1844, %v1828
        %v2037 = vpack.c.bf16 %v1845, %v1829
        %v2038 = vpack.c.bf16 %v1846, %v1830
        %v2039 = vpack.c.bf16 %v1847, %v1831
        %v2040 = vpack.c.bf16 %v1864, %v1848
        %v2041 = vpack.c.bf16 %v1865, %v1849
        %v2042 = vpack.c.bf16 %v1866, %v1850
        %v2043 = vpack.c.bf16 %v1867, %v1851
        %v2044 = vpack.c.bf16 %v1868, %v1852
        %v2045 = vpack.c.bf16 %v1869, %v1853
        %v2046 = vpack.c.bf16 %v1870, %v1854
        %v2047 = vpack.c.bf16 %v1871, %v1855
        %v2048 = vpack.c.bf16 %v1872, %v1856
        %v2049 = vpack.c.bf16 %v1873, %v1857
        %v2050 = vpack.c.bf16 %v1874, %v1858
        %v2051 = vpack.c.bf16 %v1875, %v1859
        %v2052 = vpack.c.bf16 %v1876, %v1860
        %v2053 = vpack.c.bf16 %v1877, %v1861
        %v2054 = vpack.c.bf16 %v1878, %v1862
        %v2055 = vpack.c.bf16 %v1879, %v1863
        %v2056 = vpack.c.bf16 %v1896, %v1880
        %v2057 = vpack.c.bf16 %v1897, %v1881
        %v2058 = vpack.c.bf16 %v1898, %v1882
        %v2059 = vpack.c.bf16 %v1899, %v1883
        %v2060 = vpack.c.bf16 %v1900, %v1884
        %v2061 = vpack.c.bf16 %v1901, %v1885
        %v2062 = vpack.c.bf16 %v1902, %v1886
        %v2063 = vpack.c.bf16 %v1903, %v1887
        %v2064 = vpack.c.bf16 %v1904, %v1888
        %v2065 = vpack.c.bf16 %v1905, %v1889
        %v2066 = vpack.c.bf16 %v1906, %v1890
        %v2067 = vpack.c.bf16 %v1907, %v1891
        %v2068 = vpack.c.bf16 %v1908, %v1892
        %v2069 = vpack.c.bf16 %v1909, %v1893
        %v2070 = vpack.c.bf16 %v1910, %v1894
        %v2071 = vpack.c.bf16 %v1911, %v1895
        %v2072 = vpack.c.bf16 %v1928, %v1912
        %v2073 = vpack.c.bf16 %v1929, %v1913
        %v2074 = vpack.c.bf16 %v1930, %v1914
        %v2075 = vpack.c.bf16 %v1931, %v1915
        %v2076 = vpack.c.bf16 %v1932, %v1916
        %v2077 = vpack.c.bf16 %v1933, %v1917
        %v2078 = vpack.c.bf16 %v1934, %v1918
        %v2079 = vpack.c.bf16 %v1935, %v1919
        %v2080 = vpack.c.bf16 %v1936, %v1920
        %v2081 = vpack.c.bf16 %v1937, %v1921
        %v2082 = vpack.c.bf16 %v1938, %v1922
        %v2083 = vpack.c.bf16 %v1939, %v1923
        %v2084 = vpack.c.bf16 %v1940, %v1924
        %v2085 = vpack.c.bf16 %v1941, %v1925
        %v2086 = vpack.c.bf16 %v1942, %v1926
        %v2087 = vpack.c.bf16 %v1943, %v1927
        %v2088 = vpack.c.bf16 %v1960, %v1944
        %v2089 = vpack.c.bf16 %v1961, %v1945
        %v2090 = vpack.c.bf16 %v1962, %v1946
        %v2091 = vpack.c.bf16 %v1963, %v1947
        %v2092 = vpack.c.bf16 %v1964, %v1948
        %v2093 = vpack.c.bf16 %v1965, %v1949
        %v2094 = vpack.c.bf16 %v1966, %v1950
        %v2095 = vpack.c.bf16 %v1967, %v1951
        %v2096 = vpack.c.bf16 %v1968, %v1952
        %v2097 = vpack.c.bf16 %v1969, %v1953
        %v2098 = vpack.c.bf16 %v1970, %v1954
        %v2099 = vpack.c.bf16 %v1971, %v1955
        %v2100 = vpack.c.bf16 %v1972, %v1956
        %v2101 = vpack.c.bf16 %v1973, %v1957
        %v2102 = vpack.c.bf16 %v1974, %v1958
        %v2103 = vpack.c.bf16 %v1975, %v1959
        %v2104 = vld [vmem:[%s1] sm:$0xf]
        %v2105 = vld [vmem:[%s1 + $0x4] sm:$0xf]
        %v2106 = vld [vmem:[%s1 + $0x8] sm:$0xf]
        %v2107 = vld [vmem:[%s1 + $0xc] sm:$0xf]
        %v2112 = vunpack.c.l.b16 %v2104
        %v2113 = vunpack.c.l.b16 %v2105
        %v2114 = vunpack.c.l.b16 %v2106
        %v2115 = vunpack.c.l.b16 %v2107
        %v2116 = vpack.c.b16 %v2113, %v2112
        %v2117 = vpack.c.b16 %v2115, %v2114
        %2120 = vmatpush.bf16.msra.mxu0 %v1160
        %2121 = vmatpush.bf16.msra.mxu0 %v1144
        %2122 = vmatpush.bf16.msra.mxu0 %v1128
        %2123 = vmatpush.bf16.msra.mxu0 %v1112
        %2124 = vmatpush.bf16.msra.mxu0 %v1096
        %2125 = vmatpush.bf16.msra.mxu0 %v1080
        %2126 = vmatpush.bf16.msra.mxu0 %v1064
        %2127 = vmatpush.bf16.msra.mxu0 %v1048
        %2128 = vmatmul.bf16.gmra.mxu0 %v2116
        %v2129 = vpop.f32.mrf.mxu0
        %v2130 = vadd.f32 0.0, %v2129
        %v2131 = vpop.f32.mrf.mxu0
        %v2132 = vadd.f32 0.0, %v2131
        %2133 = vmatmul.bf16.gmra.mxu0 %v2117
        %v2134 = vpop.f32.mrf.mxu0
        %v2135 = vadd.f32 0.0, %v2134
        %v2136 = vpop.f32.mrf.mxu0
        %v2137 = vadd.f32 0.0, %v2136
        %2138 = vdwg.mxu0
        %2139 = vmatpush.bf16.msra.mxu0 %v1161
        %2140 = vmatpush.bf16.msra.mxu0 %v1145
        %2141 = vmatpush.bf16.msra.mxu0 %v1129
        %2142 = vmatpush.bf16.msra.mxu0 %v1113
        %2143 = vmatpush.bf16.msra.mxu0 %v1097
        %2144 = vmatpush.bf16.msra.mxu0 %v1081
        %2145 = vmatpush.bf16.msra.mxu0 %v1065
        %2146 = vmatpush.bf16.msra.mxu0 %v1049
        %2147 = vmatmul.bf16.gmra.mxu0 %v2116
        %v2148 = vpop.f32.mrf.mxu0
        %v2149 = vadd.f32 0.0, %v2148
        %v2150 = vpop.f32.mrf.mxu0
        %v2151 = vadd.f32 0.0, %v2150
        %2152 = vmatmul.bf16.gmra.mxu0 %v2117
        %v2153 = vpop.f32.mrf.mxu0
        %v2154 = vadd.f32 0.0, %v2153
        %v2155 = vpop.f32.mrf.mxu0
        %v2156 = vadd.f32 0.0, %v2155
        %2157 = vdwg.mxu0
        %2158 = vmatpush.bf16.msra.mxu0 %v1162
        %2159 = vmatpush.bf16.msra.mxu0 %v1146
        %2160 = vmatpush.bf16.msra.mxu0 %v1130
        %2161 = vmatpush.bf16.msra.mxu0 %v1114
        %2162 = vmatpush.bf16.msra.mxu0 %v1098
        %2163 = vmatpush.bf16.msra.mxu0 %v1082
        %2164 = vmatpush.bf16.msra.mxu0 %v1066
        %2165 = vmatpush.bf16.msra.mxu0 %v1050
        %2166 = vmatmul.bf16.gmra.mxu0 %v2116
        %v2167 = vpop.f32.mrf.mxu0
        %v2168 = vadd.f32 0.0, %v2167
        %v2169 = vpop.f32.mrf.mxu0
        %v2170 = vadd.f32 0.0, %v2169
        %2171 = vmatmul.bf16.gmra.mxu0 %v2117
        %v2172 = vpop.f32.mrf.mxu0
        %v2173 = vadd.f32 0.0, %v2172
        %v2174 = vpop.f32.mrf.mxu0
        %v2175 = vadd.f32 0.0, %v2174
        %2176 = vdwg.mxu0
        %2177 = vmatpush.bf16.msra.mxu0 %v1163
        %2178 = vmatpush.bf16.msra.mxu0 %v1147
        %2179 = vmatpush.bf16.msra.mxu0 %v1131
        %2180 = vmatpush.bf16.msra.mxu0 %v1115
        %2181 = vmatpush.bf16.msra.mxu0 %v1099
        %2182 = vmatpush.bf16.msra.mxu0 %v1083
        %2183 = vmatpush.bf16.msra.mxu0 %v1067
        %2184 = vmatpush.bf16.msra.mxu0 %v1051
        %2185 = vmatmul.bf16.gmra.mxu0 %v2116
        %v2186 = vpop.f32.mrf.mxu0
        %v2187 = vadd.f32 0.0, %v2186
        %v2188 = vpop.f32.mrf.mxu0
        %v2189 = vadd.f32 0.0, %v2188
        %2190 = vmatmul.bf16.gmra.mxu0 %v2117
        %v2191 = vpop.f32.mrf.mxu0
        %v2192 = vadd.f32 0.0, %v2191
        %v2193 = vpop.f32.mrf.mxu0
        %v2194 = vadd.f32 0.0, %v2193
        %2195 = vdwg.mxu0
        %2196 = vmatpush.bf16.msra.mxu0 %v1164
        %2197 = vmatpush.bf16.msra.mxu0 %v1148
        %2198 = vmatpush.bf16.msra.mxu0 %v1132
        %2199 = vmatpush.bf16.msra.mxu0 %v1116
        %2200 = vmatpush.bf16.msra.mxu0 %v1100
        %2201 = vmatpush.bf16.msra.mxu0 %v1084
        %2202 = vmatpush.bf16.msra.mxu0 %v1068
        %2203 = vmatpush.bf16.msra.mxu0 %v1052
        %2204 = vmatmul.bf16.gmra.mxu0 %v2116
        %v2205 = vpop.f32.mrf.mxu0
        %v2206 = vadd.f32 0.0, %v2205
        %v2207 = vpop.f32.mrf.mxu0
        %v2208 = vadd.f32 0.0, %v2207
        %2209 = vmatmul.bf16.gmra.mxu0 %v2117
        %v2210 = vpop.f32.mrf.mxu0
        %v2211 = vadd.f32 0.0, %v2210
        %v2212 = vpop.f32.mrf.mxu0
        %v2213 = vadd.f32 0.0, %v2212
        %2214 = vdwg.mxu0
        %2215 = vmatpush.bf16.msra.mxu0 %v1165
        %2216 = vmatpush.bf16.msra.mxu0 %v1149
        %2217 = vmatpush.bf16.msra.mxu0 %v1133
        %2218 = vmatpush.bf16.msra.mxu0 %v1117
        %2219 = vmatpush.bf16.msra.mxu0 %v1101
        %2220 = vmatpush.bf16.msra.mxu0 %v1085
        %2221 = vmatpush.bf16.msra.mxu0 %v1069
        %2222 = vmatpush.bf16.msra.mxu0 %v1053
        %2223 = vmatmul.bf16.gmra.mxu0 %v2116
        %v2224 = vpop.f32.mrf.mxu0
        %v2225 = vadd.f32 0.0, %v2224
        %v2226 = vpop.f32.mrf.mxu0
        %v2227 = vadd.f32 0.0, %v2226
        %2228 = vmatmul.bf16.gmra.mxu0 %v2117
        %v2229 = vpop.f32.mrf.mxu0
        %v2230 = vadd.f32 0.0, %v2229
        %v2231 = vpop.f32.mrf.mxu0
        %v2232 = vadd.f32 0.0, %v2231
        %2233 = vdwg.mxu0
        %2234 = vmatpush.bf16.msra.mxu0 %v1166
        %2235 = vmatpush.bf16.msra.mxu0 %v1150
        %2236 = vmatpush.bf16.msra.mxu0 %v1134
        %2237 = vmatpush.bf16.msra.mxu0 %v1118
        %2238 = vmatpush.bf16.msra.mxu0 %v1102
        %2239 = vmatpush.bf16.msra.mxu0 %v1086
        %2240 = vmatpush.bf16.msra.mxu0 %v1070
        %2241 = vmatpush.bf16.msra.mxu0 %v1054
        %2242 = vmatmul.bf16.gmra.mxu0 %v2116
        %v2243 = vpop.f32.mrf.mxu0
        %v2244 = vadd.f32 0.0, %v2243
        %v2245 = vpop.f32.mrf.mxu0
        %v2246 = vadd.f32 0.0, %v2245
        %2247 = vmatmul.bf16.gmra.mxu0 %v2117
        %v2248 = vpop.f32.mrf.mxu0
        %v2249 = vadd.f32 0.0, %v2248
        %v2250 = vpop.f32.mrf.mxu0
        %v2251 = vadd.f32 0.0, %v2250
        %2252 = vdwg.mxu0
        %2253 = vmatpush.bf16.msra.mxu0 %v1167
        %2254 = vmatpush.bf16.msra.mxu0 %v1151
        %2255 = vmatpush.bf16.msra.mxu0 %v1135
        %2256 = vmatpush.bf16.msra.mxu0 %v1119
        %2257 = vmatpush.bf16.msra.mxu0 %v1103
        %2258 = vmatpush.bf16.msra.mxu0 %v1087
        %2259 = vmatpush.bf16.msra.mxu0 %v1071
        %2260 = vmatpush.bf16.msra.mxu0 %v1055
        %2261 = vmatmul.bf16.gmra.mxu0 %v2116
        %v2262 = vpop.f32.mrf.mxu0
        %v2263 = vadd.f32 0.0, %v2262
        %v2264 = vpop.f32.mrf.mxu0
        %v2265 = vadd.f32 0.0, %v2264
        %2266 = vmatmul.bf16.gmra.mxu0 %v2117
        %v2267 = vpop.f32.mrf.mxu0
        %v2268 = vadd.f32 0.0, %v2267
        %v2269 = vpop.f32.mrf.mxu0
        %v2270 = vadd.f32 0.0, %v2269
        %2271 = vdwg.mxu0
        %2272 = vmatpush.bf16.msra.mxu0 %v1168
        %2273 = vmatpush.bf16.msra.mxu0 %v1152
        %2274 = vmatpush.bf16.msra.mxu0 %v1136
        %2275 = vmatpush.bf16.msra.mxu0 %v1120
        %2276 = vmatpush.bf16.msra.mxu0 %v1104
        %2277 = vmatpush.bf16.msra.mxu0 %v1088
        %2278 = vmatpush.bf16.msra.mxu0 %v1072
        %2279 = vmatpush.bf16.msra.mxu0 %v1056
        %2280 = vmatmul.bf16.gmra.mxu0 %v2116
        %v2281 = vpop.f32.mrf.mxu0
        %v2282 = vadd.f32 0.0, %v2281
        %v2283 = vpop.f32.mrf.mxu0
        %v2284 = vadd.f32 0.0, %v2283
        %2285 = vmatmul.bf16.gmra.mxu0 %v2117
        %v2286 = vpop.f32.mrf.mxu0
        %v2287 = vadd.f32 0.0, %v2286
        %v2288 = vpop.f32.mrf.mxu0
        %v2289 = vadd.f32 0.0, %v2288
        %2290 = vdwg.mxu0
        %2291 = vmatpush.bf16.msra.mxu0 %v1169
        %2292 = vmatpush.bf16.msra.mxu0 %v1153
        %2293 = vmatpush.bf16.msra.mxu0 %v1137
        %2294 = vmatpush.bf16.msra.mxu0 %v1121
        %2295 = vmatpush.bf16.msra.mxu0 %v1105
        %2296 = vmatpush.bf16.msra.mxu0 %v1089
        %2297 = vmatpush.bf16.msra.mxu0 %v1073
        %2298 = vmatpush.bf16.msra.mxu0 %v1057
        %2299 = vmatmul.bf16.gmra.mxu0 %v2116
        %v2300 = vpop.f32.mrf.mxu0
        %v2301 = vadd.f32 0.0, %v2300
        %v2302 = vpop.f32.mrf.mxu0
        %v2303 = vadd.f32 0.0, %v2302
        %2304 = vmatmul.bf16.gmra.mxu0 %v2117
        %v2305 = vpop.f32.mrf.mxu0
        %v2306 = vadd.f32 0.0, %v2305
        %v2307 = vpop.f32.mrf.mxu0
        %v2308 = vadd.f32 0.0, %v2307
        %2309 = vdwg.mxu0
        %2310 = vmatpush.bf16.msra.mxu0 %v1170
        %2311 = vmatpush.bf16.msra.mxu0 %v1154
        %2312 = vmatpush.bf16.msra.mxu0 %v1138
        %2313 = vmatpush.bf16.msra.mxu0 %v1122
        %2314 = vmatpush.bf16.msra.mxu0 %v1106
        %2315 = vmatpush.bf16.msra.mxu0 %v1090
        %2316 = vmatpush.bf16.msra.mxu0 %v1074
        %2317 = vmatpush.bf16.msra.mxu0 %v1058
        %2318 = vmatmul.bf16.gmra.mxu0 %v2116
        %v2319 = vpop.f32.mrf.mxu0
        %v2320 = vadd.f32 0.0, %v2319
        %v2321 = vpop.f32.mrf.mxu0
        %v2322 = vadd.f32 0.0, %v2321
        %2323 = vmatmul.bf16.gmra.mxu0 %v2117
        %v2324 = vpop.f32.mrf.mxu0
        %v2325 = vadd.f32 0.0, %v2324
        %v2326 = vpop.f32.mrf.mxu0
        %v2327 = vadd.f32 0.0, %v2326
        %2328 = vdwg.mxu0
        %2329 = vmatpush.bf16.msra.mxu0 %v1171
        %2330 = vmatpush.bf16.msra.mxu0 %v1155
        %2331 = vmatpush.bf16.msra.mxu0 %v1139
        %2332 = vmatpush.bf16.msra.mxu0 %v1123
        %2333 = vmatpush.bf16.msra.mxu0 %v1107
        %2334 = vmatpush.bf16.msra.mxu0 %v1091
        %2335 = vmatpush.bf16.msra.mxu0 %v1075
        %2336 = vmatpush.bf16.msra.mxu0 %v1059
        %2337 = vmatmul.bf16.gmra.mxu0 %v2116
        %v2338 = vpop.f32.mrf.mxu0
        %v2339 = vadd.f32 0.0, %v2338
        %v2340 = vpop.f32.mrf.mxu0
        %v2341 = vadd.f32 0.0, %v2340
        %2342 = vmatmul.bf16.gmra.mxu0 %v2117
        %v2343 = vpop.f32.mrf.mxu0
        %v2344 = vadd.f32 0.0, %v2343
        %v2345 = vpop.f32.mrf.mxu0
        %v2346 = vadd.f32 0.0, %v2345
        %2347 = vdwg.mxu0
        %2348 = vmatpush.bf16.msra.mxu0 %v1172
        %2349 = vmatpush.bf16.msra.mxu0 %v1156
        %2350 = vmatpush.bf16.msra.mxu0 %v1140
        %2351 = vmatpush.bf16.msra.mxu0 %v1124
        %2352 = vmatpush.bf16.msra.mxu0 %v1108
        %2353 = vmatpush.bf16.msra.mxu0 %v1092
        %2354 = vmatpush.bf16.msra.mxu0 %v1076
        %2355 = vmatpush.bf16.msra.mxu0 %v1060
        %2356 = vmatmul.bf16.gmra.mxu0 %v2116
        %v2357 = vpop.f32.mrf.mxu0
        %v2358 = vadd.f32 0.0, %v2357
        %v2359 = vpop.f32.mrf.mxu0
        %v2360 = vadd.f32 0.0, %v2359
        %2361 = vmatmul.bf16.gmra.mxu0 %v2117
        %v2362 = vpop.f32.mrf.mxu0
        %v2363 = vadd.f32 0.0, %v2362
        %v2364 = vpop.f32.mrf.mxu0
        %v2365 = vadd.f32 0.0, %v2364
        %2366 = vdwg.mxu0
        %2367 = vmatpush.bf16.msra.mxu0 %v1173
        %2368 = vmatpush.bf16.msra.mxu0 %v1157
        %2369 = vmatpush.bf16.msra.mxu0 %v1141
        %2370 = vmatpush.bf16.msra.mxu0 %v1125
        %2371 = vmatpush.bf16.msra.mxu0 %v1109
        %2372 = vmatpush.bf16.msra.mxu0 %v1093
        %2373 = vmatpush.bf16.msra.mxu0 %v1077
        %2374 = vmatpush.bf16.msra.mxu0 %v1061
        %2375 = vmatmul.bf16.gmra.mxu0 %v2116
        %v2376 = vpop.f32.mrf.mxu0
        %v2377 = vadd.f32 0.0, %v2376
        %v2378 = vpop.f32.mrf.mxu0
        %v2379 = vadd.f32 0.0, %v2378
        %2380 = vmatmul.bf16.gmra.mxu0 %v2117
        %v2381 = vpop.f32.mrf.mxu0
        %v2382 = vadd.f32 0.0, %v2381
        %v2383 = vpop.f32.mrf.mxu0
        %v2384 = vadd.f32 0.0, %v2383
        %2385 = vdwg.mxu0
        %2386 = vmatpush.bf16.msra.mxu0 %v1174
        %2387 = vmatpush.bf16.msra.mxu0 %v1158
        %2388 = vmatpush.bf16.msra.mxu0 %v1142
        %2389 = vmatpush.bf16.msra.mxu0 %v1126
        %2390 = vmatpush.bf16.msra.mxu0 %v1110
        %2391 = vmatpush.bf16.msra.mxu0 %v1094
        %2392 = vmatpush.bf16.msra.mxu0 %v1078
        %2393 = vmatpush.bf16.msra.mxu0 %v1062
        %2394 = vmatmul.bf16.gmra.mxu0 %v2116
        %v2395 = vpop.f32.mrf.mxu0
        %v2396 = vadd.f32 0.0, %v2395
        %v2397 = vpop.f32.mrf.mxu0
        %v2398 = vadd.f32 0.0, %v2397
        %2399 = vmatmul.bf16.gmra.mxu0 %v2117
        %v2400 = vpop.f32.mrf.mxu0
        %v2401 = vadd.f32 0.0, %v2400
        %v2402 = vpop.f32.mrf.mxu0
        %v2403 = vadd.f32 0.0, %v2402
        %2404 = vdwg.mxu0
        %2405 = vmatpush.bf16.msra.mxu0 %v1175
        %2406 = vmatpush.bf16.msra.mxu0 %v1159
        %2407 = vmatpush.bf16.msra.mxu0 %v1143
        %2408 = vmatpush.bf16.msra.mxu0 %v1127
        %2409 = vmatpush.bf16.msra.mxu0 %v1111
        %2410 = vmatpush.bf16.msra.mxu0 %v1095
        %2411 = vmatpush.bf16.msra.mxu0 %v1079
        %2412 = vmatpush.bf16.msra.mxu0 %v1063
        %2413 = vmatmul.bf16.gmra.mxu0 %v2116
        %v2414 = vpop.f32.mrf.mxu0
        %v2415 = vadd.f32 0.0, %v2414
        %v2416 = vpop.f32.mrf.mxu0
        %v2417 = vadd.f32 0.0, %v2416
        %2418 = vmatmul.bf16.gmra.mxu0 %v2117
        %v2419 = vpop.f32.mrf.mxu0
        %v2420 = vadd.f32 0.0, %v2419
        %v2421 = vpop.f32.mrf.mxu0
        %v2422 = vadd.f32 0.0, %v2421
        %2423 = vdwg.mxu0
        %v2424 = vld [vmem:[%s2] sm:$0xf]
        %v2425 = vld [vmem:[%s2 + $0x4] sm:$0xf]
        %v2426 = vld [vmem:[%s2 + $0x8] sm:$0xf]
        %v2427 = vld [vmem:[%s2 + $0xc] sm:$0xf]
        %v2432 = vunpack.c.l.b16 %v2424
        %v2433 = vunpack.c.l.b16 %v2425
        %v2434 = vunpack.c.l.b16 %v2426
        %v2435 = vunpack.c.l.b16 %v2427
        %v2436 = vpack.c.b16 %v2433, %v2432
        %v2437 = vpack.c.b16 %v2435, %v2434
        %2440 = vmatpush.bf16.msra.mxu0 %v2088
        %2441 = vmatpush.bf16.msra.mxu0 %v2072
        %2442 = vmatpush.bf16.msra.mxu0 %v2056
        %2443 = vmatpush.bf16.msra.mxu0 %v2040
        %2444 = vmatpush.bf16.msra.mxu0 %v2024
        %2445 = vmatpush.bf16.msra.mxu0 %v2008
        %2446 = vmatpush.bf16.msra.mxu0 %v1992
        %2447 = vmatpush.bf16.msra.mxu0 %v1976
        %2448 = vmatmul.bf16.gmra.mxu0 %v2436
        %v2449 = vpop.f32.mrf.mxu0
        %v2450 = vadd.f32 0.0, %v2449
        %v2451 = vpop.f32.mrf.mxu0
        %v2452 = vadd.f32 0.0, %v2451
        %2453 = vmatmul.bf16.gmra.mxu0 %v2437
        %v2454 = vpop.f32.mrf.mxu0
        %v2455 = vadd.f32 0.0, %v2454
        %v2456 = vpop.f32.mrf.mxu0
        %v2457 = vadd.f32 0.0, %v2456
        %2458 = vdwg.mxu0
        %2459 = vmatpush.bf16.msra.mxu0 %v2089
        %2460 = vmatpush.bf16.msra.mxu0 %v2073
        %2461 = vmatpush.bf16.msra.mxu0 %v2057
        %2462 = vmatpush.bf16.msra.mxu0 %v2041
        %2463 = vmatpush.bf16.msra.mxu0 %v2025
        %2464 = vmatpush.bf16.msra.mxu0 %v2009
        %2465 = vmatpush.bf16.msra.mxu0 %v1993
        %2466 = vmatpush.bf16.msra.mxu0 %v1977
        %2467 = vmatmul.bf16.gmra.mxu0 %v2436
        %v2468 = vpop.f32.mrf.mxu0
        %v2469 = vadd.f32 0.0, %v2468
        %v2470 = vpop.f32.mrf.mxu0
        %v2471 = vadd.f32 0.0, %v2470
        %2472 = vmatmul.bf16.gmra.mxu0 %v2437
        %v2473 = vpop.f32.mrf.mxu0
        %v2474 = vadd.f32 0.0, %v2473
        %v2475 = vpop.f32.mrf.mxu0
        %v2476 = vadd.f32 0.0, %v2475
        %2477 = vdwg.mxu0
        %2478 = vmatpush.bf16.msra.mxu0 %v2090
        %2479 = vmatpush.bf16.msra.mxu0 %v2074
        %2480 = vmatpush.bf16.msra.mxu0 %v2058
        %2481 = vmatpush.bf16.msra.mxu0 %v2042
        %2482 = vmatpush.bf16.msra.mxu0 %v2026
        %2483 = vmatpush.bf16.msra.mxu0 %v2010
        %2484 = vmatpush.bf16.msra.mxu0 %v1994
        %2485 = vmatpush.bf16.msra.mxu0 %v1978
        %2486 = vmatmul.bf16.gmra.mxu0 %v2436
        %v2487 = vpop.f32.mrf.mxu0
        %v2488 = vadd.f32 0.0, %v2487
        %v2489 = vpop.f32.mrf.mxu0
        %v2490 = vadd.f32 0.0, %v2489
        %2491 = vmatmul.bf16.gmra.mxu0 %v2437
        %v2492 = vpop.f32.mrf.mxu0
        %v2493 = vadd.f32 0.0, %v2492
        %v2494 = vpop.f32.mrf.mxu0
        %v2495 = vadd.f32 0.0, %v2494
        %2496 = vdwg.mxu0
        %2497 = vmatpush.bf16.msra.mxu0 %v2091
        %2498 = vmatpush.bf16.msra.mxu0 %v2075
        %2499 = vmatpush.bf16.msra.mxu0 %v2059
        %2500 = vmatpush.bf16.msra.mxu0 %v2043
        %2501 = vmatpush.bf16.msra.mxu0 %v2027
        %2502 = vmatpush.bf16.msra.mxu0 %v2011
        %2503 = vmatpush.bf16.msra.mxu0 %v1995
        %2504 = vmatpush.bf16.msra.mxu0 %v1979
        %2505 = vmatmul.bf16.gmra.mxu0 %v2436
        %v2506 = vpop.f32.mrf.mxu0
        %v2507 = vadd.f32 0.0, %v2506
        %v2508 = vpop.f32.mrf.mxu0
        %v2509 = vadd.f32 0.0, %v2508
        %2510 = vmatmul.bf16.gmra.mxu0 %v2437
        %v2511 = vpop.f32.mrf.mxu0
        %v2512 = vadd.f32 0.0, %v2511
        %v2513 = vpop.f32.mrf.mxu0
        %v2514 = vadd.f32 0.0, %v2513
        %2515 = vdwg.mxu0
        %2516 = vmatpush.bf16.msra.mxu0 %v2092
        %2517 = vmatpush.bf16.msra.mxu0 %v2076
        %2518 = vmatpush.bf16.msra.mxu0 %v2060
        %2519 = vmatpush.bf16.msra.mxu0 %v2044
        %2520 = vmatpush.bf16.msra.mxu0 %v2028
        %2521 = vmatpush.bf16.msra.mxu0 %v2012
        %2522 = vmatpush.bf16.msra.mxu0 %v1996
        %2523 = vmatpush.bf16.msra.mxu0 %v1980
        %2524 = vmatmul.bf16.gmra.mxu0 %v2436
        %v2525 = vpop.f32.mrf.mxu0
        %v2526 = vadd.f32 0.0, %v2525
        %v2527 = vpop.f32.mrf.mxu0
        %v2528 = vadd.f32 0.0, %v2527
        %2529 = vmatmul.bf16.gmra.mxu0 %v2437
        %v2530 = vpop.f32.mrf.mxu0
        %v2531 = vadd.f32 0.0, %v2530
        %v2532 = vpop.f32.mrf.mxu0
        %v2533 = vadd.f32 0.0, %v2532
        %2534 = vdwg.mxu0
        %2535 = vmatpush.bf16.msra.mxu0 %v2093
        %2536 = vmatpush.bf16.msra.mxu0 %v2077
        %2537 = vmatpush.bf16.msra.mxu0 %v2061
        %2538 = vmatpush.bf16.msra.mxu0 %v2045
        %2539 = vmatpush.bf16.msra.mxu0 %v2029
        %2540 = vmatpush.bf16.msra.mxu0 %v2013
        %2541 = vmatpush.bf16.msra.mxu0 %v1997
        %2542 = vmatpush.bf16.msra.mxu0 %v1981
        %2543 = vmatmul.bf16.gmra.mxu0 %v2436
        %v2544 = vpop.f32.mrf.mxu0
        %v2545 = vadd.f32 0.0, %v2544
        %v2546 = vpop.f32.mrf.mxu0
        %v2547 = vadd.f32 0.0, %v2546
        %2548 = vmatmul.bf16.gmra.mxu0 %v2437
        %v2549 = vpop.f32.mrf.mxu0
        %v2550 = vadd.f32 0.0, %v2549
        %v2551 = vpop.f32.mrf.mxu0
        %v2552 = vadd.f32 0.0, %v2551
        %2553 = vdwg.mxu0
        %2554 = vmatpush.bf16.msra.mxu0 %v2094
        %2555 = vmatpush.bf16.msra.mxu0 %v2078
        %2556 = vmatpush.bf16.msra.mxu0 %v2062
        %2557 = vmatpush.bf16.msra.mxu0 %v2046
        %2558 = vmatpush.bf16.msra.mxu0 %v2030
        %2559 = vmatpush.bf16.msra.mxu0 %v2014
        %2560 = vmatpush.bf16.msra.mxu0 %v1998
        %2561 = vmatpush.bf16.msra.mxu0 %v1982
        %2562 = vmatmul.bf16.gmra.mxu0 %v2436
        %v2563 = vpop.f32.mrf.mxu0
        %v2564 = vadd.f32 0.0, %v2563
        %v2565 = vpop.f32.mrf.mxu0
        %v2566 = vadd.f32 0.0, %v2565
        %2567 = vmatmul.bf16.gmra.mxu0 %v2437
        %v2568 = vpop.f32.mrf.mxu0
        %v2569 = vadd.f32 0.0, %v2568
        %v2570 = vpop.f32.mrf.mxu0
        %v2571 = vadd.f32 0.0, %v2570
        %2572 = vdwg.mxu0
        %2573 = vmatpush.bf16.msra.mxu0 %v2095
        %2574 = vmatpush.bf16.msra.mxu0 %v2079
        %2575 = vmatpush.bf16.msra.mxu0 %v2063
        %2576 = vmatpush.bf16.msra.mxu0 %v2047
        %2577 = vmatpush.bf16.msra.mxu0 %v2031
        %2578 = vmatpush.bf16.msra.mxu0 %v2015
        %2579 = vmatpush.bf16.msra.mxu0 %v1999
        %2580 = vmatpush.bf16.msra.mxu0 %v1983
        %2581 = vmatmul.bf16.gmra.mxu0 %v2436
        %v2582 = vpop.f32.mrf.mxu0
        %v2583 = vadd.f32 0.0, %v2582
        %v2584 = vpop.f32.mrf.mxu0
        %v2585 = vadd.f32 0.0, %v2584
        %2586 = vmatmul.bf16.gmra.mxu0 %v2437
        %v2587 = vpop.f32.mrf.mxu0
        %v2588 = vadd.f32 0.0, %v2587
        %v2589 = vpop.f32.mrf.mxu0
        %v2590 = vadd.f32 0.0, %v2589
        %2591 = vdwg.mxu0
        %2592 = vmatpush.bf16.msra.mxu0 %v2096
        %2593 = vmatpush.bf16.msra.mxu0 %v2080
        %2594 = vmatpush.bf16.msra.mxu0 %v2064
        %2595 = vmatpush.bf16.msra.mxu0 %v2048
        %2596 = vmatpush.bf16.msra.mxu0 %v2032
        %2597 = vmatpush.bf16.msra.mxu0 %v2016
        %2598 = vmatpush.bf16.msra.mxu0 %v2000
        %2599 = vmatpush.bf16.msra.mxu0 %v1984
        %2600 = vmatmul.bf16.gmra.mxu0 %v2436
        %v2601 = vpop.f32.mrf.mxu0
        %v2602 = vadd.f32 0.0, %v2601
        %v2603 = vpop.f32.mrf.mxu0
        %v2604 = vadd.f32 0.0, %v2603
        %2605 = vmatmul.bf16.gmra.mxu0 %v2437
        %v2606 = vpop.f32.mrf.mxu0
        %v2607 = vadd.f32 0.0, %v2606
        %v2608 = vpop.f32.mrf.mxu0
        %v2609 = vadd.f32 0.0, %v2608
        %2610 = vdwg.mxu0
        %2611 = vmatpush.bf16.msra.mxu0 %v2097
        %2612 = vmatpush.bf16.msra.mxu0 %v2081
        %2613 = vmatpush.bf16.msra.mxu0 %v2065
        %2614 = vmatpush.bf16.msra.mxu0 %v2049
        %2615 = vmatpush.bf16.msra.mxu0 %v2033
        %2616 = vmatpush.bf16.msra.mxu0 %v2017
        %2617 = vmatpush.bf16.msra.mxu0 %v2001
        %2618 = vmatpush.bf16.msra.mxu0 %v1985
        %2619 = vmatmul.bf16.gmra.mxu0 %v2436
        %v2620 = vpop.f32.mrf.mxu0
        %v2621 = vadd.f32 0.0, %v2620
        %v2622 = vpop.f32.mrf.mxu0
        %v2623 = vadd.f32 0.0, %v2622
        %2624 = vmatmul.bf16.gmra.mxu0 %v2437
        %v2625 = vpop.f32.mrf.mxu0
        %v2626 = vadd.f32 0.0, %v2625
        %v2627 = vpop.f32.mrf.mxu0
        %v2628 = vadd.f32 0.0, %v2627
        %2629 = vdwg.mxu0
        %2630 = vmatpush.bf16.msra.mxu0 %v2098
        %2631 = vmatpush.bf16.msra.mxu0 %v2082
        %2632 = vmatpush.bf16.msra.mxu0 %v2066
        %2633 = vmatpush.bf16.msra.mxu0 %v2050
        %2634 = vmatpush.bf16.msra.mxu0 %v2034
        %2635 = vmatpush.bf16.msra.mxu0 %v2018
        %2636 = vmatpush.bf16.msra.mxu0 %v2002
        %2637 = vmatpush.bf16.msra.mxu0 %v1986
        %2638 = vmatmul.bf16.gmra.mxu0 %v2436
        %v2639 = vpop.f32.mrf.mxu0
        %v2640 = vadd.f32 0.0, %v2639
        %v2641 = vpop.f32.mrf.mxu0
        %v2642 = vadd.f32 0.0, %v2641
        %2643 = vmatmul.bf16.gmra.mxu0 %v2437
        %v2644 = vpop.f32.mrf.mxu0
        %v2645 = vadd.f32 0.0, %v2644
        %v2646 = vpop.f32.mrf.mxu0
        %v2647 = vadd.f32 0.0, %v2646
        %2648 = vdwg.mxu0
        %2649 = vmatpush.bf16.msra.mxu0 %v2099
        %2650 = vmatpush.bf16.msra.mxu0 %v2083
        %2651 = vmatpush.bf16.msra.mxu0 %v2067
        %2652 = vmatpush.bf16.msra.mxu0 %v2051
        %2653 = vmatpush.bf16.msra.mxu0 %v2035
        %2654 = vmatpush.bf16.msra.mxu0 %v2019
        %2655 = vmatpush.bf16.msra.mxu0 %v2003
        %2656 = vmatpush.bf16.msra.mxu0 %v1987
        %2657 = vmatmul.bf16.gmra.mxu0 %v2436
        %v2658 = vpop.f32.mrf.mxu0
        %v2659 = vadd.f32 0.0, %v2658
        %v2660 = vpop.f32.mrf.mxu0
        %v2661 = vadd.f32 0.0, %v2660
        %2662 = vmatmul.bf16.gmra.mxu0 %v2437
        %v2663 = vpop.f32.mrf.mxu0
        %v2664 = vadd.f32 0.0, %v2663
        %v2665 = vpop.f32.mrf.mxu0
        %v2666 = vadd.f32 0.0, %v2665
        %2667 = vdwg.mxu0
        %2668 = vmatpush.bf16.msra.mxu0 %v2100
        %2669 = vmatpush.bf16.msra.mxu0 %v2084
        %2670 = vmatpush.bf16.msra.mxu0 %v2068
        %2671 = vmatpush.bf16.msra.mxu0 %v2052
        %2672 = vmatpush.bf16.msra.mxu0 %v2036
        %2673 = vmatpush.bf16.msra.mxu0 %v2020
        %2674 = vmatpush.bf16.msra.mxu0 %v2004
        %2675 = vmatpush.bf16.msra.mxu0 %v1988
        %2676 = vmatmul.bf16.gmra.mxu0 %v2436
        %v2677 = vpop.f32.mrf.mxu0
        %v2678 = vadd.f32 0.0, %v2677
        %v2679 = vpop.f32.mrf.mxu0
        %v2680 = vadd.f32 0.0, %v2679
        %2681 = vmatmul.bf16.gmra.mxu0 %v2437
        %v2682 = vpop.f32.mrf.mxu0
        %v2683 = vadd.f32 0.0, %v2682
        %v2684 = vpop.f32.mrf.mxu0
        %v2685 = vadd.f32 0.0, %v2684
        %2686 = vdwg.mxu0
        %2687 = vmatpush.bf16.msra.mxu0 %v2101
        %2688 = vmatpush.bf16.msra.mxu0 %v2085
        %2689 = vmatpush.bf16.msra.mxu0 %v2069
        %2690 = vmatpush.bf16.msra.mxu0 %v2053
        %2691 = vmatpush.bf16.msra.mxu0 %v2037
        %2692 = vmatpush.bf16.msra.mxu0 %v2021
        %2693 = vmatpush.bf16.msra.mxu0 %v2005
        %2694 = vmatpush.bf16.msra.mxu0 %v1989
        %2695 = vmatmul.bf16.gmra.mxu0 %v2436
        %v2696 = vpop.f32.mrf.mxu0
        %v2697 = vadd.f32 0.0, %v2696
        %v2698 = vpop.f32.mrf.mxu0
        %v2699 = vadd.f32 0.0, %v2698
        %2700 = vmatmul.bf16.gmra.mxu0 %v2437
        %v2701 = vpop.f32.mrf.mxu0
        %v2702 = vadd.f32 0.0, %v2701
        %v2703 = vpop.f32.mrf.mxu0
        %v2704 = vadd.f32 0.0, %v2703
        %2705 = vdwg.mxu0
        %2706 = vmatpush.bf16.msra.mxu0 %v2102
        %2707 = vmatpush.bf16.msra.mxu0 %v2086
        %2708 = vmatpush.bf16.msra.mxu0 %v2070
        %2709 = vmatpush.bf16.msra.mxu0 %v2054
        %2710 = vmatpush.bf16.msra.mxu0 %v2038
        %2711 = vmatpush.bf16.msra.mxu0 %v2022
        %2712 = vmatpush.bf16.msra.mxu0 %v2006
        %2713 = vmatpush.bf16.msra.mxu0 %v1990
        %2714 = vmatmul.bf16.gmra.mxu0 %v2436
        %v2715 = vpop.f32.mrf.mxu0
        %v2716 = vadd.f32 0.0, %v2715
        %v2717 = vpop.f32.mrf.mxu0
        %v2718 = vadd.f32 0.0, %v2717
        %2719 = vmatmul.bf16.gmra.mxu0 %v2437
        %v2720 = vpop.f32.mrf.mxu0
        %v2721 = vadd.f32 0.0, %v2720
        %v2722 = vpop.f32.mrf.mxu0
        %v2723 = vadd.f32 0.0, %v2722
        %2724 = vdwg.mxu0
        %2725 = vmatpush.bf16.msra.mxu0 %v2103
        %2726 = vmatpush.bf16.msra.mxu0 %v2087
        %2727 = vmatpush.bf16.msra.mxu0 %v2071
        %2728 = vmatpush.bf16.msra.mxu0 %v2055
        %2729 = vmatpush.bf16.msra.mxu0 %v2039
        %2730 = vmatpush.bf16.msra.mxu0 %v2023
        %2731 = vmatpush.bf16.msra.mxu0 %v2007
        %2732 = vmatpush.bf16.msra.mxu0 %v1991
        %2733 = vmatmul.bf16.gmra.mxu0 %v2436
        %v2734 = vpop.f32.mrf.mxu0
        %v2735 = vadd.f32 0.0, %v2734
        %v2736 = vpop.f32.mrf.mxu0
        %v2737 = vadd.f32 0.0, %v2736
        %2738 = vmatmul.bf16.gmra.mxu0 %v2437
        %v2739 = vpop.f32.mrf.mxu0
        %v2740 = vadd.f32 0.0, %v2739
        %v2741 = vpop.f32.mrf.mxu0
        %v2742 = vadd.f32 0.0, %v2741
        %2743 = vdwg.mxu0
        %v2744 = vmul.f32 %v2130, %v2450
        %v2745 = vmul.f32 %v2149, %v2469
        %v2746 = vmul.f32 %v2168, %v2488
        %v2747 = vmul.f32 %v2187, %v2507
        %v2748 = vmul.f32 %v2206, %v2526
        %v2749 = vmul.f32 %v2225, %v2545
        %v2750 = vmul.f32 %v2244, %v2564
        %v2751 = vmul.f32 %v2263, %v2583
        %v2752 = vmul.f32 %v2282, %v2602
        %v2753 = vmul.f32 %v2301, %v2621
        %v2754 = vmul.f32 %v2320, %v2640
        %v2755 = vmul.f32 %v2339, %v2659
        %v2756 = vmul.f32 %v2358, %v2678
        %v2757 = vmul.f32 %v2377, %v2697
        %v2758 = vmul.f32 %v2396, %v2716
        %v2759 = vmul.f32 %v2415, %v2735
        %v2760 = vmul.f32 %v2132, %v2452
        %v2761 = vmul.f32 %v2151, %v2471
        %v2762 = vmul.f32 %v2170, %v2490
        %v2763 = vmul.f32 %v2189, %v2509
        %v2764 = vmul.f32 %v2208, %v2528
        %v2765 = vmul.f32 %v2227, %v2547
        %v2766 = vmul.f32 %v2246, %v2566
        %v2767 = vmul.f32 %v2265, %v2585
        %v2768 = vmul.f32 %v2284, %v2604
        %v2769 = vmul.f32 %v2303, %v2623
        %v2770 = vmul.f32 %v2322, %v2642
        %v2771 = vmul.f32 %v2341, %v2661
        %v2772 = vmul.f32 %v2360, %v2680
        %v2773 = vmul.f32 %v2379, %v2699
        %v2774 = vmul.f32 %v2398, %v2718
        %v2775 = vmul.f32 %v2417, %v2737
        %v2776 = vmul.f32 %v2135, %v2455
        %v2777 = vmul.f32 %v2154, %v2474
        %v2778 = vmul.f32 %v2173, %v2493
        %v2779 = vmul.f32 %v2192, %v2512
        %v2780 = vmul.f32 %v2211, %v2531
        %v2781 = vmul.f32 %v2230, %v2550
        %v2782 = vmul.f32 %v2249, %v2569
        %v2783 = vmul.f32 %v2268, %v2588
        %v2784 = vmul.f32 %v2287, %v2607
        %v2785 = vmul.f32 %v2306, %v2626
        %v2786 = vmul.f32 %v2325, %v2645
        %v2787 = vmul.f32 %v2344, %v2664
        %v2788 = vmul.f32 %v2363, %v2683
        %v2789 = vmul.f32 %v2382, %v2702
        %v2790 = vmul.f32 %v2401, %v2721
        %v2791 = vmul.f32 %v2420, %v2740
        %v2792 = vmul.f32 %v2137, %v2457
        %v2793 = vmul.f32 %v2156, %v2476
        %v2794 = vmul.f32 %v2175, %v2495
        %v2795 = vmul.f32 %v2194, %v2514
        %v2796 = vmul.f32 %v2213, %v2533
        %v2797 = vmul.f32 %v2232, %v2552
        %v2798 = vmul.f32 %v2251, %v2571
        %v2799 = vmul.f32 %v2270, %v2590
        %v2800 = vmul.f32 %v2289, %v2609
        %v2801 = vmul.f32 %v2308, %v2628
        %v2802 = vmul.f32 %v2327, %v2647
        %v2803 = vmul.f32 %v2346, %v2666
        %v2804 = vmul.f32 %v2365, %v2685
        %v2805 = vmul.f32 %v2384, %v2704
        %v2806 = vmul.f32 %v2403, %v2723
        %v2807 = vmul.f32 %v2422, %v2742
        %v2808 = vld [vmem:[%s3] sm:$0x1]
        %s2809 = sld [smem:[#allocation2]]
        %v2810 = vstv %s2809
        %vm2811 = vcmask 261120
        %v2813 = vsel %vm2811, %v2808, 0
        %2815 = vmatpush.msra.mxu0 0.0
        %2816 = vmatpush.msra.mxu0 0.0
        %2817 = vmatpush.msra.mxu0 0.0
        %2818 = vmatpush.msra.mxu0 0.0
        %2819 = vmatpush.msra.mxu0 0.0
        %2820 = vmatpush.msra.mxu0 0.0
        %2821 = vmatpush.msra.mxu0 0.0
        %2822 = vmatpush.msra.mxu0 0.0
        %2823 = vmatpush.msra.mxu0 0.0
        %2824 = vmatpush.msra.mxu0 0.0
        %2825 = vmatpush.msra.mxu0 0.0
        %2826 = vmatpush.msra.mxu0 0.0
        %2827 = vmatpush.msra.mxu0 %v2792
        %2828 = vmatpush.msra.mxu0 %v2776
        %2829 = vmatpush.msra.mxu0 %v2760
        %2830 = vmatpush.msra.mxu0 %v2744
        %2831 = vmatmul.f32.gmra.mxu0 %v2813
        %v2832 = vpop.f32.mrf.mxu0
        %v2833 = vadd.f32 %v2810, %v2832
        %2834 = vdwg.mxu0
        %2835 = vmatpush.msra.mxu0 0.0
        %2836 = vmatpush.msra.mxu0 0.0
        %2837 = vmatpush.msra.mxu0 0.0
        %2838 = vmatpush.msra.mxu0 0.0
        %2839 = vmatpush.msra.mxu0 0.0
        %2840 = vmatpush.msra.mxu0 0.0
        %2841 = vmatpush.msra.mxu0 0.0
        %2842 = vmatpush.msra.mxu0 0.0
        %2843 = vmatpush.msra.mxu0 0.0
        %2844 = vmatpush.msra.mxu0 0.0
        %2845 = vmatpush.msra.mxu0 0.0
        %2846 = vmatpush.msra.mxu0 0.0
        %2847 = vmatpush.msra.mxu0 %v2793
        %2848 = vmatpush.msra.mxu0 %v2777
        %2849 = vmatpush.msra.mxu0 %v2761
        %2850 = vmatpush.msra.mxu0 %v2745
        %2851 = vmatmul.f32.gmra.mxu0 %v2813
        %v2852 = vpop.f32.mrf.mxu0
        %v2853 = vadd.f32 %v2810, %v2852
        %2854 = vdwg.mxu0
        %2855 = vmatpush.msra.mxu0 0.0
        %2856 = vmatpush.msra.mxu0 0.0
        %2857 = vmatpush.msra.mxu0 0.0
        %2858 = vmatpush.msra.mxu0 0.0
        %2859 = vmatpush.msra.mxu0 0.0
        %2860 = vmatpush.msra.mxu0 0.0
        %2861 = vmatpush.msra.mxu0 0.0
        %2862 = vmatpush.msra.mxu0 0.0
        %2863 = vmatpush.msra.mxu0 0.0
        %2864 = vmatpush.msra.mxu0 0.0
        %2865 = vmatpush.msra.mxu0 0.0
        %2866 = vmatpush.msra.mxu0 0.0
        %2867 = vmatpush.msra.mxu0 %v2794
        %2868 = vmatpush.msra.mxu0 %v2778
        %2869 = vmatpush.msra.mxu0 %v2762
        %2870 = vmatpush.msra.mxu0 %v2746
        %2871 = vmatmul.f32.gmra.mxu0 %v2813
        %v2872 = vpop.f32.mrf.mxu0
        %v2873 = vadd.f32 %v2810, %v2872
        %2874 = vdwg.mxu0
        %2875 = vmatpush.msra.mxu0 0.0
        %2876 = vmatpush.msra.mxu0 0.0
        %2877 = vmatpush.msra.mxu0 0.0
        %2878 = vmatpush.msra.mxu0 0.0
        %2879 = vmatpush.msra.mxu0 0.0
        %2880 = vmatpush.msra.mxu0 0.0
        %2881 = vmatpush.msra.mxu0 0.0
        %2882 = vmatpush.msra.mxu0 0.0
        %2883 = vmatpush.msra.mxu0 0.0
        %2884 = vmatpush.msra.mxu0 0.0
        %2885 = vmatpush.msra.mxu0 0.0
        %2886 = vmatpush.msra.mxu0 0.0
        %2887 = vmatpush.msra.mxu0 %v2795
        %2888 = vmatpush.msra.mxu0 %v2779
        %2889 = vmatpush.msra.mxu0 %v2763
        %2890 = vmatpush.msra.mxu0 %v2747
        %2891 = vmatmul.f32.gmra.mxu0 %v2813
        %v2892 = vpop.f32.mrf.mxu0
        %v2893 = vadd.f32 %v2810, %v2892
        %2894 = vdwg.mxu0
        %2895 = vmatpush.msra.mxu0 0.0
        %2896 = vmatpush.msra.mxu0 0.0
        %2897 = vmatpush.msra.mxu0 0.0
        %2898 = vmatpush.msra.mxu0 0.0
        %2899 = vmatpush.msra.mxu0 0.0
        %2900 = vmatpush.msra.mxu0 0.0
        %2901 = vmatpush.msra.mxu0 0.0
        %2902 = vmatpush.msra.mxu0 0.0
        %2903 = vmatpush.msra.mxu0 0.0
        %2904 = vmatpush.msra.mxu0 0.0
        %2905 = vmatpush.msra.mxu0 0.0
        %2906 = vmatpush.msra.mxu0 0.0
        %2907 = vmatpush.msra.mxu0 %v2796
        %2908 = vmatpush.msra.mxu0 %v2780
        %2909 = vmatpush.msra.mxu0 %v2764
        %2910 = vmatpush.msra.mxu0 %v2748
        %2911 = vmatmul.f32.gmra.mxu0 %v2813
        %v2912 = vpop.f32.mrf.mxu0
        %v2913 = vadd.f32 %v2810, %v2912
        %2914 = vdwg.mxu0
        %2915 = vmatpush.msra.mxu0 0.0
        %2916 = vmatpush.msra.mxu0 0.0
        %2917 = vmatpush.msra.mxu0 0.0
        %2918 = vmatpush.msra.mxu0 0.0
        %2919 = vmatpush.msra.mxu0 0.0
        %2920 = vmatpush.msra.mxu0 0.0
        %2921 = vmatpush.msra.mxu0 0.0
        %2922 = vmatpush.msra.mxu0 0.0
        %2923 = vmatpush.msra.mxu0 0.0
        %2924 = vmatpush.msra.mxu0 0.0
        %2925 = vmatpush.msra.mxu0 0.0
        %2926 = vmatpush.msra.mxu0 0.0
        %2927 = vmatpush.msra.mxu0 %v2797
        %2928 = vmatpush.msra.mxu0 %v2781
        %2929 = vmatpush.msra.mxu0 %v2765
        %2930 = vmatpush.msra.mxu0 %v2749
        %2931 = vmatmul.f32.gmra.mxu0 %v2813
        %v2932 = vpop.f32.mrf.mxu0
        %v2933 = vadd.f32 %v2810, %v2932
        %2934 = vdwg.mxu0
        %2935 = vmatpush.msra.mxu0 0.0
        %2936 = vmatpush.msra.mxu0 0.0
        %2937 = vmatpush.msra.mxu0 0.0
        %2938 = vmatpush.msra.mxu0 0.0
        %2939 = vmatpush.msra.mxu0 0.0
        %2940 = vmatpush.msra.mxu0 0.0
        %2941 = vmatpush.msra.mxu0 0.0
        %2942 = vmatpush.msra.mxu0 0.0
        %2943 = vmatpush.msra.mxu0 0.0
        %2944 = vmatpush.msra.mxu0 0.0
        %2945 = vmatpush.msra.mxu0 0.0
        %2946 = vmatpush.msra.mxu0 0.0
        %2947 = vmatpush.msra.mxu0 %v2798
        %2948 = vmatpush.msra.mxu0 %v2782
        %2949 = vmatpush.msra.mxu0 %v2766
        %2950 = vmatpush.msra.mxu0 %v2750
        %2951 = vmatmul.f32.gmra.mxu0 %v2813
        %v2952 = vpop.f32.mrf.mxu0
        %v2953 = vadd.f32 %v2810, %v2952
        %2954 = vdwg.mxu0
        %2955 = vmatpush.msra.mxu0 0.0
        %2956 = vmatpush.msra.mxu0 0.0
        %2957 = vmatpush.msra.mxu0 0.0
        %2958 = vmatpush.msra.mxu0 0.0
        %2959 = vmatpush.msra.mxu0 0.0
        %2960 = vmatpush.msra.mxu0 0.0
        %2961 = vmatpush.msra.mxu0 0.0
        %2962 = vmatpush.msra.mxu0 0.0
        %2963 = vmatpush.msra.mxu0 0.0
        %2964 = vmatpush.msra.mxu0 0.0
        %2965 = vmatpush.msra.mxu0 0.0
        %2966 = vmatpush.msra.mxu0 0.0
        %2967 = vmatpush.msra.mxu0 %v2799
        %2968 = vmatpush.msra.mxu0 %v2783
        %2969 = vmatpush.msra.mxu0 %v2767
        %2970 = vmatpush.msra.mxu0 %v2751
        %2971 = vmatmul.f32.gmra.mxu0 %v2813
        %v2972 = vpop.f32.mrf.mxu0
        %v2973 = vadd.f32 %v2810, %v2972
        %2974 = vdwg.mxu0
        %2975 = vmatpush.msra.mxu0 0.0
        %2976 = vmatpush.msra.mxu0 0.0
        %2977 = vmatpush.msra.mxu0 0.0
        %2978 = vmatpush.msra.mxu0 0.0
        %2979 = vmatpush.msra.mxu0 0.0
        %2980 = vmatpush.msra.mxu0 0.0
        %2981 = vmatpush.msra.mxu0 0.0
        %2982 = vmatpush.msra.mxu0 0.0
        %2983 = vmatpush.msra.mxu0 0.0
        %2984 = vmatpush.msra.mxu0 0.0
        %2985 = vmatpush.msra.mxu0 0.0
        %2986 = vmatpush.msra.mxu0 0.0
        %2987 = vmatpush.msra.mxu0 %v2800
        %2988 = vmatpush.msra.mxu0 %v2784
        %2989 = vmatpush.msra.mxu0 %v2768
        %2990 = vmatpush.msra.mxu0 %v2752
        %2991 = vmatmul.f32.gmra.mxu0 %v2813
        %v2992 = vpop.f32.mrf.mxu0
        %v2993 = vadd.f32 %v2810, %v2992
        %2994 = vdwg.mxu0
        %2995 = vmatpush.msra.mxu0 0.0
        %2996 = vmatpush.msra.mxu0 0.0
        %2997 = vmatpush.msra.mxu0 0.0
        %2998 = vmatpush.msra.mxu0 0.0
        %2999 = vmatpush.msra.mxu0 0.0
        %3000 = vmatpush.msra.mxu0 0.0
        %3001 = vmatpush.msra.mxu0 0.0
        %3002 = vmatpush.msra.mxu0 0.0
        %3003 = vmatpush.msra.mxu0 0.0
        %3004 = vmatpush.msra.mxu0 0.0
        %3005 = vmatpush.msra.mxu0 0.0
        %3006 = vmatpush.msra.mxu0 0.0
        %3007 = vmatpush.msra.mxu0 %v2801
        %3008 = vmatpush.msra.mxu0 %v2785
        %3009 = vmatpush.msra.mxu0 %v2769
        %3010 = vmatpush.msra.mxu0 %v2753
        %3011 = vmatmul.f32.gmra.mxu0 %v2813
        %v3012 = vpop.f32.mrf.mxu0
        %v3013 = vadd.f32 %v2810, %v3012
        %3014 = vdwg.mxu0
        %3015 = vmatpush.msra.mxu0 0.0
        %3016 = vmatpush.msra.mxu0 0.0
        %3017 = vmatpush.msra.mxu0 0.0
        %3018 = vmatpush.msra.mxu0 0.0
        %3019 = vmatpush.msra.mxu0 0.0
        %3020 = vmatpush.msra.mxu0 0.0
        %3021 = vmatpush.msra.mxu0 0.0
        %3022 = vmatpush.msra.mxu0 0.0
        %3023 = vmatpush.msra.mxu0 0.0
        %3024 = vmatpush.msra.mxu0 0.0
        %3025 = vmatpush.msra.mxu0 0.0
        %3026 = vmatpush.msra.mxu0 0.0
        %3027 = vmatpush.msra.mxu0 %v2802
        %3028 = vmatpush.msra.mxu0 %v2786
        %3029 = vmatpush.msra.mxu0 %v2770
        %3030 = vmatpush.msra.mxu0 %v2754
        %3031 = vmatmul.f32.gmra.mxu0 %v2813
        %v3032 = vpop.f32.mrf.mxu0
        %v3033 = vadd.f32 %v2810, %v3032
        %3034 = vdwg.mxu0
        %3035 = vmatpush.msra.mxu0 0.0
        %3036 = vmatpush.msra.mxu0 0.0
        %3037 = vmatpush.msra.mxu0 0.0
        %3038 = vmatpush.msra.mxu0 0.0
        %3039 = vmatpush.msra.mxu0 0.0
        %3040 = vmatpush.msra.mxu0 0.0
        %3041 = vmatpush.msra.mxu0 0.0
        %3042 = vmatpush.msra.mxu0 0.0
        %3043 = vmatpush.msra.mxu0 0.0
        %3044 = vmatpush.msra.mxu0 0.0
        %3045 = vmatpush.msra.mxu0 0.0
        %3046 = vmatpush.msra.mxu0 0.0
        %3047 = vmatpush.msra.mxu0 %v2803
        %3048 = vmatpush.msra.mxu0 %v2787
        %3049 = vmatpush.msra.mxu0 %v2771
        %3050 = vmatpush.msra.mxu0 %v2755
        %3051 = vmatmul.f32.gmra.mxu0 %v2813
        %v3052 = vpop.f32.mrf.mxu0
        %v3053 = vadd.f32 %v2810, %v3052
        %3054 = vdwg.mxu0
        %3055 = vmatpush.msra.mxu0 0.0
        %3056 = vmatpush.msra.mxu0 0.0
        %3057 = vmatpush.msra.mxu0 0.0
        %3058 = vmatpush.msra.mxu0 0.0
        %3059 = vmatpush.msra.mxu0 0.0
        %3060 = vmatpush.msra.mxu0 0.0
        %3061 = vmatpush.msra.mxu0 0.0
        %3062 = vmatpush.msra.mxu0 0.0
        %3063 = vmatpush.msra.mxu0 0.0
        %3064 = vmatpush.msra.mxu0 0.0
        %3065 = vmatpush.msra.mxu0 0.0
        %3066 = vmatpush.msra.mxu0 0.0
        %3067 = vmatpush.msra.mxu0 %v2804
        %3068 = vmatpush.msra.mxu0 %v2788
        %3069 = vmatpush.msra.mxu0 %v2772
        %3070 = vmatpush.msra.mxu0 %v2756
        %3071 = vmatmul.f32.gmra.mxu0 %v2813
        %v3072 = vpop.f32.mrf.mxu0
        %v3073 = vadd.f32 %v2810, %v3072
        %3074 = vdwg.mxu0
        %3075 = vmatpush.msra.mxu0 0.0
        %3076 = vmatpush.msra.mxu0 0.0
        %3077 = vmatpush.msra.mxu0 0.0
        %3078 = vmatpush.msra.mxu0 0.0
        %3079 = vmatpush.msra.mxu0 0.0
        %3080 = vmatpush.msra.mxu0 0.0
        %3081 = vmatpush.msra.mxu0 0.0
        %3082 = vmatpush.msra.mxu0 0.0
        %3083 = vmatpush.msra.mxu0 0.0
        %3084 = vmatpush.msra.mxu0 0.0
        %3085 = vmatpush.msra.mxu0 0.0
        %3086 = vmatpush.msra.mxu0 0.0
        %3087 = vmatpush.msra.mxu0 %v2805
        %3088 = vmatpush.msra.mxu0 %v2789
        %3089 = vmatpush.msra.mxu0 %v2773
        %3090 = vmatpush.msra.mxu0 %v2757
        %3091 = vmatmul.f32.gmra.mxu0 %v2813
        %v3092 = vpop.f32.mrf.mxu0
        %v3093 = vadd.f32 %v2810, %v3092
        %3094 = vdwg.mxu0
        %3095 = vmatpush.msra.mxu0 0.0
        %3096 = vmatpush.msra.mxu0 0.0
        %3097 = vmatpush.msra.mxu0 0.0
        %3098 = vmatpush.msra.mxu0 0.0
        %3099 = vmatpush.msra.mxu0 0.0
        %3100 = vmatpush.msra.mxu0 0.0
        %3101 = vmatpush.msra.mxu0 0.0
        %3102 = vmatpush.msra.mxu0 0.0
        %3103 = vmatpush.msra.mxu0 0.0
        %3104 = vmatpush.msra.mxu0 0.0
        %3105 = vmatpush.msra.mxu0 0.0
        %3106 = vmatpush.msra.mxu0 0.0
        %3107 = vmatpush.msra.mxu0 %v2806
        %3108 = vmatpush.msra.mxu0 %v2790
        %3109 = vmatpush.msra.mxu0 %v2774
        %3110 = vmatpush.msra.mxu0 %v2758
        %3111 = vmatmul.f32.gmra.mxu0 %v2813
        %v3112 = vpop.f32.mrf.mxu0
        %v3113 = vadd.f32 %v2810, %v3112
        %3114 = vdwg.mxu0
        %3115 = vmatpush.msra.mxu0 0.0
        %3116 = vmatpush.msra.mxu0 0.0
        %3117 = vmatpush.msra.mxu0 0.0
        %3118 = vmatpush.msra.mxu0 0.0
        %3119 = vmatpush.msra.mxu0 0.0
        %3120 = vmatpush.msra.mxu0 0.0
        %3121 = vmatpush.msra.mxu0 0.0
        %3122 = vmatpush.msra.mxu0 0.0
        %3123 = vmatpush.msra.mxu0 0.0
        %3124 = vmatpush.msra.mxu0 0.0
        %3125 = vmatpush.msra.mxu0 0.0
        %3126 = vmatpush.msra.mxu0 0.0
        %3127 = vmatpush.msra.mxu0 %v2807
        %3128 = vmatpush.msra.mxu0 %v2791
        %3129 = vmatpush.msra.mxu0 %v2775
        %3130 = vmatpush.msra.mxu0 %v2759
        %3131 = vmatmul.f32.gmra.mxu0 %v2813
        %v3132 = vpop.f32.mrf.mxu0
        %v3133 = vadd.f32 %v2810, %v3132
        %3134 = vdwg.mxu0
        %v3135 = vxor.u32 %v2833, 2147483648
        %v3136 = vxor.u32 %v2853, 2147483648
        %v3137 = vxor.u32 %v2873, 2147483648
        %v3138 = vxor.u32 %v2893, 2147483648
        %v3139 = vxor.u32 %v2913, 2147483648
        %v3140 = vxor.u32 %v2933, 2147483648
        %v3141 = vxor.u32 %v2953, 2147483648
        %v3142 = vxor.u32 %v2973, 2147483648
        %v3143 = vxor.u32 %v2993, 2147483648
        %v3144 = vxor.u32 %v3013, 2147483648
        %v3145 = vxor.u32 %v3033, 2147483648
        %v3146 = vxor.u32 %v3053, 2147483648
        %v3147 = vxor.u32 %v3073, 2147483648
        %v3148 = vxor.u32 %v3093, 2147483648
        %v3149 = vxor.u32 %v3113, 2147483648
        %v3150 = vxor.u32 %v3133, 2147483648
        %v3151 = vmul.f32 %v3135, 1.442695
        %v3152 = vpow.pop %v3151
        %v3153 = vmul.f32 %v3136, 1.442695
        %v3154 = vpow.pop %v3153
        %v3155 = vmul.f32 %v3137, 1.442695
        %v3156 = vpow.pop %v3155
        %v3157 = vmul.f32 %v3138, 1.442695
        %v3158 = vpow.pop %v3157
        %v3159 = vmul.f32 %v3139, 1.442695
        %v3160 = vpow.pop %v3159
        %v3161 = vmul.f32 %v3140, 1.442695
        %v3162 = vpow.pop %v3161
        %v3163 = vmul.f32 %v3141, 1.442695
        %v3164 = vpow.pop %v3163
        %v3165 = vmul.f32 %v3142, 1.442695
        %v3166 = vpow.pop %v3165
        %v3167 = vmul.f32 %v3143, 1.442695
        %v3168 = vpow.pop %v3167
        %v3169 = vmul.f32 %v3144, 1.442695
        %v3170 = vpow.pop %v3169
        %v3171 = vmul.f32 %v3145, 1.442695
        %v3172 = vpow.pop %v3171
        %v3173 = vmul.f32 %v3146, 1.442695
        %v3174 = vpow.pop %v3173
        %v3175 = vmul.f32 %v3147, 1.442695
        %v3176 = vpow.pop %v3175
        %v3177 = vmul.f32 %v3148, 1.442695
        %v3178 = vpow.pop %v3177
        %v3179 = vmul.f32 %v3149, 1.442695
        %v3180 = vpow.pop %v3179
        %v3181 = vmul.f32 %v3150, 1.442695
        %v3182 = vpow.pop %v3181
        %v3183 = vadd.f32 %v3152, 1.0
        %v3184 = vadd.f32 %v3154, 1.0
        %v3185 = vadd.f32 %v3156, 1.0
        %v3186 = vadd.f32 %v3158, 1.0
        %v3187 = vadd.f32 %v3160, 1.0
        %v3188 = vadd.f32 %v3162, 1.0
        %v3189 = vadd.f32 %v3164, 1.0
        %v3190 = vadd.f32 %v3166, 1.0
        %v3191 = vadd.f32 %v3168, 1.0
        %v3192 = vadd.f32 %v3170, 1.0
        %v3193 = vadd.f32 %v3172, 1.0
        %v3194 = vadd.f32 %v3174, 1.0
        %v3195 = vadd.f32 %v3176, 1.0
        %v3196 = vadd.f32 %v3178, 1.0
        %v3197 = vadd.f32 %v3180, 1.0
        %v3198 = vadd.f32 %v3182, 1.0
        %v3199 = vrcp.pop %v3183
        %v3200 = vmul.f32 %v3183, %v3199
        %v3201 = vsub.f32 1.0, %v3200
        %v3202 = vmul.f32 %v3199, %v3201
        %v3203 = vadd.f32 %v3199, %v3202
        %vm3204 = vweird.f32 %v3183
        %vm3205 = vweird.f32 %v3199
        %vm3206 = vmor %vm3204, %vm3205
        %v3207 = vsel %vm3206, %v3199, %v3203
        %v3208 = vand.u32 2147483647, %v3183
        %vm3209 = vcmp.eq.f32.partialorder %v3208, 8.507059e+37
        %v3210 = vand.u32 %v3183, 2147483648
        %v3211 = vor.u32 1.1754944e-38, %v3210
        %v3212 = vsel %vm3209, %v3211, %v3207
        %v3213 = vmul.f32 1.0, %v3212
        %v3214 = vrcp.pop %v3184
        %v3215 = vmul.f32 %v3184, %v3214
        %v3216 = vsub.f32 1.0, %v3215
        %v3217 = vmul.f32 %v3214, %v3216
        %v3218 = vadd.f32 %v3214, %v3217
        %vm3219 = vweird.f32 %v3184
        %vm3220 = vweird.f32 %v3214
        %vm3221 = vmor %vm3219, %vm3220
        %v3222 = vsel %vm3221, %v3214, %v3218
        %v3223 = vand.u32 2147483647, %v3184
        %vm3224 = vcmp.eq.f32.partialorder %v3223, 8.507059e+37
        %v3225 = vand.u32 %v3184, 2147483648
        %v3226 = vor.u32 1.1754944e-38, %v3225
        %v3227 = vsel %vm3224, %v3226, %v3222
        %v3228 = vmul.f32 1.0, %v3227
        %v3229 = vrcp.pop %v3185
        %v3230 = vmul.f32 %v3185, %v3229
        %v3231 = vsub.f32 1.0, %v3230
        %v3232 = vmul.f32 %v3229, %v3231
        %v3233 = vadd.f32 %v3229, %v3232
        %vm3234 = vweird.f32 %v3185
        %vm3235 = vweird.f32 %v3229
        %vm3236 = vmor %vm3234, %vm3235
        %v3237 = vsel %vm3236, %v3229, %v3233
        %v3238 = vand.u32 2147483647, %v3185
        %vm3239 = vcmp.eq.f32.partialorder %v3238, 8.507059e+37
        %v3240 = vand.u32 %v3185, 2147483648
        %v3241 = vor.u32 1.1754944e-38, %v3240
        %v3242 = vsel %vm3239, %v3241, %v3237
        %v3243 = vmul.f32 1.0, %v3242
        %v3244 = vrcp.pop %v3186
        %v3245 = vmul.f32 %v3186, %v3244
        %v3246 = vsub.f32 1.0, %v3245
        %v3247 = vmul.f32 %v3244, %v3246
        %v3248 = vadd.f32 %v3244, %v3247
        %vm3249 = vweird.f32 %v3186
        %vm3250 = vweird.f32 %v3244
        %vm3251 = vmor %vm3249, %vm3250
        %v3252 = vsel %vm3251, %v3244, %v3248
        %v3253 = vand.u32 2147483647, %v3186
        %vm3254 = vcmp.eq.f32.partialorder %v3253, 8.507059e+37
        %v3255 = vand.u32 %v3186, 2147483648
        %v3256 = vor.u32 1.1754944e-38, %v3255
        %v3257 = vsel %vm3254, %v3256, %v3252
        %v3258 = vmul.f32 1.0, %v3257
        %v3259 = vrcp.pop %v3187
        %v3260 = vmul.f32 %v3187, %v3259
        %v3261 = vsub.f32 1.0, %v3260
        %v3262 = vmul.f32 %v3259, %v3261
        %v3263 = vadd.f32 %v3259, %v3262
        %vm3264 = vweird.f32 %v3187
        %vm3265 = vweird.f32 %v3259
        %vm3266 = vmor %vm3264, %vm3265
        %v3267 = vsel %vm3266, %v3259, %v3263
        %v3268 = vand.u32 2147483647, %v3187
        %vm3269 = vcmp.eq.f32.partialorder %v3268, 8.507059e+37
        %v3270 = vand.u32 %v3187, 2147483648
        %v3271 = vor.u32 1.1754944e-38, %v3270
        %v3272 = vsel %vm3269, %v3271, %v3267
        %v3273 = vmul.f32 1.0, %v3272
        %v3274 = vrcp.pop %v3188
        %v3275 = vmul.f32 %v3188, %v3274
        %v3276 = vsub.f32 1.0, %v3275
        %v3277 = vmul.f32 %v3274, %v3276
        %v3278 = vadd.f32 %v3274, %v3277
        %vm3279 = vweird.f32 %v3188
        %vm3280 = vweird.f32 %v3274
        %vm3281 = vmor %vm3279, %vm3280
        %v3282 = vsel %vm3281, %v3274, %v3278
        %v3283 = vand.u32 2147483647, %v3188
        %vm3284 = vcmp.eq.f32.partialorder %v3283, 8.507059e+37
        %v3285 = vand.u32 %v3188, 2147483648
        %v3286 = vor.u32 1.1754944e-38, %v3285
        %v3287 = vsel %vm3284, %v3286, %v3282
        %v3288 = vmul.f32 1.0, %v3287
        %v3289 = vrcp.pop %v3189
        %v3290 = vmul.f32 %v3189, %v3289
        %v3291 = vsub.f32 1.0, %v3290
        %v3292 = vmul.f32 %v3289, %v3291
        %v3293 = vadd.f32 %v3289, %v3292
        %vm3294 = vweird.f32 %v3189
        %vm3295 = vweird.f32 %v3289
        %vm3296 = vmor %vm3294, %vm3295
        %v3297 = vsel %vm3296, %v3289, %v3293
        %v3298 = vand.u32 2147483647, %v3189
        %vm3299 = vcmp.eq.f32.partialorder %v3298, 8.507059e+37
        %v3300 = vand.u32 %v3189, 2147483648
        %v3301 = vor.u32 1.1754944e-38, %v3300
        %v3302 = vsel %vm3299, %v3301, %v3297
        %v3303 = vmul.f32 1.0, %v3302
        %v3304 = vrcp.pop %v3190
        %v3305 = vmul.f32 %v3190, %v3304
        %v3306 = vsub.f32 1.0, %v3305
        %v3307 = vmul.f32 %v3304, %v3306
        %v3308 = vadd.f32 %v3304, %v3307
        %vm3309 = vweird.f32 %v3190
        %vm3310 = vweird.f32 %v3304
        %vm3311 = vmor %vm3309, %vm3310
        %v3312 = vsel %vm3311, %v3304, %v3308
        %v3313 = vand.u32 2147483647, %v3190
        %vm3314 = vcmp.eq.f32.partialorder %v3313, 8.507059e+37
        %v3315 = vand.u32 %v3190, 2147483648
        %v3316 = vor.u32 1.1754944e-38, %v3315
        %v3317 = vsel %vm3314, %v3316, %v3312
        %v3318 = vmul.f32 1.0, %v3317
        %v3319 = vrcp.pop %v3191
        %v3320 = vmul.f32 %v3191, %v3319
        %v3321 = vsub.f32 1.0, %v3320
        %v3322 = vmul.f32 %v3319, %v3321
        %v3323 = vadd.f32 %v3319, %v3322
        %vm3324 = vweird.f32 %v3191
        %vm3325 = vweird.f32 %v3319
        %vm3326 = vmor %vm3324, %vm3325
        %v3327 = vsel %vm3326, %v3319, %v3323
        %v3328 = vand.u32 2147483647, %v3191
        %vm3329 = vcmp.eq.f32.partialorder %v3328, 8.507059e+37
        %v3330 = vand.u32 %v3191, 2147483648
        %v3331 = vor.u32 1.1754944e-38, %v3330
        %v3332 = vsel %vm3329, %v3331, %v3327
        %v3333 = vmul.f32 1.0, %v3332
        %v3334 = vrcp.pop %v3192
        %v3335 = vmul.f32 %v3192, %v3334
        %v3336 = vsub.f32 1.0, %v3335
        %v3337 = vmul.f32 %v3334, %v3336
        %v3338 = vadd.f32 %v3334, %v3337
        %vm3339 = vweird.f32 %v3192
        %vm3340 = vweird.f32 %v3334
        %vm3341 = vmor %vm3339, %vm3340
        %v3342 = vsel %vm3341, %v3334, %v3338
        %v3343 = vand.u32 2147483647, %v3192
        %vm3344 = vcmp.eq.f32.partialorder %v3343, 8.507059e+37
        %v3345 = vand.u32 %v3192, 2147483648
        %v3346 = vor.u32 1.1754944e-38, %v3345
        %v3347 = vsel %vm3344, %v3346, %v3342
        %v3348 = vmul.f32 1.0, %v3347
        %v3349 = vrcp.pop %v3193
        %v3350 = vmul.f32 %v3193, %v3349
        %v3351 = vsub.f32 1.0, %v3350
        %v3352 = vmul.f32 %v3349, %v3351
        %v3353 = vadd.f32 %v3349, %v3352
        %vm3354 = vweird.f32 %v3193
        %vm3355 = vweird.f32 %v3349
        %vm3356 = vmor %vm3354, %vm3355
        %v3357 = vsel %vm3356, %v3349, %v3353
        %v3358 = vand.u32 2147483647, %v3193
        %vm3359 = vcmp.eq.f32.partialorder %v3358, 8.507059e+37
        %v3360 = vand.u32 %v3193, 2147483648
        %v3361 = vor.u32 1.1754944e-38, %v3360
        %v3362 = vsel %vm3359, %v3361, %v3357
        %v3363 = vmul.f32 1.0, %v3362
        %v3364 = vrcp.pop %v3194
        %v3365 = vmul.f32 %v3194, %v3364
        %v3366 = vsub.f32 1.0, %v3365
        %v3367 = vmul.f32 %v3364, %v3366
        %v3368 = vadd.f32 %v3364, %v3367
        %vm3369 = vweird.f32 %v3194
        %vm3370 = vweird.f32 %v3364
        %vm3371 = vmor %vm3369, %vm3370
        %v3372 = vsel %vm3371, %v3364, %v3368
        %v3373 = vand.u32 2147483647, %v3194
        %vm3374 = vcmp.eq.f32.partialorder %v3373, 8.507059e+37
        %v3375 = vand.u32 %v3194, 2147483648
        %v3376 = vor.u32 1.1754944e-38, %v3375
        %v3377 = vsel %vm3374, %v3376, %v3372
        %v3378 = vmul.f32 1.0, %v3377
        %v3379 = vrcp.pop %v3195
        %v3380 = vmul.f32 %v3195, %v3379
        %v3381 = vsub.f32 1.0, %v3380
        %v3382 = vmul.f32 %v3379, %v3381
        %v3383 = vadd.f32 %v3379, %v3382
        %vm3384 = vweird.f32 %v3195
        %vm3385 = vweird.f32 %v3379
        %vm3386 = vmor %vm3384, %vm3385
        %v3387 = vsel %vm3386, %v3379, %v3383
        %v3388 = vand.u32 2147483647, %v3195
        %vm3389 = vcmp.eq.f32.partialorder %v3388, 8.507059e+37
        %v3390 = vand.u32 %v3195, 2147483648
        %v3391 = vor.u32 1.1754944e-38, %v3390
        %v3392 = vsel %vm3389, %v3391, %v3387
        %v3393 = vmul.f32 1.0, %v3392
        %v3394 = vrcp.pop %v3196
        %v3395 = vmul.f32 %v3196, %v3394
        %v3396 = vsub.f32 1.0, %v3395
        %v3397 = vmul.f32 %v3394, %v3396
        %v3398 = vadd.f32 %v3394, %v3397
        %vm3399 = vweird.f32 %v3196
        %vm3400 = vweird.f32 %v3394
        %vm3401 = vmor %vm3399, %vm3400
        %v3402 = vsel %vm3401, %v3394, %v3398
        %v3403 = vand.u32 2147483647, %v3196
        %vm3404 = vcmp.eq.f32.partialorder %v3403, 8.507059e+37
        %v3405 = vand.u32 %v3196, 2147483648
        %v3406 = vor.u32 1.1754944e-38, %v3405
        %v3407 = vsel %vm3404, %v3406, %v3402
        %v3408 = vmul.f32 1.0, %v3407
        %v3409 = vrcp.pop %v3197
        %v3410 = vmul.f32 %v3197, %v3409
        %v3411 = vsub.f32 1.0, %v3410
        %v3412 = vmul.f32 %v3409, %v3411
        %v3413 = vadd.f32 %v3409, %v3412
        %vm3414 = vweird.f32 %v3197
        %vm3415 = vweird.f32 %v3409
        %vm3416 = vmor %vm3414, %vm3415
        %v3417 = vsel %vm3416, %v3409, %v3413
        %v3418 = vand.u32 2147483647, %v3197
        %vm3419 = vcmp.eq.f32.partialorder %v3418, 8.507059e+37
        %v3420 = vand.u32 %v3197, 2147483648
        %v3421 = vor.u32 1.1754944e-38, %v3420
        %v3422 = vsel %vm3419, %v3421, %v3417
        %v3423 = vmul.f32 1.0, %v3422
        %v3424 = vrcp.pop %v3198
        %v3425 = vmul.f32 %v3198, %v3424
        %v3426 = vsub.f32 1.0, %v3425
        %v3427 = vmul.f32 %v3424, %v3426
        %v3428 = vadd.f32 %v3424, %v3427
        %vm3429 = vweird.f32 %v3198
        %vm3430 = vweird.f32 %v3424
        %vm3431 = vmor %vm3429, %vm3430
        %v3432 = vsel %vm3431, %v3424, %v3428
        %v3433 = vand.u32 2147483647, %v3198
        %vm3434 = vcmp.eq.f32.partialorder %v3433, 8.507059e+37
        %v3435 = vand.u32 %v3198, 2147483648
        %v3436 = vor.u32 1.1754944e-38, %v3435
        %v3437 = vsel %vm3434, %v3436, %v3432
        %v3438 = vmul.f32 1.0, %v3437
        %v3455 = vrot.slane %v3228, 7
        %v3456 = vrot.slane %v3243, 6
        %v3457 = vrot.slane %v3258, 5
        %v3458 = vrot.slane %v3273, 4
        %v3459 = vrot.slane %v3288, 3
        %v3460 = vrot.slane %v3303, 2
        %v3461 = vrot.slane %v3318, 1
        %v3462 = vrot.slane %v3348, 7
        %v3463 = vrot.slane %v3363, 6
        %v3464 = vrot.slane %v3378, 5
        %v3465 = vrot.slane %v3393, 4
        %v3466 = vrot.slane %v3408, 3
        %v3467 = vrot.slane %v3423, 2
        %v3468 = vrot.slane %v3438, 1
        %vm3469 = vcmask 1040384
        %v3470 = vsel %vm3469, %v3213, %v3455
        %vm3471 = vcmask 1042434
        %v3472 = vsel %vm3471, %v3456, %v3457
        %vm3473 = vcmask 1041408
        %v3474 = vsel %vm3473, %v3470, %v3472
        %vm3475 = vcmask 1044484
        %v3476 = vsel %vm3475, %v3458, %v3459
        %vm3477 = vcmask 1046534
        %v3478 = vsel %vm3477, %v3460, %v3461
        %vm3479 = vcmask 1045508
        %v3480 = vsel %vm3479, %v3476, %v3478
        %vm3481 = vcmask 1043456
        %v3482 = vsel %vm3481, %v3474, %v3480
        %v3483 = vsel %vm3469, %v3333, %v3462
        %v3484 = vsel %vm3471, %v3463, %v3464
        %v3485 = vsel %vm3473, %v3483, %v3484
        %v3486 = vsel %vm3475, %v3465, %v3466
        %v3487 = vsel %vm3477, %v3467, %v3468
        %v3488 = vsel %vm3479, %v3486, %v3487
        %v3489 = vsel %vm3481, %v3485, %v3488
        %3492 = vst [vmem:[%s219] sm:$0xff] %v3482
        %3493 = vst [vmem:[%s219 + $0x8] sm:$0xff] %v3489
        %s3494 = sand.u32 %s138, 1
        %s3495 = scalar_lea.sflag [#allocation4], %s3494
        %s3496 = sand.u32 %s138, 1
        %s3497 = smul.addr %s3496, 16
        %s3498 = scalar_lea.vmem [#allocation3], %s3497
        // Predicated region
        $region41: #{gmf_forward.1} parent=39 // pred_check
          %p3499 = pneg %p148
        $region42: #{gmf_forward.1} parent=39 // pred_check_branch
          %3501 = sbr.rel (%p3499) target = $region44
        $region43: #{gmf_forward.1} parent=39 // pred_region
          %s3502 = smul.u32 16, %s20
          %3504 = vsyncadd %s3495, 0
          %s3505 = scalar_lea.hbm %s5, %s3502
          %s3507 = sshll.u32 %s3498, 4
          %s3508 = int_to_ptr.vmem [resolvable:$true] %s3507
          %s3509 = sshll.u32 %s3505, 4
          %s3510 = int_to_ptr.hbm [resolvable:$true] %s3509
          %3512 = dma.vmem_to_hbm [thread:$0]  %s3508, 256, %s3510, %s3495
        $region44: #{gmf_forward.1} parent=39 // pred_fallthru
          _
      $region40: #{gmf_forward.1} parent=5 // pred_fallthru
        _
      %p3513 = scmp.le.s32.totalorder 2, %s15
      // Predicated region
      $region45: #{gmf_forward.1} parent=5 // pred_check
        %p3514 = pneg %p3513
      $region46: #{gmf_forward.1} parent=5 // pred_check_branch
        %3516 = sbr.rel (%p3514) target = $region48
      $region47: #{gmf_forward.1} parent=5 // pred_region
        %s3517 = ssub.s32 %s15, 2
        // Predicated region
        $region49: #{gmf_forward.1} parent=47 // pred_check
          %p3518 = pneg %p154
        $region50: #{gmf_forward.1} parent=47 // pred_check_branch
          %3520 = sbr.rel (%p3518) target = $region52
        $region51: #{gmf_forward.1} parent=47 // pred_region
          %s3521 = sand.u32 %s139, 1
          %s3522 = scalar_lea.sflag [#allocation4], %s3521
          %s3523 = sand.u32 %s139, 1
          %s3524 = smul.addr %s3523, 16
          %s3525 = scalar_lea.vmem [#allocation3], %s3524
          %3527 = dma.done %s3522, 256
        $region52: #{gmf_forward.1} parent=47 // pred_fallthru
          _
      $region48: #{gmf_forward.1} parent=5 // pred_fallthru
        _
    $region6: #{gmf_forward.1} parent=1 // loop_footer
      %s19 = sadd.s32 1, %s15
    $region7: #{gmf_forward.1} parent=1 // loop_footer_branch
      %14 = sbr.rel target = $region3
    $region8: #{gmf_forward.1} parent=1 // loop_exit
      _
    %3528 = vsyncpa [#allocation4], 1
    %s3529 = scalar_lea.sflag [#allocation4], 1
    %3530 = vsyncpa %s3529, 1

</llo_original>
